<compile_context>
chip_gen: v7x
topology: tpu7x:2x2x1
jax: 0.10.0
libtpu: 0.0.40
codegen_flags: <defaults>
</compile_context>

<pallas_src>
import functools

import jax
import jax.numpy as jnp
from jax.experimental import pallas as pl
from jax.experimental.pallas import tpu as pltpu


def _rms(v, w, eps=1e-6):
    var = jnp.mean(v * v, axis=-1, keepdims=True)
    return v * jax.lax.rsqrt(var + eps) * w


# ---------------------------------------------------------------------------
# Pallas kernels
# ---------------------------------------------------------------------------

def patch_embed_kernel(x_ref, wp_ref, bp_ref, pos_ref, o_ref):
    # x: [TBN, L, P] bf16   wp: [P, D] bf16   bp: [1, D] f32   pos: [L, D] f32
    x = x_ref[...]
    tbn, L, P = x.shape
    y = jnp.dot(x.reshape(tbn * L, P), wp_ref[...],
                preferred_element_type=jnp.float32)
    y = y + bp_ref[...]
    y = y.reshape(tbn, L, -1) + pos_ref[...]
    o_ref[...] = y.astype(o_ref.dtype)


def encoder_kernel(x_ref,
                   wqkv_ref, bqkv_ref, woh_ref, bo_ref,
                   qn_ref, kn_ref, n1_ref, n2_ref,
                   w1_ref, b1_ref, w2_ref, b2_ref,
                   nf_ref,
                   out_ref,
                   acc_ref,
                   *, n_heads: int):
    """Grid = (bn_tiles [parallel], n_layers [arbitrary]).

    The residual stream of the current BN tile is carried in the f32 VMEM
    scratch `acc_ref` across the layer axis; the bf16 output block is written
    once per BN tile at the last layer (after the final RMSNorm).
    """
    layer = pl.program_id(1)

    @pl.when(layer == 0)
    def _():
        acc_ref[...] = x_ref[...].astype(jnp.float32)

    x = acc_ref[...]                         # [TBN, L, D] f32
    tbn, L, D = x.shape
    H = n_heads
    hd = D // H
    N = tbn * L
    scale = 1.0 / (hd ** 0.5)

    wqkv = wqkv_ref[0]                       # [D, 3D] bf16
    bqkv = bqkv_ref[0]                       # [1, 3D] f32
    woh = woh_ref[0]                         # [H, hd, D] bf16
    bo = bo_ref[0]                           # [1, D]  f32
    qn = qn_ref[0]                           # [1, hd] f32
    kn = kn_ref[0]
    n1 = n1_ref[0]                           # [1, D]  f32
    n2 = n2_ref[0]
    w1 = w1_ref[0]                           # [D, F] bf16
    b1 = b1_ref[0]                           # [1, F] f32
    w2 = w2_ref[0]                           # [F, D] bf16
    b2 = b2_ref[0]

    # ---------------- multi-head self-attention (pre-norm, qk-norm) ----------
    xn = _rms(x, n1).astype(jnp.bfloat16)
    qkv = jnp.dot(xn.reshape(N, D), wqkv,
                  preferred_element_type=jnp.float32) + bqkv       # [N, 3D] f32
    qkv = qkv.reshape(tbn, L, 3 * D)

    # Fold heads onto the leading (batch) axis: lane slices + major-axis concat.
    # All heavy math below runs once on batched tensors (no per-head unrolling,
    # no lane-dim concat on the output path).
    q = jnp.concatenate(
        [qkv[:, :, h * hd:(h + 1) * hd] for h in range(H)], axis=0)
    k = jnp.concatenate(
        [qkv[:, :, D + h * hd:D + (h + 1) * hd] for h in range(H)], axis=0)
    v = jnp.concatenate(
        [qkv[:, :, 2 * D + h * hd:2 * D + (h + 1) * hd] for h in range(H)], axis=0)
    # shapes: [H*TBN, L, hd]

    qh = (_rms(q, qn) * scale).astype(jnp.bfloat16)
    kh = _rms(k, kn).astype(jnp.bfloat16)
    vh = v.astype(jnp.bfloat16)

    s = jnp.einsum('xld,xmd->xlm', qh, kh,
                   preferred_element_type=jnp.float32)             # [H*TBN, L, L]
    m = jnp.max(s, axis=-1, keepdims=True)
    p = jnp.exp(s - m)
    p = p * pl.reciprocal(jnp.sum(p, axis=-1, keepdims=True), approx=True)
    o = jnp.einsum('xlm,xmd->xld', p.astype(jnp.bfloat16), vh,
                   preferred_element_type=jnp.float32)             # [H*TBN, L, hd]

    # Output projection: concat_h(o_h) @ Wo == sum_h o_h @ Wo_h.  Batched einsum
    # over the head axis + a major-axis sum avoids a lane-dim concatenate.
    o = o.reshape(H, tbn, L, hd).reshape(H, N, hd).astype(jnp.bfloat16)
    z = jnp.einsum('hnd,hde->hne', o, woh,
                   preferred_element_type=jnp.float32)             # [H, N, D]
    attn = jnp.sum(z, axis=0) + bo                                 # [N, D]
    x = x + attn.reshape(tbn, L, D)

    # ---------------- feed-forward (pre-norm, SiLU) ---------------------------
    xn2 = _rms(x, n2).astype(jnp.bfloat16)
    h1 = jnp.dot(xn2.reshape(N, D), w1,
                 preferred_element_type=jnp.float32) + b1
    h1 = (h1 * jax.nn.sigmoid(h1)).astype(jnp.bfloat16)            # SiLU
    ff = jnp.dot(h1, w2, preferred_element_type=jnp.float32) + b2
    x = x + ff.reshape(tbn, L, D)

    acc_ref[...] = x

    @pl.when(layer == pl.num_programs(1) - 1)
    def _():
        out_ref[...] = _rms(x, nf_ref[...]).astype(out_ref.dtype)


# ---------------------------------------------------------------------------
# Wrapper
# ---------------------------------------------------------------------------

def backbone_forward(x, params, *, n_heads, bn_tile=None):
    """x: [B, num_patch, nvars, patch_size] -> [B, nvars, d_model, num_patch]."""
    B, L, V, P = x.shape
    D = params['wp'].shape[1]
    F = params['w1'].shape[2]
    n_layers = params['wqkv'].shape[0]
    H = n_heads
    hd = D // H
    BN = B * V
    if bn_tile is None:
        bn_tile = BN
    assert BN % bn_tile == 0, (BN, bn_tile)
    nbn = BN // bn_tile

    # glue: (batch num_patch nvars patch) -> ((batch nvars) num_patch patch), bf16
    xp = jnp.transpose(x, (0, 2, 1, 3)).reshape(BN, L, P).astype(jnp.bfloat16)
    pos = params['pos'][:L]

    # Rough encoder VMEM budget: double-buffered bf16 weights + in/out act tiles
    # + f32 residual scratch + in-kernel temporaries (qkv, scores, FFN hidden).
    w_bytes = 2 * 2 * (D * 3 * D + D * D + 2 * D * F)
    a_bytes = 2 * 2 * 2 * (bn_tile * L * D)
    t_bytes = 4 * (bn_tile * L * (3 * D + F + 2 * D) + H * bn_tile * L * L)
    enc_vmem = int(min(max(2 * (w_bytes + a_bytes + t_bytes), 16 * 2**20),
                       64 * 2**20))

    # ---- patch embedding: tiled over BN, bf16 output -------------------------
    x_emb = pl.pallas_call(
        patch_embed_kernel,
        grid_spec=pltpu.PrefetchScalarGridSpec(
            num_scalar_prefetch=0,
            grid=(nbn,),
            in_specs=[
                pl.BlockSpec((bn_tile, L, P), lambda b: (b, 0, 0)),
                pl.BlockSpec((P, D), lambda b: (0, 0)),
                pl.BlockSpec((1, D), lambda b: (0, 0)),
                pl.BlockSpec((L, D), lambda b: (0, 0)),
            ],
            out_specs=pl.BlockSpec((bn_tile, L, D), lambda b: (b, 0, 0)),
        ),
        out_shape=jax.ShapeDtypeStruct((BN, L, D), jnp.bfloat16),
        compiler_params=pltpu.CompilerParams(
            dimension_semantics=("parallel",),
            vmem_limit_bytes=16 * 2**20),
    )(xp, params['wp'], params['bp'], pos)

    # per-head output-projection slabs: wo[D, D] -> [n_layers, H, hd, D]
    woh = params['wo'].reshape(n_layers, H, hd, D)

    def w_spec(arr):
        nd = arr.ndim
        return pl.BlockSpec((1,) + tuple(arr.shape[1:]),
                            lambda b, l, nd=nd: (l,) + (0,) * (nd - 1))

    grid_spec = pltpu.PrefetchScalarGridSpec(
        num_scalar_prefetch=0,
        grid=(nbn, n_layers),
        in_specs=[
            pl.BlockSpec((bn_tile, L, D), lambda b, l: (b, 0, 0)),   # residual seed
            w_spec(params['wqkv']), w_spec(params['bqkv']),
            w_spec(woh), w_spec(params['bo']),
            w_spec(params['qn']), w_spec(params['kn']),
            w_spec(params['n1']), w_spec(params['n2']),
            w_spec(params['w1']), w_spec(params['b1']),
            w_spec(params['w2']), w_spec(params['b2']),
            pl.BlockSpec((1, D), lambda b, l: (0, 0)),               # final norm
        ],
        out_specs=pl.BlockSpec((bn_tile, L, D), lambda b, l: (b, 0, 0)),
        scratch_shapes=[pltpu.VMEM((bn_tile, L, D), jnp.float32)],
    )

    y = pl.pallas_call(
        functools.partial(encoder_kernel, n_heads=n_heads),
        grid_spec=grid_spec,
        out_shape=jax.ShapeDtypeStruct((BN, L, D), jnp.bfloat16),
        compiler_params=pltpu.CompilerParams(
            dimension_semantics=("parallel", "arbitrary"),
            vmem_limit_bytes=enc_vmem),
    )(x_emb,
      params['wqkv'], params['bqkv'], woh, params['bo'],
      params['qn'], params['kn'], params['n1'], params['n2'],
      params['w1'], params['b1'], params['w2'], params['b2'],
      params['nf'])

    # glue: ((batch nvars) num_patch d_model) -> (batch nvars d_model num_patch)
    y = y.astype(jnp.float32)
    return jnp.transpose(y.reshape(B, V, L, D), (0, 1, 3, 2))


# ---------------------------------------------------------------------------
# Pure-JAX reference (f32, same weights) for a sanity check
# ---------------------------------------------------------------------------

def backbone_reference(x, params, *, n_heads):
    p = jax.tree_util.tree_map(lambda a: a.astype(jnp.float32), params)
    B, L, V, P = x.shape
    D = p['wp'].shape[1]
    hd = D // n_heads
    xp = jnp.transpose(x, (0, 2, 1, 3)).reshape(B * V, L, P).astype(jnp.float32)
    h = xp @ p['wp'] + p['bp'] + p['pos'][:L]
    for li in range(p['wqkv'].shape[0]):
        xn = _rms(h, p['n1'][li])
        qkv = xn @ p['wqkv'][li] + p['bqkv'][li]
        q, k, v = qkv[..., :D], qkv[..., D:2 * D], qkv[..., 2 * D:]
        outs = []
        for hi in range(n_heads):
            sl = slice(hi * hd, (hi + 1) * hd)
            qh = _rms(q[..., sl], p['qn'][li])
            kh = _rms(k[..., sl], p['kn'][li])
            s = jnp.einsum('bld,bmd->blm', qh, kh) / (hd ** 0.5)
            prob = jax.nn.softmax(s, axis=-1)
            outs.append(jnp.einsum('blm,bmd->bld', prob, v[..., sl]))
        attn = jnp.concatenate(outs, axis=-1) @ p['wo'][li] + p['bo'][li]
        h = h + attn
        xn2 = _rms(h, p['n2'][li])
        f = xn2 @ p['w1'][li] + p['b1'][li]
        f = f * jax.nn.sigmoid(f)
        h = h + f @ p['w2'][li] + p['b2'][li]
    h = _rms(h, p['nf'])
    return jnp.transpose(h.reshape(B, V, L, D), (0, 1, 3, 2))


# ---------------------------------------------------------------------------
# Deterministic parameter init (matmul weights in bf16, the rest in f32)
# ---------------------------------------------------------------------------

def init_params(key, *, max_patch_len, patch_size, d_model, d_ff, n_layers, n_heads):
    hd = d_model // n_heads
    ks = jax.random.split(key, 6)
    s = 0.02
    f32, bf16 = jnp.float32, jnp.bfloat16
    return {
        'wp': (s * jax.random.normal(ks[0], (patch_size, d_model), f32)).astype(bf16),
        'bp': jnp.zeros((1, d_model), f32),
        'pos': s * jax.random.normal(ks[1], (max_patch_len, d_model), f32),
        'wqkv': (s * jax.random.normal(ks[2], (n_layers, d_model, 3 * d_model), f32)).astype(bf16),
        'bqkv': jnp.zeros((n_layers, 1, 3 * d_model), f32),
        'wo': (s * jax.random.normal(ks[3], (n_layers, d_model, d_model), f32)).astype(bf16),
        'bo': jnp.zeros((n_layers, 1, d_model), f32),
        'qn': jnp.ones((n_layers, 1, hd), f32),
        'kn': jnp.ones((n_layers, 1, hd), f32),
        'n1': jnp.ones((n_layers, 1, d_model), f32),
        'n2': jnp.ones((n_layers, 1, d_model), f32),
        'w1': (s * jax.random.normal(ks[4], (n_layers, d_model, d_ff), f32)).astype(bf16),
        'b1': jnp.zeros((n_layers, 1, d_ff), f32),
        'w2': (s * jax.random.normal(ks[5], (n_layers, d_ff, d_model), f32)).astype(bf16),
        'b2': jnp.zeros((n_layers, 1, d_model), f32),
        'nf': jnp.ones((1, d_model), f32),
    }


# ---------------------------------------------------------------------------
# Main
# ---------------------------------------------------------------------------

if __name__ == "__main__":
    # small shapes consistent with the module; BN = B*nvars = 8 -> two BN tiles
    B, num_patch, nvars, patch_size = 2, 8, 4, 16
    max_patch_len, d_model, d_ff, n_layers, n_heads = 8, 64, 128, 2, 4

    key = jax.random.PRNGKey(0)
    kx, kp = jax.random.split(key)
    x = jax.random.normal(kx, (B, num_patch, nvars, patch_size), jnp.float32)
    params = init_params(kp, max_patch_len=max_patch_len, patch_size=patch_size,
                         d_model=d_model, d_ff=d_ff, n_layers=n_layers,
                         n_heads=n_heads)

    fwd = jax.jit(functools.partial(backbone_forward, n_heads=n_heads, bn_tile=4))
    out = jax.block_until_ready(fwd(x, params))

    ref = backbone_reference(x, params, n_heads=n_heads)
    assert out.shape == (B, nvars, d_model, num_patch), out.shape
    assert bool(jnp.all(jnp.isfinite(out)))
    max_err = float(jnp.max(jnp.abs(out - ref)))
    # bf16 weights/activations with f32 accumulation vs f32 reference
    assert jnp.allclose(out, ref, atol=5e-2, rtol=5e-2), max_err

    print("KERNEL_OK")
</pallas_src>

<mosaic_0001>
module attributes {stable_mosaic.version = 11 : i64} {
  func.func @patch_embed_kernel(%arg0: i32, %arg1: memref<4x8x16xbf16, #tpu.memory_space<vmem>>, %arg2: memref<16x64xbf16, #tpu.memory_space<vmem>>, %arg3: memref<1x64xf32, #tpu.memory_space<vmem>>, %arg4: memref<8x64xf32, #tpu.memory_space<vmem>>, %arg5: memref<4x8x64xbf16, #tpu.memory_space<vmem>>) attributes {dimension_semantics = [#tpu.dimension_semantics<parallel>], iteration_bounds = array<i64: 2>, scalar_prefetch = 0 : i64, scratch_operands = 0 : i64, tpu.core_type = #tpu.core_type<tc>, window_params = [{transform_indices = @transform_0, window_bounds = array<i64: 4, 8, 16>}, {pipeline_mode = #tpu.pipeline_mode<synchronous>, transform_indices = @transform_1, window_bounds = array<i64: 16, 64>}, {pipeline_mode = #tpu.pipeline_mode<synchronous>, transform_indices = @transform_2, window_bounds = array<i64: 1, 64>}, {pipeline_mode = #tpu.pipeline_mode<synchronous>, transform_indices = @transform_3, window_bounds = array<i64: 8, 64>}, {transform_indices = @transform_4, window_bounds = array<i64: 4, 8, 64>}]} {
    %c0 = arith.constant 0 : index
    %c0_0 = arith.constant 0 : index
    %c0_1 = arith.constant 0 : index
    %0 = vector.load %arg1[%c0, %c0_0, %c0_1] : memref<4x8x16xbf16, #tpu.memory_space<vmem>>, vector<4x8x16xbf16>
    %1 = vector.shape_cast %0 : vector<4x8x16xbf16> to vector<32x16xbf16>
    %c0_2 = arith.constant 0 : index
    %c0_3 = arith.constant 0 : index
    %2 = vector.load %arg2[%c0_2, %c0_3] : memref<16x64xbf16, #tpu.memory_space<vmem>>, vector<16x64xbf16>
    %cst = arith.constant dense<0.000000e+00> : vector<32x64xf32>
    %3 = tpu.matmul %1, %2, %cst {dimension_numbers = #tpu.dot_dimension_numbers<[1], [0], [0], [1], [0, 0, 1, 1], [], []>} : vector<32x16xbf16>, vector<16x64xbf16>, vector<32x64xf32> -> vector<32x64xf32>
    %c0_4 = arith.constant 0 : index
    %c0_5 = arith.constant 0 : index
    %4 = vector.load %arg3[%c0_4, %c0_5] : memref<1x64xf32, #tpu.memory_space<vmem>>, vector<1x64xf32>
    %5 = vector.broadcast %4 : vector<1x64xf32> to vector<32x64xf32>
    %6 = arith.addf %3, %5 : vector<32x64xf32>
    %7 = vector.shape_cast %6 : vector<32x64xf32> to vector<4x8x64xf32>
    %c0_6 = arith.constant 0 : index
    %c0_7 = arith.constant 0 : index
    %8 = vector.load %arg4[%c0_6, %c0_7] : memref<8x64xf32, #tpu.memory_space<vmem>>, vector<8x64xf32>
    %9 = vector.shape_cast %8 : vector<8x64xf32> to vector<1x8x64xf32>
    %10 = vector.broadcast %9 : vector<1x8x64xf32> to vector<4x8x64xf32>
    %11 = arith.addf %7, %10 : vector<4x8x64xf32>
    %12 = arith.truncf %11 : vector<4x8x64xf32> to vector<4x8x64xbf16>
    %c0_8 = arith.constant 0 : index
    %c0_9 = arith.constant 0 : index
    %c0_10 = arith.constant 0 : index
    %13 = vector.load %arg5[%c0_8, %c0_9, %c0_10] : memref<4x8x64xbf16, #tpu.memory_space<vmem>>, vector<4x8x64xbf16>
    tpu.vector_store %arg5[%c0_8, %c0_9, %c0_10], %12 {strides = array<i32>} : memref<4x8x64xbf16, #tpu.memory_space<vmem>>, vector<4x8x64xbf16>,
    return
  }
  func.func @transform_0(%arg0: i32) -> (i32, i32, i32) {
    %c0_i32 = arith.constant 0 : i32
    %c0_i32_0 = arith.constant 0 : i32
    %c0_i32_1 = arith.constant 0 : i32
    return %arg0, %c0_i32, %c0_i32_0 : i32, i32, i32
  }
  func.func @transform_1(%arg0: i32) -> (i32, i32) {
    %c0_i32 = arith.constant 0 : i32
    %c0_i32_0 = arith.constant 0 : i32
    %c0_i32_1 = arith.constant 0 : i32
    return %c0_i32, %c0_i32_0 : i32, i32
  }
  func.func @transform_2(%arg0: i32) -> (i32, i32) {
    %c0_i32 = arith.constant 0 : i32
    %c0_i32_0 = arith.constant 0 : i32
    %c0_i32_1 = arith.constant 0 : i32
    return %c0_i32, %c0_i32_0 : i32, i32
  }
  func.func @transform_3(%arg0: i32) -> (i32, i32) {
    %c0_i32 = arith.constant 0 : i32
    %c0_i32_0 = arith.constant 0 : i32
    %c0_i32_1 = arith.constant 0 : i32
    return %c0_i32, %c0_i32_0 : i32, i32
  }
  func.func @transform_4(%arg0: i32) -> (i32, i32, i32) {
    %c0_i32 = arith.constant 0 : i32
    %c0_i32_0 = arith.constant 0 : i32
    %c0_i32_1 = arith.constant 0 : i32
    return %arg0, %c0_i32, %c0_i32_0 : i32, i32, i32
  }
}

module attributes {stable_mosaic.version = 11 : i64} {
  func.func @encoder_kernel(%arg0: i32, %arg1: i32, %arg2: memref<4x8x64xbf16, #tpu.memory_space<vmem>>, %arg3: memref<1x64x192xbf16, #tpu.memory_space<vmem>>, %arg4: memref<1x1x192xf32, #tpu.memory_space<vmem>>, %arg5: memref<1x4x16x64xbf16, #tpu.memory_space<vmem>>, %arg6: memref<1x1x64xf32, #tpu.memory_space<vmem>>, %arg7: memref<1x1x16xf32, #tpu.memory_space<vmem>>, %arg8: memref<1x1x16xf32, #tpu.memory_space<vmem>>, %arg9: memref<1x1x64xf32, #tpu.memory_space<vmem>>, %arg10: memref<1x1x64xf32, #tpu.memory_space<vmem>>, %arg11: memref<1x64x128xbf16, #tpu.memory_space<vmem>>, %arg12: memref<1x1x128xf32, #tpu.memory_space<vmem>>, %arg13: memref<1x128x64xbf16, #tpu.memory_space<vmem>>, %arg14: memref<1x1x64xf32, #tpu.memory_space<vmem>>, %arg15: memref<1x64xf32, #tpu.memory_space<vmem>>, %arg16: memref<4x8x64xbf16, #tpu.memory_space<vmem>>, %arg17: memref<4x8x64xf32, #tpu.memory_space<vmem>>) attributes {dimension_semantics = [#tpu.dimension_semantics<parallel>, #tpu.dimension_semantics<arbitrary>], iteration_bounds = array<i64: 2, 2>, scalar_prefetch = 0 : i64, scratch_operands = 1 : i64, tpu.core_type = #tpu.core_type<tc>, window_params = [{transform_indices = @transform_0, window_bounds = array<i64: 4, 8, 64>}, {transform_indices = @transform_1, window_bounds = array<i64: 1, 64, 192>}, {transform_indices = @transform_2, window_bounds = array<i64: 1, 1, 192>}, {transform_indices = @transform_3, window_bounds = array<i64: 1, 4, 16, 64>}, {transform_indices = @transform_4, window_bounds = array<i64: 1, 1, 64>}, {transform_indices = @transform_5, window_bounds = array<i64: 1, 1, 16>}, {transform_indices = @transform_6, window_bounds = array<i64: 1, 1, 16>}, {transform_indices = @transform_7, window_bounds = array<i64: 1, 1, 64>}, {transform_indices = @transform_8, window_bounds = array<i64: 1, 1, 64>}, {transform_indices = @transform_9, window_bounds = array<i64: 1, 64, 128>}, {transform_indices = @transform_10, window_bounds = array<i64: 1, 1, 128>}, {transform_indices = @transform_11, window_bounds = array<i64: 1, 128, 64>}, {transform_indices = @transform_12, window_bounds = array<i64: 1, 1, 64>}, {pipeline_mode = #tpu.pipeline_mode<synchronous>, transform_indices = @transform_13, window_bounds = array<i64: 1, 64>}, {transform_indices = @transform_14, window_bounds = array<i64: 4, 8, 64>}]} {
    %c0_i32 = arith.constant 0 : i32
    %0 = arith.cmpi eq, %arg1, %c0_i32 : i32
    %1 = arith.extui %0 : i1 to i32
    %c0_i32_0 = arith.constant 0 : i32
    %2 = arith.cmpi ne, %1, %c0_i32_0 : i32
    scf.if %2 {
      %c0_66 = arith.constant 0 : index
      %c0_67 = arith.constant 0 : index
      %c0_68 = arith.constant 0 : index
      %149 = vector.load %arg2[%c0_66, %c0_67, %c0_68] : memref<4x8x64xbf16, #tpu.memory_space<vmem>>, vector<4x8x64xbf16>
      %150 = arith.extf %149 : vector<4x8x64xbf16> to vector<4x8x64xf32>
      %c0_69 = arith.constant 0 : index
      %c0_70 = arith.constant 0 : index
      %c0_71 = arith.constant 0 : index
      %151 = vector.load %arg17[%c0_69, %c0_70, %c0_71] : memref<4x8x64xf32, #tpu.memory_space<vmem>>, vector<4x8x64xf32>
      tpu.vector_store %arg17[%c0_69, %c0_70, %c0_71], %150 {strides = array<i32>} : memref<4x8x64xf32, #tpu.memory_space<vmem>>, vector<4x8x64xf32>,
    } else {
    }
    %c0 = arith.constant 0 : index
    %c0_1 = arith.constant 0 : index
    %c0_2 = arith.constant 0 : index
    %3 = vector.load %arg17[%c0, %c0_1, %c0_2] : memref<4x8x64xf32, #tpu.memory_space<vmem>>, vector<4x8x64xf32>
    %c0_3 = arith.constant 0 : index
    %c0_4 = arith.constant 0 : index
    %c0_5 = arith.constant 0 : index
    %4 = vector.load %arg3[%c0_3, %c0_4, %c0_5] : memref<1x64x192xbf16, #tpu.memory_space<vmem>>, vector<1x64x192xbf16>
    %5 = vector.shape_cast %4 : vector<1x64x192xbf16> to vector<64x192xbf16>
    %c0_6 = arith.constant 0 : index
    %c0_7 = arith.constant 0 : index
    %c0_8 = arith.constant 0 : index
    %6 = vector.load %arg4[%c0_6, %c0_7, %c0_8] : memref<1x1x192xf32, #tpu.memory_space<vmem>>, vector<1x1x192xf32>
    %7 = vector.shape_cast %6 : vector<1x1x192xf32> to vector<1x192xf32>
    %c0_9 = arith.constant 0 : index
    %c0_10 = arith.constant 0 : index
    %c0_11 = arith.constant 0 : index
    %c0_12 = arith.constant 0 : index
    %8 = vector.load %arg5[%c0_9, %c0_10, %c0_11, %c0_12] : memref<1x4x16x64xbf16, #tpu.memory_space<vmem>>, vector<1x4x16x64xbf16>
    %9 = vector.shape_cast %8 : vector<1x4x16x64xbf16> to vector<4x16x64xbf16>
    %c0_13 = arith.constant 0 : index
    %c0_14 = arith.constant 0 : index
    %c0_15 = arith.constant 0 : index
    %10 = vector.load %arg6[%c0_13, %c0_14, %c0_15] : memref<1x1x64xf32, #tpu.memory_space<vmem>>, vector<1x1x64xf32>
    %11 = vector.shape_cast %10 : vector<1x1x64xf32> to vector<1x64xf32>
    %c0_16 = arith.constant 0 : index
    %c0_17 = arith.constant 0 : index
    %c0_18 = arith.constant 0 : index
    %12 = vector.load %arg7[%c0_16, %c0_17, %c0_18] : memref<1x1x16xf32, #tpu.memory_space<vmem>>, vector<1x1x16xf32>
    %13 = vector.shape_cast %12 : vector<1x1x16xf32> to vector<1x16xf32>
    %c0_19 = arith.constant 0 : index
    %c0_20 = arith.constant 0 : index
    %c0_21 = arith.constant 0 : index
    %14 = vector.load %arg8[%c0_19, %c0_20, %c0_21] : memref<1x1x16xf32, #tpu.memory_space<vmem>>, vector<1x1x16xf32>
    %15 = vector.shape_cast %14 : vector<1x1x16xf32> to vector<1x16xf32>
    %c0_22 = arith.constant 0 : index
    %c0_23 = arith.constant 0 : index
    %c0_24 = arith.constant 0 : index
    %16 = vector.load %arg9[%c0_22, %c0_23, %c0_24] : memref<1x1x64xf32, #tpu.memory_space<vmem>>, vector<1x1x64xf32>
    %17 = vector.shape_cast %16 : vector<1x1x64xf32> to vector<1x64xf32>
    %c0_25 = arith.constant 0 : index
    %c0_26 = arith.constant 0 : index
    %c0_27 = arith.constant 0 : index
    %18 = vector.load %arg10[%c0_25, %c0_26, %c0_27] : memref<1x1x64xf32, #tpu.memory_space<vmem>>, vector<1x1x64xf32>
    %19 = vector.shape_cast %18 : vector<1x1x64xf32> to vector<1x64xf32>
    %c0_28 = arith.constant 0 : index
    %c0_29 = arith.constant 0 : index
    %c0_30 = arith.constant 0 : index
    %20 = vector.load %arg11[%c0_28, %c0_29, %c0_30] : memref<1x64x128xbf16, #tpu.memory_space<vmem>>, vector<1x64x128xbf16>
    %21 = vector.shape_cast %20 : vector<1x64x128xbf16> to vector<64x128xbf16>
    %c0_31 = arith.constant 0 : index
    %c0_32 = arith.constant 0 : index
    %c0_33 = arith.constant 0 : index
    %22 = vector.load %arg12[%c0_31, %c0_32, %c0_33] : memref<1x1x128xf32, #tpu.memory_space<vmem>>, vector<1x1x128xf32>
    %23 = vector.shape_cast %22 : vector<1x1x128xf32> to vector<1x128xf32>
    %c0_34 = arith.constant 0 : index
    %c0_35 = arith.constant 0 : index
    %c0_36 = arith.constant 0 : index
    %24 = vector.load %arg13[%c0_34, %c0_35, %c0_36] : memref<1x128x64xbf16, #tpu.memory_space<vmem>>, vector<1x128x64xbf16>
    %25 = vector.shape_cast %24 : vector<1x128x64xbf16> to vector<128x64xbf16>
    %c0_37 = arith.constant 0 : index
    %c0_38 = arith.constant 0 : index
    %c0_39 = arith.constant 0 : index
    %26 = vector.load %arg14[%c0_37, %c0_38, %c0_39] : memref<1x1x64xf32, #tpu.memory_space<vmem>>, vector<1x1x64xf32>
    %27 = vector.shape_cast %26 : vector<1x1x64xf32> to vector<1x64xf32>
    %28 = arith.mulf %3, %3 : vector<4x8x64xf32>
    %cst = arith.constant dense<0.000000e+00> : vector<4x8xf32>
    %29 = vector.multi_reduction <add>, %28, %cst [2] : vector<4x8x64xf32> to vector<4x8xf32>
    %30 = vector.shape_cast %29 : vector<4x8xf32> to vector<4x8x1xf32>
    %cst_40 = arith.constant 6.400000e+01 : f32
    %31 = vector.broadcast %cst_40 : f32 to vector<4x8x1xf32>
    %32 = arith.divf %30, %31 : vector<4x8x1xf32>
    %cst_41 = arith.constant 9.99999997E-7 : f32
    %33 = vector.broadcast %cst_41 : f32 to vector<4x8x1xf32>
    %34 = arith.addf %32, %33 : vector<4x8x1xf32>
    %35 = math.rsqrt %34 : vector<4x8x1xf32>
    %36 = vector.broadcast %35 : vector<4x8x1xf32> to vector<4x8x64xf32>
    %37 = arith.mulf %3, %36 : vector<4x8x64xf32>
    %38 = vector.shape_cast %17 : vector<1x64xf32> to vector<1x1x64xf32>
    %39 = vector.broadcast %38 : vector<1x1x64xf32> to vector<4x8x64xf32>
    %40 = arith.mulf %37, %39 : vector<4x8x64xf32>
    %41 = arith.truncf %40 : vector<4x8x64xf32> to vector<4x8x64xbf16>
    %42 = vector.shape_cast %41 : vector<4x8x64xbf16> to vector<32x64xbf16>
    %cst_42 = arith.constant dense<0.000000e+00> : vector<32x192xf32>
    %43 = tpu.matmul %42, %5, %cst_42 {dimension_numbers = #tpu.dot_dimension_numbers<[1], [0], [0], [1], [0, 0, 1, 1], [], []>} : vector<32x64xbf16>, vector<64x192xbf16>, vector<32x192xf32> -> vector<32x192xf32>
    %44 = vector.broadcast %7 : vector<1x192xf32> to vector<32x192xf32>
    %45 = arith.addf %43, %44 : vector<32x192xf32>
    %46 = vector.shape_cast %45 : vector<32x192xf32> to vector<4x8x192xf32>
    %47 = vector.extract_strided_slice %46 {offsets = [0, 0, 0], sizes = [4, 8, 16], strides = [1, 1, 1]} : vector<4x8x192xf32> to vector<4x8x16xf32>
    %48 = vector.extract_strided_slice %46 {offsets = [0, 0, 16], sizes = [4, 8, 16], strides = [1, 1, 1]} : vector<4x8x192xf32> to vector<4x8x16xf32>
    %49 = vector.extract_strided_slice %46 {offsets = [0, 0, 32], sizes = [4, 8, 16], strides = [1, 1, 1]} : vector<4x8x192xf32> to vector<4x8x16xf32>
    %50 = vector.extract_strided_slice %46 {offsets = [0, 0, 48], sizes = [4, 8, 16], strides = [1, 1, 1]} : vector<4x8x192xf32> to vector<4x8x16xf32>
    %51 = tpu.concatenate %47, %48, %49, %50 in 0 : vector<4x8x16xf32>, vector<4x8x16xf32>, vector<4x8x16xf32>, vector<4x8x16xf32> -> vector<16x8x16xf32>
    %52 = vector.extract_strided_slice %46 {offsets = [0, 0, 64], sizes = [4, 8, 16], strides = [1, 1, 1]} : vector<4x8x192xf32> to vector<4x8x16xf32>
    %53 = vector.extract_strided_slice %46 {offsets = [0, 0, 80], sizes = [4, 8, 16], strides = [1, 1, 1]} : vector<4x8x192xf32> to vector<4x8x16xf32>
    %54 = vector.extract_strided_slice %46 {offsets = [0, 0, 96], sizes = [4, 8, 16], strides = [1, 1, 1]} : vector<4x8x192xf32> to vector<4x8x16xf32>
    %55 = vector.extract_strided_slice %46 {offsets = [0, 0, 112], sizes = [4, 8, 16], strides = [1, 1, 1]} : vector<4x8x192xf32> to vector<4x8x16xf32>
    %56 = tpu.concatenate %52, %53, %54, %55 in 0 : vector<4x8x16xf32>, vector<4x8x16xf32>, vector<4x8x16xf32>, vector<4x8x16xf32> -> vector<16x8x16xf32>
    %57 = vector.extract_strided_slice %46 {offsets = [0, 0, 128], sizes = [4, 8, 16], strides = [1, 1, 1]} : vector<4x8x192xf32> to vector<4x8x16xf32>
    %58 = vector.extract_strided_slice %46 {offsets = [0, 0, 144], sizes = [4, 8, 16], strides = [1, 1, 1]} : vector<4x8x192xf32> to vector<4x8x16xf32>
    %59 = vector.extract_strided_slice %46 {offsets = [0, 0, 160], sizes = [4, 8, 16], strides = [1, 1, 1]} : vector<4x8x192xf32> to vector<4x8x16xf32>
    %60 = vector.extract_strided_slice %46 {offsets = [0, 0, 176], sizes = [4, 8, 16], strides = [1, 1, 1]} : vector<4x8x192xf32> to vector<4x8x16xf32>
    %61 = tpu.concatenate %57, %58, %59, %60 in 0 : vector<4x8x16xf32>, vector<4x8x16xf32>, vector<4x8x16xf32>, vector<4x8x16xf32> -> vector<16x8x16xf32>
    %62 = arith.mulf %51, %51 : vector<16x8x16xf32>
    %cst_43 = arith.constant dense<0.000000e+00> : vector<16x8xf32>
    %63 = vector.multi_reduction <add>, %62, %cst_43 [2] : vector<16x8x16xf32> to vector<16x8xf32>
    %64 = vector.shape_cast %63 : vector<16x8xf32> to vector<16x8x1xf32>
    %cst_44 = arith.constant 1.600000e+01 : f32
    %65 = vector.broadcast %cst_44 : f32 to vector<16x8x1xf32>
    %66 = arith.divf %64, %65 : vector<16x8x1xf32>
    %cst_45 = arith.constant 9.99999997E-7 : f32
    %67 = vector.broadcast %cst_45 : f32 to vector<16x8x1xf32>
    %68 = arith.addf %66, %67 : vector<16x8x1xf32>
    %69 = math.rsqrt %68 : vector<16x8x1xf32>
    %70 = vector.broadcast %69 : vector<16x8x1xf32> to vector<16x8x16xf32>
    %71 = arith.mulf %51, %70 : vector<16x8x16xf32>
    %72 = vector.shape_cast %13 : vector<1x16xf32> to vector<1x1x16xf32>
    %73 = vector.broadcast %72 : vector<1x1x16xf32> to vector<16x8x16xf32>
    %74 = arith.mulf %71, %73 : vector<16x8x16xf32>
    %cst_46 = arith.constant 2.500000e-01 : f32
    %75 = vector.broadcast %cst_46 : f32 to vector<16x8x16xf32>
    %76 = arith.mulf %74, %75 : vector<16x8x16xf32>
    %77 = arith.truncf %76 : vector<16x8x16xf32> to vector<16x8x16xbf16>
    %78 = arith.mulf %56, %56 : vector<16x8x16xf32>
    %cst_47 = arith.constant dense<0.000000e+00> : vector<16x8xf32>
    %79 = vector.multi_reduction <add>, %78, %cst_47 [2] : vector<16x8x16xf32> to vector<16x8xf32>
    %80 = vector.shape_cast %79 : vector<16x8xf32> to vector<16x8x1xf32>
    %cst_48 = arith.constant 1.600000e+01 : f32
    %81 = vector.broadcast %cst_48 : f32 to vector<16x8x1xf32>
    %82 = arith.divf %80, %81 : vector<16x8x1xf32>
    %cst_49 = arith.constant 9.99999997E-7 : f32
    %83 = vector.broadcast %cst_49 : f32 to vector<16x8x1xf32>
    %84 = arith.addf %82, %83 : vector<16x8x1xf32>
    %85 = math.rsqrt %84 : vector<16x8x1xf32>
    %86 = vector.broadcast %85 : vector<16x8x1xf32> to vector<16x8x16xf32>
    %87 = arith.mulf %56, %86 : vector<16x8x16xf32>
    %88 = vector.shape_cast %15 : vector<1x16xf32> to vector<1x1x16xf32>
    %89 = vector.broadcast %88 : vector<1x1x16xf32> to vector<16x8x16xf32>
    %90 = arith.mulf %87, %89 : vector<16x8x16xf32>
    %91 = arith.truncf %90 : vector<16x8x16xf32> to vector<16x8x16xbf16>
    %92 = arith.truncf %61 : vector<16x8x16xf32> to vector<16x8x16xbf16>
    "tpu.trace_start"() <{level = 10 : i32, message = "xld,xmd->xlm"}> : () -> ()
    %cst_50 = arith.constant dense<0.000000e+00> : vector<16x8x8xf32>
    %93 = tpu.matmul %77, %91, %cst_50 {dimension_numbers = #tpu.dot_dimension_numbers<[2], [2], [1], [1], [0, 0, 0, 1, 1, 1], [0], [0]>} : vector<16x8x16xbf16>, vector<16x8x16xbf16>, vector<16x8x8xf32> -> vector<16x8x8xf32>
    "tpu.trace_stop"() : () -> ()
    %cst_51 = arith.constant dense<0xFF800000> : vector<16x8xf32>
    %94 = vector.multi_reduction <maximumf>, %93, %cst_51 [2] : vector<16x8x8xf32> to vector<16x8xf32>
    %95 = vector.shape_cast %94 : vector<16x8xf32> to vector<16x8x1xf32>
    %96 = vector.broadcast %95 : vector<16x8x1xf32> to vector<16x8x8xf32>
    %97 = arith.subf %93, %96 : vector<16x8x8xf32>
    %98 = math.exp %97 : vector<16x8x8xf32>
    %cst_52 = arith.constant dense<0.000000e+00> : vector<16x8xf32>
    %99 = vector.multi_reduction <add>, %98, %cst_52 [2] : vector<16x8x8xf32> to vector<16x8xf32>
    %100 = vector.shape_cast %99 : vector<16x8xf32> to vector<16x8x1xf32>
    %101 = tpu.reciprocal %100 {approx = true} : vector<16x8x1xf32> -> vector<16x8x1xf32>
    %102 = vector.broadcast %101 : vector<16x8x1xf32> to vector<16x8x8xf32>
    %103 = arith.mulf %98, %102 : vector<16x8x8xf32>
    %104 = arith.truncf %103 : vector<16x8x8xf32> to vector<16x8x8xbf16>
    "tpu.trace_start"() <{level = 10 : i32, message = "xlm,xmd->xld"}> : () -> ()
    %cst_53 = arith.constant dense<0.000000e+00> : vector<16x8x16xf32>
    %105 = tpu.matmul %104, %92, %cst_53 {dimension_numbers = #tpu.dot_dimension_numbers<[2], [1], [1], [2], [0, 0, 0, 1, 1, 2], [0], [0]>} : vector<16x8x8xbf16>, vector<16x8x16xbf16>, vector<16x8x16xf32> -> vector<16x8x16xf32>
    "tpu.trace_stop"() : () -> ()
    %106 = vector.shape_cast %105 : vector<16x8x16xf32> to vector<4x4x8x16xf32>
    %107 = vector.shape_cast %106 : vector<4x4x8x16xf32> to vector<4x32x16xf32>
    %108 = arith.truncf %107 : vector<4x32x16xf32> to vector<4x32x16xbf16>
    "tpu.trace_start"() <{level = 10 : i32, message = "hnd,hde->hne"}> : () -> ()
    %cst_54 = arith.constant dense<0.000000e+00> : vector<4x32x64xf32>
    %109 = tpu.matmul %108, %9, %cst_54 {dimension_numbers = #tpu.dot_dimension_numbers<[2], [1], [1], [2], [0, 0, 0, 1, 1, 2], [0], [0]>} : vector<4x32x16xbf16>, vector<4x16x64xbf16>, vector<4x32x64xf32> -> vector<4x32x64xf32>
    "tpu.trace_stop"() : () -> ()
    %cst_55 = arith.constant dense<0.000000e+00> : vector<32x64xf32>
    %110 = vector.multi_reduction <add>, %109, %cst_55 [0] : vector<4x32x64xf32> to vector<32x64xf32>
    %111 = vector.broadcast %11 : vector<1x64xf32> to vector<32x64xf32>
    %112 = arith.addf %110, %111 : vector<32x64xf32>
    %113 = vector.shape_cast %112 : vector<32x64xf32> to vector<4x8x64xf32>
    %114 = arith.addf %3, %113 : vector<4x8x64xf32>
    %115 = arith.mulf %114, %114 : vector<4x8x64xf32>
    %cst_56 = arith.constant dense<0.000000e+00> : vector<4x8xf32>
    %116 = vector.multi_reduction <add>, %115, %cst_56 [2] : vector<4x8x64xf32> to vector<4x8xf32>
    %117 = vector.shape_cast %116 : vector<4x8xf32> to vector<4x8x1xf32>
    %cst_57 = arith.constant 6.400000e+01 : f32
    %118 = vector.broadcast %cst_57 : f32 to vector<4x8x1xf32>
    %119 = arith.divf %117, %118 : vector<4x8x1xf32>
    %cst_58 = arith.constant 9.99999997E-7 : f32
    %120 = vector.broadcast %cst_58 : f32 to vector<4x8x1xf32>
    %121 = arith.addf %119, %120 : vector<4x8x1xf32>
    %122 = math.rsqrt %121 : vector<4x8x1xf32>
    %123 = vector.broadcast %122 : vector<4x8x1xf32> to vector<4x8x64xf32>
    %124 = arith.mulf %114, %123 : vector<4x8x64xf32>
    %125 = vector.shape_cast %19 : vector<1x64xf32> to vector<1x1x64xf32>
    %126 = vector.broadcast %125 : vector<1x1x64xf32> to vector<4x8x64xf32>
    %127 = arith.mulf %124, %126 : vector<4x8x64xf32>
    %128 = arith.truncf %127 : vector<4x8x64xf32> to vector<4x8x64xbf16>
    %129 = vector.shape_cast %128 : vector<4x8x64xbf16> to vector<32x64xbf16>
    %cst_59 = arith.constant dense<0.000000e+00> : vector<32x128xf32>
    %130 = tpu.matmul %129, %21, %cst_59 {dimension_numbers = #tpu.dot_dimension_numbers<[1], [0], [0], [1], [0, 0, 1, 1], [], []>} : vector<32x64xbf16>, vector<64x128xbf16>, vector<32x128xf32> -> vector<32x128xf32>
    %131 = vector.broadcast %23 : vector<1x128xf32> to vector<32x128xf32>
    %132 = arith.addf %130, %131 : vector<32x128xf32>
    %133 = arith.negf %132 : vector<32x128xf32>
    %134 = math.exp %133 : vector<32x128xf32>
    %cst_60 = arith.constant 1.000000e+00 : f32
    %135 = vector.broadcast %cst_60 : f32 to vector<32x128xf32>
    %136 = arith.addf %135, %134 : vector<32x128xf32>
    %137 = arith.divf %135, %136 : vector<32x128xf32>
    %138 = arith.mulf %132, %137 : vector<32x128xf32>
    %139 = arith.truncf %138 : vector<32x128xf32> to vector<32x128xbf16>
    %cst_61 = arith.constant dense<0.000000e+00> : vector<32x64xf32>
    %140 = tpu.matmul %139, %25, %cst_61 {dimension_numbers = #tpu.dot_dimension_numbers<[1], [0], [0], [1], [0, 0, 1, 1], [], []>} : vector<32x128xbf16>, vector<128x64xbf16>, vector<32x64xf32> -> vector<32x64xf32>
    %141 = vector.broadcast %27 : vector<1x64xf32> to vector<32x64xf32>
    %142 = arith.addf %140, %141 : vector<32x64xf32>
    %143 = vector.shape_cast %142 : vector<32x64xf32> to vector<4x8x64xf32>
    %144 = arith.addf %114, %143 : vector<4x8x64xf32>
    %c0_62 = arith.constant 0 : index
    %c0_63 = arith.constant 0 : index
    %c0_64 = arith.constant 0 : index
    %145 = vector.load %arg17[%c0_62, %c0_63, %c0_64] : memref<4x8x64xf32, #tpu.memory_space<vmem>>, vector<4x8x64xf32>
    tpu.vector_store %arg17[%c0_62, %c0_63, %c0_64], %144 {strides = array<i32>} : memref<4x8x64xf32, #tpu.memory_space<vmem>>, vector<4x8x64xf32>,
    %c1_i32 = arith.constant 1 : i32
    %146 = arith.cmpi eq, %arg1, %c1_i32 : i32
    %147 = arith.extui %146 : i1 to i32
    %c0_i32_65 = arith.constant 0 : i32
    %148 = arith.cmpi ne, %147, %c0_i32_65 : i32
    scf.if %148 {
      %c0_66 = arith.constant 0 : index
      %c0_67 = arith.constant 0 : index
      %149 = vector.load %arg15[%c0_66, %c0_67] : memref<1x64xf32, #tpu.memory_space<vmem>>, vector<1x64xf32>
      %150 = arith.mulf %144, %144 : vector<4x8x64xf32>
      %cst_68 = arith.constant dense<0.000000e+00> : vector<4x8xf32>
      %151 = vector.multi_reduction <add>, %150, %cst_68 [2] : vector<4x8x64xf32> to vector<4x8xf32>
      %152 = vector.shape_cast %151 : vector<4x8xf32> to vector<4x8x1xf32>
      %cst_69 = arith.constant 6.400000e+01 : f32
      %153 = vector.broadcast %cst_69 : f32 to vector<4x8x1xf32>
      %154 = arith.divf %152, %153 : vector<4x8x1xf32>
      %cst_70 = arith.constant 9.99999997E-7 : f32
      %155 = vector.broadcast %cst_70 : f32 to vector<4x8x1xf32>
      %156 = arith.addf %154, %155 : vector<4x8x1xf32>
      %157 = math.rsqrt %156 : vector<4x8x1xf32>
      %158 = vector.broadcast %157 : vector<4x8x1xf32> to vector<4x8x64xf32>
      %159 = arith.mulf %144, %158 : vector<4x8x64xf32>
      %160 = vector.shape_cast %149 : vector<1x64xf32> to vector<1x1x64xf32>
      %161 = vector.broadcast %160 : vector<1x1x64xf32> to vector<4x8x64xf32>
      %162 = arith.mulf %159, %161 : vector<4x8x64xf32>
      %163 = arith.truncf %162 : vector<4x8x64xf32> to vector<4x8x64xbf16>
      %c0_71 = arith.constant 0 : index
      %c0_72 = arith.constant 0 : index
      %c0_73 = arith.constant 0 : index
      %164 = vector.load %arg16[%c0_71, %c0_72, %c0_73] : memref<4x8x64xbf16, #tpu.memory_space<vmem>>, vector<4x8x64xbf16>
      tpu.vector_store %arg16[%c0_71, %c0_72, %c0_73], %163 {strides = array<i32>} : memref<4x8x64xbf16, #tpu.memory_space<vmem>>, vector<4x8x64xbf16>,
    } else {
    }
    return
  }
  func.func @transform_0(%arg0: i32, %arg1: i32) -> (i32, i32, i32) {
    %c0_i32 = arith.constant 0 : i32
    %c0_i32_0 = arith.constant 0 : i32
    %c0_i32_1 = arith.constant 0 : i32
    return %arg0, %c0_i32, %c0_i32_0 : i32, i32, i32
  }
  func.func @transform_1(%arg0: i32, %arg1: i32) -> (i32, i32, i32) {
    %c0_i32 = arith.constant 0 : i32
    %c0_i32_0 = arith.constant 0 : i32
    %c0_i32_1 = arith.constant 0 : i32
    return %arg1, %c0_i32, %c0_i32_0 : i32, i32, i32
  }
  func.func @transform_2(%arg0: i32, %arg1: i32) -> (i32, i32, i32) {
    %c0_i32 = arith.constant 0 : i32
    %c0_i32_0 = arith.constant 0 : i32
    %c0_i32_1 = arith.constant 0 : i32
    return %arg1, %c0_i32, %c0_i32_0 : i32, i32, i32
  }
  func.func @transform_3(%arg0: i32, %arg1: i32) -> (i32, i32, i32, i32) {
    %c0_i32 = arith.constant 0 : i32
    %c0_i32_0 = arith.constant 0 : i32
    %c0_i32_1 = arith.constant 0 : i32
    %c0_i32_2 = arith.constant 0 : i32
    return %arg1, %c0_i32, %c0_i32_0, %c0_i32_1 : i32, i32, i32, i32
  }
  func.func @transform_4(%arg0: i32, %arg1: i32) -> (i32, i32, i32) {
    %c0_i32 = arith.constant 0 : i32
    %c0_i32_0 = arith.constant 0 : i32
    %c0_i32_1 = arith.constant 0 : i32
    return %arg1, %c0_i32, %c0_i32_0 : i32, i32, i32
  }
  func.func @transform_5(%arg0: i32, %arg1: i32) -> (i32, i32, i32) {
    %c0_i32 = arith.constant 0 : i32
    %c0_i32_0 = arith.constant 0 : i32
    %c0_i32_1 = arith.constant 0 : i32
    return %arg1, %c0_i32, %c0_i32_0 : i32, i32, i32
  }
  func.func @transform_6(%arg0: i32, %arg1: i32) -> (i32, i32, i32) {
    %c0_i32 = arith.constant 0 : i32
    %c0_i32_0 = arith.constant 0 : i32
    %c0_i32_1 = arith.constant 0 : i32
    return %arg1, %c0_i32, %c0_i32_0 : i32, i32, i32
  }
  func.func @transform_7(%arg0: i32, %arg1: i32) -> (i32, i32, i32) {
    %c0_i32 = arith.constant 0 : i32
    %c0_i32_0 = arith.constant 0 : i32
    %c0_i32_1 = arith.constant 0 : i32
    return %arg1, %c0_i32, %c0_i32_0 : i32, i32, i32
  }
  func.func @transform_8(%arg0: i32, %arg1: i32) -> (i32, i32, i32) {
    %c0_i32 = arith.constant 0 : i32
    %c0_i32_0 = arith.constant 0 : i32
    %c0_i32_1 = arith.constant 0 : i32
    return %arg1, %c0_i32, %c0_i32_0 : i32, i32, i32
  }
  func.func @transform_9(%arg0: i32, %arg1: i32) -> (i32, i32, i32) {
    %c0_i32 = arith.constant 0 : i32
    %c0_i32_0 = arith.constant 0 : i32
    %c0_i32_1 = arith.constant 0 : i32
    return %arg1, %c0_i32, %c0_i32_0 : i32, i32, i32
  }
  func.func @transform_10(%arg0: i32, %arg1: i32) -> (i32, i32, i32) {
    %c0_i32 = arith.constant 0 : i32
    %c0_i32_0 = arith.constant 0 : i32
    %c0_i32_1 = arith.constant 0 : i32
    return %arg1, %c0_i32, %c0_i32_0 : i32, i32, i32
  }
  func.func @transform_11(%arg0: i32, %arg1: i32) -> (i32, i32, i32) {
    %c0_i32 = arith.constant 0 : i32
    %c0_i32_0 = arith.constant 0 : i32
    %c0_i32_1 = arith.constant 0 : i32
    return %arg1, %c0_i32, %c0_i32_0 : i32, i32, i32
  }
  func.func @transform_12(%arg0: i32, %arg1: i32) -> (i32, i32, i32) {
    %c0_i32 = arith.constant 0 : i32
    %c0_i32_0 = arith.constant 0 : i32
    %c0_i32_1 = arith.constant 0 : i32
    return %arg1, %c0_i32, %c0_i32_0 : i32, i32, i32
  }
  func.func @transform_13(%arg0: i32, %arg1: i32) -> (i32, i32) {
    %c0_i32 = arith.constant 0 : i32
    %c0_i32_0 = arith.constant 0 : i32
    %c0_i32_1 = arith.constant 0 : i32
    return %c0_i32, %c0_i32_0 : i32, i32
  }
  func.func @transform_14(%arg0: i32, %arg1: i32) -> (i32, i32, i32) {
    %c0_i32 = arith.constant 0 : i32
    %c0_i32_0 = arith.constant 0 : i32
    %c0_i32_1 = arith.constant 0 : i32
    return %arg0, %c0_i32, %c0_i32_0 : i32, i32, i32
  }
}

</mosaic_0001>

<llo_original>
// kernel: backbone_forward.2
$region0: #{backbone_forward.2}
  #allocation0 [shape = 'u32[]', space=smem, size = 0x4, offset = 0x4, fixed_abs, tag = 'smem constant byte address 0x4 - core index']
  #allocation1 [shape = 'u32[144,128]{1,0:T(1,128)}', space=vmem, size = 0x12000, scoped, tag = 'internal scratch']
  %s0 = inlined_call_operand.vmem [shape: bf16[8,8,16], index: 0, kind: input, shape index: {}]
  %s1 = inlined_call_operand.vmem [shape: bf16[16,64], index: 1, kind: input, shape index: {}]
  %s2 = inlined_call_operand.vmem [shape: f32[1,64], index: 2, kind: input, shape index: {}]
  %s3 = inlined_call_operand.vmem [shape: f32[8,64], index: 3, kind: input, shape index: {}]
  %s4 = inlined_call_operand.vmem [shape: bf16[8,8,64], index: 4, kind: output, shape index: {}]
  %s5 = sld [smem:[#allocation0]]
  $region49: #{backbone_forward.2} parent=0
    _
  %s7 = ssub.s32 1, %s5
  %s8 = scalar_select 0, %s7, %s5
  loop: start=0, step=1, limit=4
  $region2: #{backbone_forward.2} parent=0 // loop_pre_header
    _
  $region3: #{backbone_forward.2} parent=0 // loop_header
    %s10 = sphi 0, %s14
    %p11 = scmp.ge.s32.totalorder %s10, 4
    %s20 = sphi 0, %s22
    %s23 = sphi 0, %s20
    %s24 = sphi 0, %s23
    %s40 = sphi 0, %s24
    %s44 = sphi 0, %s44
    %s46 = sphi 0, %s44
    %s47 = sphi 0, %s46
    %s61 = sphi 0, %s47
    %s65 = sphi 0, %s65
    %s67 = sphi 0, %s65
    %s68 = sphi 0, %s67
    %s82 = sphi 0, %s68
    %s86 = sphi 0, %s86
    %s88 = sphi 0, %s86
    %s89 = sphi 0, %s88
    %s103 = sphi 0, %s89
    %s109 = sphi 0, %s111
    %s112 = sphi 0, %s109
    %s113 = sphi 0, %s112
    %s129 = sphi 0, %s113
  $region4: #{backbone_forward.2} parent=0 // loop_header_branch
    %13 = sbr.rel (%p11) target = $region8
  $region5: #{backbone_forward.2} parent=0 // loop_body
    %s15 = ssub.s32 %s10, 1
    %s16 = ssub.s32 %s10, 2
    %s17 = sadd.s32 %s10, 1
    %s18 = ssub.s32 %s10, %s17
    %p19 = scmp.eq.s32.totalorder %s18, 0
    %s21 = sadd.s32 %s20, 1
    %s22 = scalar_select %p19, %s20, %s21
    %p25 = pneg %p19
    %p26 = scmp.eq.s32.totalorder %s10, 1
    %p27 = por %p25, %p26
    %p28 = scmp.ne.s32.totalorder %s20, %s23
    %p29 = scmp.eq.s32.totalorder %s10, 0
    %p30 = por %p28, %p29
    %p31 = scmp.ne.s32.totalorder %s20, %s23
    %p32 = scmp.eq.s32.totalorder %s15, 1
    %p33 = por %p31, %p32
    %p34 = scmp.ne.s32.totalorder %s23, %s24
    %p35 = scmp.eq.s32.totalorder %s15, 0
    %p36 = por %p34, %p35
    %p37 = scmp.ne.s32.totalorder %s23, %s24
    %p38 = scmp.eq.s32.totalorder %s16, 1
    %p39 = por %p37, %p38
    %p41 = scmp.ne.s32.totalorder %s24, %s40
    %p42 = scmp.eq.s32.totalorder %s16, 0
    %p43 = por %p41, %p42
    %s45 = sadd.s32 %s44, 1
    %p48 = scmp.eq.s32.totalorder %s10, 1
    %p49 = scmp.ne.s32.totalorder %s44, %s46
    %p50 = scmp.eq.s32.totalorder %s10, 0
    %p51 = por %p49, %p50
    %p52 = scmp.ne.s32.totalorder %s44, %s46
    %p53 = scmp.eq.s32.totalorder %s15, 1
    %p54 = por %p52, %p53
    %p55 = scmp.ne.s32.totalorder %s46, %s47
    %p56 = scmp.eq.s32.totalorder %s15, 0
    %p57 = por %p55, %p56
    %p58 = scmp.ne.s32.totalorder %s46, %s47
    %p59 = scmp.eq.s32.totalorder %s16, 1
    %p60 = por %p58, %p59
    %p62 = scmp.ne.s32.totalorder %s47, %s61
    %p63 = scmp.eq.s32.totalorder %s16, 0
    %p64 = por %p62, %p63
    %s66 = sadd.s32 %s65, 1
    %p69 = scmp.eq.s32.totalorder %s10, 1
    %p70 = scmp.ne.s32.totalorder %s65, %s67
    %p71 = scmp.eq.s32.totalorder %s10, 0
    %p72 = por %p70, %p71
    %p73 = scmp.ne.s32.totalorder %s65, %s67
    %p74 = scmp.eq.s32.totalorder %s15, 1
    %p75 = por %p73, %p74
    %p76 = scmp.ne.s32.totalorder %s67, %s68
    %p77 = scmp.eq.s32.totalorder %s15, 0
    %p78 = por %p76, %p77
    %p79 = scmp.ne.s32.totalorder %s67, %s68
    %p80 = scmp.eq.s32.totalorder %s16, 1
    %p81 = por %p79, %p80
    %p83 = scmp.ne.s32.totalorder %s68, %s82
    %p84 = scmp.eq.s32.totalorder %s16, 0
    %p85 = por %p83, %p84
    %s87 = sadd.s32 %s86, 1
    %p90 = scmp.eq.s32.totalorder %s10, 1
    %p91 = scmp.ne.s32.totalorder %s86, %s88
    %p92 = scmp.eq.s32.totalorder %s10, 0
    %p93 = por %p91, %p92
    %p94 = scmp.ne.s32.totalorder %s86, %s88
    %p95 = scmp.eq.s32.totalorder %s15, 1
    %p96 = por %p94, %p95
    %p97 = scmp.ne.s32.totalorder %s88, %s89
    %p98 = scmp.eq.s32.totalorder %s15, 0
    %p99 = por %p97, %p98
    %p100 = scmp.ne.s32.totalorder %s88, %s89
    %p101 = scmp.eq.s32.totalorder %s16, 1
    %p102 = por %p100, %p101
    %p104 = scmp.ne.s32.totalorder %s89, %s103
    %p105 = scmp.eq.s32.totalorder %s16, 0
    %p106 = por %p104, %p105
    %s107 = ssub.s32 %s10, %s17
    %p108 = scmp.eq.s32.totalorder %s107, 0
    %s110 = sadd.s32 %s109, 1
    %s111 = scalar_select %p108, %s109, %s110
    %p114 = pneg %p108
    %p115 = scmp.eq.s32.totalorder %s10, 1
    %p116 = por %p114, %p115
    %p117 = scmp.ne.s32.totalorder %s109, %s112
    %p118 = scmp.eq.s32.totalorder %s10, 0
    %p119 = por %p117, %p118
    %p120 = scmp.ne.s32.totalorder %s109, %s112
    %p121 = scmp.eq.s32.totalorder %s15, 1
    %p122 = por %p120, %p121
    %p123 = scmp.ne.s32.totalorder %s112, %s113
    %p124 = scmp.eq.s32.totalorder %s15, 0
    %p125 = por %p123, %p124
    %p126 = scmp.ne.s32.totalorder %s112, %s113
    %p127 = scmp.eq.s32.totalorder %s16, 1
    %p128 = por %p126, %p127
    %p130 = scmp.ne.s32.totalorder %s113, %s129
    %p131 = scmp.eq.s32.totalorder %s16, 0
    %p132 = por %p130, %p131
    %p133 = scmp.le.s32.totalorder 1, %s10
    %p134 = scmp.lt.s32.totalorder %s10, 3
    %p135 = pnand %p133, %p134
    %p136 = pneg %p135
    // Predicated region
    $region9: #{backbone_forward.2} parent=5 // pred_check
      _
    $region10: #{backbone_forward.2} parent=5 // pred_check_branch
      %138 = sbr.rel (%p135) target = $region12
    $region11: #{backbone_forward.2} parent=5 // pred_region
      %s139 = ssub.s32 %s10, 1
      // Predicated region
      $region13: #{backbone_forward.2} parent=11 // pred_check
        %p140 = pneg %p57
      $region14: #{backbone_forward.2} parent=11 // pred_check_branch
        %142 = sbr.rel (%p140) target = $region16
      $region15: #{backbone_forward.2} parent=11 // pred_region
        _
      $region16: #{backbone_forward.2} parent=11 // pred_fallthru
        _
      // Predicated region
      $region17: #{backbone_forward.2} parent=11 // pred_check
        %p143 = pneg %p78
      $region18: #{backbone_forward.2} parent=11 // pred_check_branch
        %145 = sbr.rel (%p143) target = $region20
      $region19: #{backbone_forward.2} parent=11 // pred_region
        _
      $region20: #{backbone_forward.2} parent=11 // pred_fallthru
        _
      // Predicated region
      $region21: #{backbone_forward.2} parent=11 // pred_check
        %p146 = pneg %p99
      $region22: #{backbone_forward.2} parent=11 // pred_check_branch
        %148 = sbr.rel (%p146) target = $region24
      $region23: #{backbone_forward.2} parent=11 // pred_region
        _
      $region24: #{backbone_forward.2} parent=11 // pred_fallthru
        _
    $region12: #{backbone_forward.2} parent=5 // pred_fallthru
      _
    %p149 = scmp.lt.s32.totalorder %s10, 2
    // Predicated region
    $region25: #{backbone_forward.2} parent=5 // pred_check
      %p150 = pneg %p149
    $region26: #{backbone_forward.2} parent=5 // pred_check_branch
      %152 = sbr.rel (%p150) target = $region28
    $region27: #{backbone_forward.2} parent=5 // pred_region
      // Predicated region
      $region29: #{backbone_forward.2} parent=27 // pred_check
        %p153 = pneg %p30
      $region30: #{backbone_forward.2} parent=27 // pred_check_branch
        %155 = sbr.rel (%p153) target = $region32
      $region31: #{backbone_forward.2} parent=27 // pred_region
        %s156 = smul.u32 4, %s10
        %p157 = scmp.lt.s32.totalorder %s156, 7
        %s158 = scalar_select %p157, %s156, 7
        %s159 = smul.addr %s158, 4
        %s160 = scalar_lea.vmem %s0, %s159
        %s161 = smul.u32 4, %s10
      $region32: #{backbone_forward.2} parent=27 // pred_fallthru
        _
    $region28: #{backbone_forward.2} parent=5 // pred_fallthru
      _
    %p162 = scmp.le.s32.totalorder 1, %s10
    %p163 = scmp.lt.s32.totalorder %s10, 3
    %p164 = pnand %p162, %p163
    %p165 = pneg %p164
    // Predicated region
    $region33: #{backbone_forward.2} parent=5 // pred_check
      _
    $region34: #{backbone_forward.2} parent=5 // pred_check_branch
      %167 = sbr.rel (%p164) target = $region36
    $region35: #{backbone_forward.2} parent=5 // pred_region
      %s168 = ssub.s32 %s10, 1
      %s169 = smul.u32 4, %s15
      %p170 = scmp.lt.s32.totalorder %s169, 7
      %s171 = scalar_select %p170, %s169, 7
      %s172 = smul.addr %s171, 4
      %s173 = scalar_lea.vmem %s0, %s172
      %p174 = pneg %p36
      %p175 = pneg %p33
      %p176 = pneg %p57
      %p177 = pneg %p54
      %p178 = pneg %p78
      %p179 = pneg %p75
      %p180 = pneg %p99
      %p181 = pneg %p96
      %p182 = pneg %p125
      %p183 = pneg %p122
      %s184 = smul.u32 4, %s15
      %p185 = scmp.lt.s32.totalorder %s184, 7
      %s186 = scalar_select %p185, %s184, 7
      %s187 = smul.addr %s186, 4
      %s188 = scalar_lea.vmem %s4, %s187
      %s189 = smul.u32 4, %s15
      %p190 = scmp.lt.s32.totalorder %s189, 7
      %s191 = scalar_select %p190, %s189, 7
      %s192 = smul.addr %s191, 4
      %s193 = scalar_lea.vmem %s0, %s192
      %s194 = smul.u32 4, %s15
      %s195 = smul.u32 4, %s15
      %p196 = scmp.lt.s32.totalorder %s195, 7
      %s197 = scalar_select %p196, %s195, 7
      %s198 = smul.addr %s197, 4
      %s199 = scalar_lea.vmem %s4, %s198
      %s200 = smul.u32 4, %s15
      %v202 = vld [vmem:[%s193] sm:$0xf]
      %v203 = vld [vmem:[%s193 + $0x4] sm:$0xf]
      %v204 = vld [vmem:[%s193 + $0x8] sm:$0xf]
      %v205 = vld [vmem:[%s193 + $0xc] sm:$0xf]
      %v206 = vld [vmem:[%s1] sm:$0xf]
      %v207 = vld [vmem:[%s1 + $0x4] sm:$0xf]
      %v208 = vld [vmem:[%s2] sm:$0x1]
      %v210 = vlaneseq
      %v211 = vshrl.u32 %v210, 7
      %v212 = vsub.s32 0, %v211
      %v213 = vrot.slane %v208, %v212
      %v219 = vunpack.c.l.b16 %v202
      %v220 = vunpack.c.l.b16 %v203
      %v221 = vunpack.c.l.b16 %v204
      %v222 = vunpack.c.l.b16 %v205
      %v223 = vpack.c.b16 %v220, %v219
      %v224 = vpack.c.b16 %v222, %v221
      %v227 = vunpack.c.l.b16 %v206
      %v228 = vunpack.c.l.b16 %v207
      %v229 = vpack.c.b16 %v228, %v227
      %vm231 = vcmask 130048
      %v233 = vsel %vm231, %v223, 0
      %v236 = vsel %vm231, %v224, 0
      %238 = vmatprep.subr.bf16.mxu0 0
      %239 = vmatpush1.bf16.msra.mxu0 %v229
      %240 = vmatprep.subr.bf16.mxu0 0
      %241 = vmatpush1.bf16.msra.mxu0 0
      %242 = vmatprep.subr.bf16.mxu0 0
      %243 = vmatpush1.bf16.msra.mxu0 0
      %244 = vmatprep.subr.bf16.mxu0 0
      %245 = vmatpush1.bf16.msra.mxu0 0
      %246 = vmatprep.subr.bf16.mxu0 0
      %247 = vmatpush1.bf16.msra.mxu0 0
      %248 = vmatprep.subr.bf16.mxu0 0
      %249 = vmatpush1.bf16.msra.mxu0 0
      %250 = vmatprep.subr.bf16.mxu0 0
      %251 = vmatpush1.bf16.msra.mxu0 0
      %252 = vmatprep.subr.bf16.mxu0 0
      %253 = vmatpush1.bf16.msra.mxu0 0
      %254 = vmatprep.subr.bf16.mxu0 0
      %255 = vmatpush1.bf16.msra.mxu0 0
      %256 = vmatprep.subr.bf16.mxu0 0
      %257 = vmatpush1.bf16.msra.mxu0 0
      %258 = vmatprep.subr.bf16.mxu0 0
      %259 = vmatpush1.bf16.msra.mxu0 0
      %260 = vmatprep.subr.bf16.mxu0 0
      %261 = vmatpush1.bf16.msra.mxu0 0
      %262 = vmatprep.subr.bf16.mxu0 0
      %263 = vmatpush1.bf16.msra.mxu0 0
      %264 = vmatprep.subr.bf16.mxu0 0
      %265 = vmatpush1.bf16.msra.mxu0 0
      %266 = vmatprep.subr.bf16.mxu0 0
      %267 = vmatpush1.bf16.msra.mxu0 0
      %268 = vmatprep.subr.bf16.mxu0 0
      %269 = vmatpush1.bf16.msra.mxu0 0
      %270 = vmatprep.mubr.bf16.mxu0 0
      %271 = vmatmul.mubr.bf16.gmra.mrb[0].mxu0 %v233
      %v272 = vpop.f32.mrb[0].mxu0
      %v273 = vadd.f32 %v213, %v272
      %v274 = vpop.f32.mrb[0].mxu0
      %v275 = vpop.f32.mrb[0].mxu0
      %v276 = vadd.f32 %v213, %v275
      %v277 = vpop.f32.mrb[0].mxu0
      %278 = vmatprep.mubr.bf16.mxu0 0
      %279 = vmatmul.mubr.bf16.gmra.mrb[0].mxu0 %v236
      %v280 = vpop.f32.mrb[0].mxu0
      %v281 = vadd.f32 %v213, %v280
      %v282 = vpop.f32.mrb[0].mxu0
      %v283 = vpop.f32.mrb[0].mxu0
      %v284 = vadd.f32 %v213, %v283
      %v285 = vpop.f32.mrb[0].mxu0
      %286 = vdwg.mxu0
      %v287 = vld [vmem:[%s3] sm:$0xff]
      %v288 = vadd.f32 %v273, %v287
      %v289 = vadd.f32 %v276, %v287
      %v290 = vadd.f32 %v281, %v287
      %v291 = vadd.f32 %v284, %v287
      %v292 = vpack.c.bf16 %v288, %v288
      %v293 = vpack.c.bf16 %v289, %v289
      %v294 = vpack.c.bf16 %v290, %v290
      %v295 = vpack.c.bf16 %v291, %v291
      %vm296 = vcmask 519168
      %297 = vst.msk [vmem:[%s199] sm:$0xf] %vm296, %v292
      %298 = vst.msk [vmem:[%s199 + $0x4] sm:$0xf] %vm296, %v293
      %299 = vst.msk [vmem:[%s199 + $0x8] sm:$0xf] %vm296, %v294
      %300 = vst.msk [vmem:[%s199 + $0xc] sm:$0xf] %vm296, %v295
      %s301 = smul.u32 4, %s15
      %p302 = scmp.lt.s32.totalorder %s301, 7
      %s303 = scalar_select %p302, %s301, 7
      %s304 = smul.addr %s303, 4
      %s305 = scalar_lea.vmem %s4, %s304
      // Predicated region
      $region37: #{backbone_forward.2} parent=35 // pred_check
        %p306 = pneg %p122
      $region38: #{backbone_forward.2} parent=35 // pred_check_branch
        %308 = sbr.rel (%p306) target = $region40
      $region39: #{backbone_forward.2} parent=35 // pred_region
        %s309 = smul.u32 4, %s15
      $region40: #{backbone_forward.2} parent=35 // pred_fallthru
        _
    $region36: #{backbone_forward.2} parent=5 // pred_fallthru
      _
    %p310 = scmp.le.s32.totalorder 2, %s10
    // Predicated region
    $region41: #{backbone_forward.2} parent=5 // pred_check
      %p311 = pneg %p310
    $region42: #{backbone_forward.2} parent=5 // pred_check_branch
      %313 = sbr.rel (%p311) target = $region44
    $region43: #{backbone_forward.2} parent=5 // pred_region
      %s314 = ssub.s32 %s10, 2
      // Predicated region
      $region45: #{backbone_forward.2} parent=43 // pred_check
        %p315 = pneg %p128
      $region46: #{backbone_forward.2} parent=43 // pred_check_branch
        %317 = sbr.rel (%p315) target = $region48
      $region47: #{backbone_forward.2} parent=43 // pred_region
        %s318 = smul.u32 4, %s16
        %p319 = scmp.lt.s32.totalorder %s318, 7
        %s320 = scalar_select %p319, %s318, 7
        %s321 = smul.addr %s320, 4
        %s322 = scalar_lea.vmem %s4, %s321
      $region48: #{backbone_forward.2} parent=43 // pred_fallthru
        _
    $region44: #{backbone_forward.2} parent=5 // pred_fallthru
      _
  $region6: #{backbone_forward.2} parent=0 // loop_footer
    %s14 = sadd.s32 1, %s10
  $region7: #{backbone_forward.2} parent=0 // loop_footer_branch
    %9 = sbr.rel target = $region3
  $region8: #{backbone_forward.2} parent=0 // loop_exit
    _

// kernel: backbone_forward.3
$region0: #{backbone_forward.3}
  #allocation0 [shape = 'u32[]', space=smem, size = 0x4, offset = 0x4, fixed_abs, tag = 'smem constant byte address 0x4 - core index']
  #allocation1 [shape = 'u32[144,128]{1,0:T(1,128)}', space=vmem, size = 0x12000, scoped, tag = 'internal scratch']
  #allocation2 [shape = 'f32[4,8,64]{2,1,0:T(8,128)}', space=vmem, size = 0x4000, scoped, tag = 'scratch operand']
  %s0 = inlined_call_operand.vmem [shape: bf16[8,8,64], index: 0, kind: input, shape index: {}]
  %s1 = inlined_call_operand.vmem [shape: bf16[2,64,192], index: 1, kind: input, shape index: {}]
  %s2 = inlined_call_operand.vmem [shape: f32[2,1,192], index: 2, kind: input, shape index: {}]
  %s3 = inlined_call_operand.vmem [shape: bf16[2,4,16,64], index: 3, kind: input, shape index: {}]
  %s4 = inlined_call_operand.vmem [shape: f32[2,1,64], index: 4, kind: input, shape index: {}]
  %s5 = inlined_call_operand.vmem [shape: f32[2,1,16], index: 5, kind: input, shape index: {}]
  %s6 = inlined_call_operand.vmem [shape: f32[2,1,16], index: 6, kind: input, shape index: {}]
  %s7 = inlined_call_operand.vmem [shape: f32[2,1,64], index: 7, kind: input, shape index: {}]
  %s8 = inlined_call_operand.vmem [shape: f32[2,1,64], index: 8, kind: input, shape index: {}]
  %s9 = inlined_call_operand.vmem [shape: bf16[2,64,128], index: 9, kind: input, shape index: {}]
  %s10 = inlined_call_operand.vmem [shape: f32[2,1,128], index: 10, kind: input, shape index: {}]
  %s11 = inlined_call_operand.vmem [shape: bf16[2,128,64], index: 11, kind: input, shape index: {}]
  %s12 = inlined_call_operand.vmem [shape: f32[2,1,64], index: 12, kind: input, shape index: {}]
  %s13 = inlined_call_operand.vmem [shape: f32[1,64], index: 13, kind: input, shape index: {}]
  %s14 = inlined_call_operand.vmem [shape: bf16[8,8,64], index: 14, kind: output, shape index: {}]
  %s15 = sld [smem:[#allocation0]]
  $region97: #{backbone_forward.3} parent=0
    _
  %s17 = ssub.s32 1, %s15
  %s18 = scalar_select 0, %s17, %s15
  loop: start=0, step=1, limit=6
  $region2: #{backbone_forward.3} parent=0 // loop_pre_header
    _
  $region3: #{backbone_forward.3} parent=0 // loop_header
    %s20 = sphi 0, %s24
    %p21 = scmp.ge.s32.totalorder %s20, 6
    %s27 = sphi 0, %s39
    %s28 = sphi 0, %s35
    %s29 = sphi 0, %s27
    %s30 = sphi 0, %s28
    %s31 = sphi 0, %s29
    %s32 = sphi 0, %s30
    %s42 = sphi 0, %s44
    %s45 = sphi 0, %s42
    %s46 = sphi 0, %s45
    %s62 = sphi 0, %s46
    %s68 = sphi 0, %s70
    %s71 = sphi 0, %s68
    %s72 = sphi 0, %s71
    %s88 = sphi 0, %s72
    %s94 = sphi 0, %s96
    %s97 = sphi 0, %s94
    %s98 = sphi 0, %s97
    %s114 = sphi 0, %s98
    %s120 = sphi 0, %s122
    %s123 = sphi 0, %s120
    %s124 = sphi 0, %s123
    %s140 = sphi 0, %s124
    %s146 = sphi 0, %s148
    %s149 = sphi 0, %s146
    %s150 = sphi 0, %s149
    %s166 = sphi 0, %s150
    %s172 = sphi 0, %s174
    %s175 = sphi 0, %s172
    %s176 = sphi 0, %s175
    %s192 = sphi 0, %s176
    %s198 = sphi 0, %s200
    %s201 = sphi 0, %s198
    %s202 = sphi 0, %s201
    %s218 = sphi 0, %s202
    %s224 = sphi 0, %s226
    %s227 = sphi 0, %s224
    %s228 = sphi 0, %s227
    %s244 = sphi 0, %s228
    %s250 = sphi 0, %s252
    %s253 = sphi 0, %s250
    %s254 = sphi 0, %s253
    %s270 = sphi 0, %s254
    %s276 = sphi 0, %s278
    %s279 = sphi 0, %s276
    %s280 = sphi 0, %s279
    %s296 = sphi 0, %s280
    %s302 = sphi 0, %s304
    %s305 = sphi 0, %s302
    %s306 = sphi 0, %s305
    %s322 = sphi 0, %s306
    %s328 = sphi 0, %s330
    %s331 = sphi 0, %s328
    %s332 = sphi 0, %s331
    %s348 = sphi 0, %s332
    %s354 = sphi 0, %s356
    %s357 = sphi 0, %s354
    %s358 = sphi 0, %s357
    %s374 = sphi 0, %s358
    %s378 = sphi 0, %s378
    %s380 = sphi 0, %s378
    %s381 = sphi 0, %s380
    %s395 = sphi 0, %s381
    %s401 = sphi 0, %s403
    %s404 = sphi 0, %s401
    %s405 = sphi 0, %s404
    %s421 = sphi 0, %s405
  $region4: #{backbone_forward.3} parent=0 // loop_header_branch
    %23 = sbr.rel (%p21) target = $region8
  $region5: #{backbone_forward.3} parent=0 // loop_body
    %s25 = ssub.s32 %s20, 1
    %s26 = ssub.s32 %s20, 2
    %s33 = sadd.s32 1, %s28
    %p34 = scmp.ge.s32.totalorder %s33, 2
    %s35 = scalar_select %p34, 0, %s33
    %s36 = sadd.s32 1, %s27
    %s37 = scalar_select %p34, %s36, %s27
    %p38 = scmp.ge.s32.totalorder %s37, 2
    %s39 = scalar_select %p38, 0, %s37
    %s40 = ssub.s32 %s27, %s39
    %p41 = scmp.eq.s32.totalorder %s40, 0
    %s43 = sadd.s32 %s42, 1
    %s44 = scalar_select %p41, %s42, %s43
    %p47 = pneg %p41
    %p48 = scmp.eq.s32.totalorder %s20, 3
    %p49 = por %p47, %p48
    %p50 = scmp.ne.s32.totalorder %s42, %s45
    %p51 = scmp.eq.s32.totalorder %s20, 0
    %p52 = por %p50, %p51
    %p53 = scmp.ne.s32.totalorder %s42, %s45
    %p54 = scmp.eq.s32.totalorder %s25, 3
    %p55 = por %p53, %p54
    %p56 = scmp.ne.s32.totalorder %s45, %s46
    %p57 = scmp.eq.s32.totalorder %s25, 0
    %p58 = por %p56, %p57
    %p59 = scmp.ne.s32.totalorder %s45, %s46
    %p60 = scmp.eq.s32.totalorder %s26, 3
    %p61 = por %p59, %p60
    %p63 = scmp.ne.s32.totalorder %s46, %s62
    %p64 = scmp.eq.s32.totalorder %s26, 0
    %p65 = por %p63, %p64
    %s66 = ssub.s32 %s28, %s35
    %p67 = scmp.eq.s32.totalorder %s66, 0
    %s69 = sadd.s32 %s68, 1
    %s70 = scalar_select %p67, %s68, %s69
    %p73 = pneg %p67
    %p74 = scmp.eq.s32.totalorder %s20, 3
    %p75 = por %p73, %p74
    %p76 = scmp.ne.s32.totalorder %s68, %s71
    %p77 = scmp.eq.s32.totalorder %s20, 0
    %p78 = por %p76, %p77
    %p79 = scmp.ne.s32.totalorder %s68, %s71
    %p80 = scmp.eq.s32.totalorder %s25, 3
    %p81 = por %p79, %p80
    %p82 = scmp.ne.s32.totalorder %s71, %s72
    %p83 = scmp.eq.s32.totalorder %s25, 0
    %p84 = por %p82, %p83
    %p85 = scmp.ne.s32.totalorder %s71, %s72
    %p86 = scmp.eq.s32.totalorder %s26, 3
    %p87 = por %p85, %p86
    %p89 = scmp.ne.s32.totalorder %s72, %s88
    %p90 = scmp.eq.s32.totalorder %s26, 0
    %p91 = por %p89, %p90
    %s92 = ssub.s32 %s28, %s35
    %p93 = scmp.eq.s32.totalorder %s92, 0
    %s95 = sadd.s32 %s94, 1
    %s96 = scalar_select %p93, %s94, %s95
    %p99 = pneg %p93
    %p100 = scmp.eq.s32.totalorder %s20, 3
    %p101 = por %p99, %p100
    %p102 = scmp.ne.s32.totalorder %s94, %s97
    %p103 = scmp.eq.s32.totalorder %s20, 0
    %p104 = por %p102, %p103
    %p105 = scmp.ne.s32.totalorder %s94, %s97
    %p106 = scmp.eq.s32.totalorder %s25, 3
    %p107 = por %p105, %p106
    %p108 = scmp.ne.s32.totalorder %s97, %s98
    %p109 = scmp.eq.s32.totalorder %s25, 0
    %p110 = por %p108, %p109
    %p111 = scmp.ne.s32.totalorder %s97, %s98
    %p112 = scmp.eq.s32.totalorder %s26, 3
    %p113 = por %p111, %p112
    %p115 = scmp.ne.s32.totalorder %s98, %s114
    %p116 = scmp.eq.s32.totalorder %s26, 0
    %p117 = por %p115, %p116
    %s118 = ssub.s32 %s28, %s35
    %p119 = scmp.eq.s32.totalorder %s118, 0
    %s121 = sadd.s32 %s120, 1
    %s122 = scalar_select %p119, %s120, %s121
    %p125 = pneg %p119
    %p126 = scmp.eq.s32.totalorder %s20, 3
    %p127 = por %p125, %p126
    %p128 = scmp.ne.s32.totalorder %s120, %s123
    %p129 = scmp.eq.s32.totalorder %s20, 0
    %p130 = por %p128, %p129
    %p131 = scmp.ne.s32.totalorder %s120, %s123
    %p132 = scmp.eq.s32.totalorder %s25, 3
    %p133 = por %p131, %p132
    %p134 = scmp.ne.s32.totalorder %s123, %s124
    %p135 = scmp.eq.s32.totalorder %s25, 0
    %p136 = por %p134, %p135
    %p137 = scmp.ne.s32.totalorder %s123, %s124
    %p138 = scmp.eq.s32.totalorder %s26, 3
    %p139 = por %p137, %p138
    %p141 = scmp.ne.s32.totalorder %s124, %s140
    %p142 = scmp.eq.s32.totalorder %s26, 0
    %p143 = por %p141, %p142
    %s144 = ssub.s32 %s28, %s35
    %p145 = scmp.eq.s32.totalorder %s144, 0
    %s147 = sadd.s32 %s146, 1
    %s148 = scalar_select %p145, %s146, %s147
    %p151 = pneg %p145
    %p152 = scmp.eq.s32.totalorder %s20, 3
    %p153 = por %p151, %p152
    %p154 = scmp.ne.s32.totalorder %s146, %s149
    %p155 = scmp.eq.s32.totalorder %s20, 0
    %p156 = por %p154, %p155
    %p157 = scmp.ne.s32.totalorder %s146, %s149
    %p158 = scmp.eq.s32.totalorder %s25, 3
    %p159 = por %p157, %p158
    %p160 = scmp.ne.s32.totalorder %s149, %s150
    %p161 = scmp.eq.s32.totalorder %s25, 0
    %p162 = por %p160, %p161
    %p163 = scmp.ne.s32.totalorder %s149, %s150
    %p164 = scmp.eq.s32.totalorder %s26, 3
    %p165 = por %p163, %p164
    %p167 = scmp.ne.s32.totalorder %s150, %s166
    %p168 = scmp.eq.s32.totalorder %s26, 0
    %p169 = por %p167, %p168
    %s170 = ssub.s32 %s28, %s35
    %p171 = scmp.eq.s32.totalorder %s170, 0
    %s173 = sadd.s32 %s172, 1
    %s174 = scalar_select %p171, %s172, %s173
    %p177 = pneg %p171
    %p178 = scmp.eq.s32.totalorder %s20, 3
    %p179 = por %p177, %p178
    %p180 = scmp.ne.s32.totalorder %s172, %s175
    %p181 = scmp.eq.s32.totalorder %s20, 0
    %p182 = por %p180, %p181
    %p183 = scmp.ne.s32.totalorder %s172, %s175
    %p184 = scmp.eq.s32.totalorder %s25, 3
    %p185 = por %p183, %p184
    %p186 = scmp.ne.s32.totalorder %s175, %s176
    %p187 = scmp.eq.s32.totalorder %s25, 0
    %p188 = por %p186, %p187
    %p189 = scmp.ne.s32.totalorder %s175, %s176
    %p190 = scmp.eq.s32.totalorder %s26, 3
    %p191 = por %p189, %p190
    %p193 = scmp.ne.s32.totalorder %s176, %s192
    %p194 = scmp.eq.s32.totalorder %s26, 0
    %p195 = por %p193, %p194
    %s196 = ssub.s32 %s28, %s35
    %p197 = scmp.eq.s32.totalorder %s196, 0
    %s199 = sadd.s32 %s198, 1
    %s200 = scalar_select %p197, %s198, %s199
    %p203 = pneg %p197
    %p204 = scmp.eq.s32.totalorder %s20, 3
    %p205 = por %p203, %p204
    %p206 = scmp.ne.s32.totalorder %s198, %s201
    %p207 = scmp.eq.s32.totalorder %s20, 0
    %p208 = por %p206, %p207
    %p209 = scmp.ne.s32.totalorder %s198, %s201
    %p210 = scmp.eq.s32.totalorder %s25, 3
    %p211 = por %p209, %p210
    %p212 = scmp.ne.s32.totalorder %s201, %s202
    %p213 = scmp.eq.s32.totalorder %s25, 0
    %p214 = por %p212, %p213
    %p215 = scmp.ne.s32.totalorder %s201, %s202
    %p216 = scmp.eq.s32.totalorder %s26, 3
    %p217 = por %p215, %p216
    %p219 = scmp.ne.s32.totalorder %s202, %s218
    %p220 = scmp.eq.s32.totalorder %s26, 0
    %p221 = por %p219, %p220
    %s222 = ssub.s32 %s28, %s35
    %p223 = scmp.eq.s32.totalorder %s222, 0
    %s225 = sadd.s32 %s224, 1
    %s226 = scalar_select %p223, %s224, %s225
    %p229 = pneg %p223
    %p230 = scmp.eq.s32.totalorder %s20, 3
    %p231 = por %p229, %p230
    %p232 = scmp.ne.s32.totalorder %s224, %s227
    %p233 = scmp.eq.s32.totalorder %s20, 0
    %p234 = por %p232, %p233
    %p235 = scmp.ne.s32.totalorder %s224, %s227
    %p236 = scmp.eq.s32.totalorder %s25, 3
    %p237 = por %p235, %p236
    %p238 = scmp.ne.s32.totalorder %s227, %s228
    %p239 = scmp.eq.s32.totalorder %s25, 0
    %p240 = por %p238, %p239
    %p241 = scmp.ne.s32.totalorder %s227, %s228
    %p242 = scmp.eq.s32.totalorder %s26, 3
    %p243 = por %p241, %p242
    %p245 = scmp.ne.s32.totalorder %s228, %s244
    %p246 = scmp.eq.s32.totalorder %s26, 0
    %p247 = por %p245, %p246
    %s248 = ssub.s32 %s28, %s35
    %p249 = scmp.eq.s32.totalorder %s248, 0
    %s251 = sadd.s32 %s250, 1
    %s252 = scalar_select %p249, %s250, %s251
    %p255 = pneg %p249
    %p256 = scmp.eq.s32.totalorder %s20, 3
    %p257 = por %p255, %p256
    %p258 = scmp.ne.s32.totalorder %s250, %s253
    %p259 = scmp.eq.s32.totalorder %s20, 0
    %p260 = por %p258, %p259
    %p261 = scmp.ne.s32.totalorder %s250, %s253
    %p262 = scmp.eq.s32.totalorder %s25, 3
    %p263 = por %p261, %p262
    %p264 = scmp.ne.s32.totalorder %s253, %s254
    %p265 = scmp.eq.s32.totalorder %s25, 0
    %p266 = por %p264, %p265
    %p267 = scmp.ne.s32.totalorder %s253, %s254
    %p268 = scmp.eq.s32.totalorder %s26, 3
    %p269 = por %p267, %p268
    %p271 = scmp.ne.s32.totalorder %s254, %s270
    %p272 = scmp.eq.s32.totalorder %s26, 0
    %p273 = por %p271, %p272
    %s274 = ssub.s32 %s28, %s35
    %p275 = scmp.eq.s32.totalorder %s274, 0
    %s277 = sadd.s32 %s276, 1
    %s278 = scalar_select %p275, %s276, %s277
    %p281 = pneg %p275
    %p282 = scmp.eq.s32.totalorder %s20, 3
    %p283 = por %p281, %p282
    %p284 = scmp.ne.s32.totalorder %s276, %s279
    %p285 = scmp.eq.s32.totalorder %s20, 0
    %p286 = por %p284, %p285
    %p287 = scmp.ne.s32.totalorder %s276, %s279
    %p288 = scmp.eq.s32.totalorder %s25, 3
    %p289 = por %p287, %p288
    %p290 = scmp.ne.s32.totalorder %s279, %s280
    %p291 = scmp.eq.s32.totalorder %s25, 0
    %p292 = por %p290, %p291
    %p293 = scmp.ne.s32.totalorder %s279, %s280
    %p294 = scmp.eq.s32.totalorder %s26, 3
    %p295 = por %p293, %p294
    %p297 = scmp.ne.s32.totalorder %s280, %s296
    %p298 = scmp.eq.s32.totalorder %s26, 0
    %p299 = por %p297, %p298
    %s300 = ssub.s32 %s28, %s35
    %p301 = scmp.eq.s32.totalorder %s300, 0
    %s303 = sadd.s32 %s302, 1
    %s304 = scalar_select %p301, %s302, %s303
    %p307 = pneg %p301
    %p308 = scmp.eq.s32.totalorder %s20, 3
    %p309 = por %p307, %p308
    %p310 = scmp.ne.s32.totalorder %s302, %s305
    %p311 = scmp.eq.s32.totalorder %s20, 0
    %p312 = por %p310, %p311
    %p313 = scmp.ne.s32.totalorder %s302, %s305
    %p314 = scmp.eq.s32.totalorder %s25, 3
    %p315 = por %p313, %p314
    %p316 = scmp.ne.s32.totalorder %s305, %s306
    %p317 = scmp.eq.s32.totalorder %s25, 0
    %p318 = por %p316, %p317
    %p319 = scmp.ne.s32.totalorder %s305, %s306
    %p320 = scmp.eq.s32.totalorder %s26, 3
    %p321 = por %p319, %p320
    %p323 = scmp.ne.s32.totalorder %s306, %s322
    %p324 = scmp.eq.s32.totalorder %s26, 0
    %p325 = por %p323, %p324
    %s326 = ssub.s32 %s28, %s35
    %p327 = scmp.eq.s32.totalorder %s326, 0
    %s329 = sadd.s32 %s328, 1
    %s330 = scalar_select %p327, %s328, %s329
    %p333 = pneg %p327
    %p334 = scmp.eq.s32.totalorder %s20, 3
    %p335 = por %p333, %p334
    %p336 = scmp.ne.s32.totalorder %s328, %s331
    %p337 = scmp.eq.s32.totalorder %s20, 0
    %p338 = por %p336, %p337
    %p339 = scmp.ne.s32.totalorder %s328, %s331
    %p340 = scmp.eq.s32.totalorder %s25, 3
    %p341 = por %p339, %p340
    %p342 = scmp.ne.s32.totalorder %s331, %s332
    %p343 = scmp.eq.s32.totalorder %s25, 0
    %p344 = por %p342, %p343
    %p345 = scmp.ne.s32.totalorder %s331, %s332
    %p346 = scmp.eq.s32.totalorder %s26, 3
    %p347 = por %p345, %p346
    %p349 = scmp.ne.s32.totalorder %s332, %s348
    %p350 = scmp.eq.s32.totalorder %s26, 0
    %p351 = por %p349, %p350
    %s352 = ssub.s32 %s28, %s35
    %p353 = scmp.eq.s32.totalorder %s352, 0
    %s355 = sadd.s32 %s354, 1
    %s356 = scalar_select %p353, %s354, %s355
    %p359 = pneg %p353
    %p360 = scmp.eq.s32.totalorder %s20, 3
    %p361 = por %p359, %p360
    %p362 = scmp.ne.s32.totalorder %s354, %s357
    %p363 = scmp.eq.s32.totalorder %s20, 0
    %p364 = por %p362, %p363
    %p365 = scmp.ne.s32.totalorder %s354, %s357
    %p366 = scmp.eq.s32.totalorder %s25, 3
    %p367 = por %p365, %p366
    %p368 = scmp.ne.s32.totalorder %s357, %s358
    %p369 = scmp.eq.s32.totalorder %s25, 0
    %p370 = por %p368, %p369
    %p371 = scmp.ne.s32.totalorder %s357, %s358
    %p372 = scmp.eq.s32.totalorder %s26, 3
    %p373 = por %p371, %p372
    %p375 = scmp.ne.s32.totalorder %s358, %s374
    %p376 = scmp.eq.s32.totalorder %s26, 0
    %p377 = por %p375, %p376
    %s379 = sadd.s32 %s378, 1
    %p382 = scmp.eq.s32.totalorder %s20, 3
    %p383 = scmp.ne.s32.totalorder %s378, %s380
    %p384 = scmp.eq.s32.totalorder %s20, 0
    %p385 = por %p383, %p384
    %p386 = scmp.ne.s32.totalorder %s378, %s380
    %p387 = scmp.eq.s32.totalorder %s25, 3
    %p388 = por %p386, %p387
    %p389 = scmp.ne.s32.totalorder %s380, %s381
    %p390 = scmp.eq.s32.totalorder %s25, 0
    %p391 = por %p389, %p390
    %p392 = scmp.ne.s32.totalorder %s380, %s381
    %p393 = scmp.eq.s32.totalorder %s26, 3
    %p394 = por %p392, %p393
    %p396 = scmp.ne.s32.totalorder %s381, %s395
    %p397 = scmp.eq.s32.totalorder %s26, 0
    %p398 = por %p396, %p397
    %s399 = ssub.s32 %s27, %s39
    %p400 = scmp.eq.s32.totalorder %s399, 0
    %s402 = sadd.s32 %s401, 1
    %s403 = scalar_select %p400, %s401, %s402
    %p406 = pneg %p400
    %p407 = scmp.eq.s32.totalorder %s20, 3
    %p408 = por %p406, %p407
    %p409 = scmp.ne.s32.totalorder %s401, %s404
    %p410 = scmp.eq.s32.totalorder %s20, 0
    %p411 = por %p409, %p410
    %p412 = scmp.ne.s32.totalorder %s401, %s404
    %p413 = scmp.eq.s32.totalorder %s25, 3
    %p414 = por %p412, %p413
    %p415 = scmp.ne.s32.totalorder %s404, %s405
    %p416 = scmp.eq.s32.totalorder %s25, 0
    %p417 = por %p415, %p416
    %p418 = scmp.ne.s32.totalorder %s404, %s405
    %p419 = scmp.eq.s32.totalorder %s26, 3
    %p420 = por %p418, %p419
    %p422 = scmp.ne.s32.totalorder %s405, %s421
    %p423 = scmp.eq.s32.totalorder %s26, 0
    %p424 = por %p422, %p423
    %p425 = scmp.le.s32.totalorder 1, %s20
    %p426 = scmp.lt.s32.totalorder %s20, 5
    %p427 = pnand %p425, %p426
    %p428 = pneg %p427
    // Predicated region
    $region9: #{backbone_forward.3} parent=5 // pred_check
      _
    $region10: #{backbone_forward.3} parent=5 // pred_check_branch
      %430 = sbr.rel (%p427) target = $region12
    $region11: #{backbone_forward.3} parent=5 // pred_region
      %s431 = ssub.s32 %s20, 1
      // Predicated region
      $region13: #{backbone_forward.3} parent=11 // pred_check
        %p432 = pneg %p391
      $region14: #{backbone_forward.3} parent=11 // pred_check_branch
        %434 = sbr.rel (%p432) target = $region16
      $region15: #{backbone_forward.3} parent=11 // pred_region
        _
      $region16: #{backbone_forward.3} parent=11 // pred_fallthru
        _
    $region12: #{backbone_forward.3} parent=5 // pred_fallthru
      _
    %p435 = scmp.lt.s32.totalorder %s20, 4
    // Predicated region
    $region17: #{backbone_forward.3} parent=5 // pred_check
      %p436 = pneg %p435
    $region18: #{backbone_forward.3} parent=5 // pred_check_branch
      %438 = sbr.rel (%p436) target = $region20
    $region19: #{backbone_forward.3} parent=5 // pred_region
      // Predicated region
      $region21: #{backbone_forward.3} parent=19 // pred_check
        %p439 = pneg %p52
      $region22: #{backbone_forward.3} parent=19 // pred_check_branch
        %441 = sbr.rel (%p439) target = $region24
      $region23: #{backbone_forward.3} parent=19 // pred_region
        %s442 = smul.u32 4, %s27
        %p443 = scmp.lt.s32.totalorder %s442, 7
        %s444 = scalar_select %p443, %s442, 7
        %s445 = smul.addr %s444, 4
        %s446 = scalar_lea.vmem %s0, %s445
        %s447 = smul.u32 4, %s27
      $region24: #{backbone_forward.3} parent=19 // pred_fallthru
        _
      // Predicated region
      $region25: #{backbone_forward.3} parent=19 // pred_check
        %p448 = pneg %p78
      $region26: #{backbone_forward.3} parent=19 // pred_check_branch
        %450 = sbr.rel (%p448) target = $region28
      $region27: #{backbone_forward.3} parent=19 // pred_region
        %p451 = scmp.lt.s32.totalorder %s28, 1
        %s452 = scalar_select %p451, %s28, 1
        %s453 = smul.addr %s452, 16
        %s454 = smul.addr %s453, 4
        %s455 = scalar_lea.vmem %s1, %s454
      $region28: #{backbone_forward.3} parent=19 // pred_fallthru
        _
      // Predicated region
      $region29: #{backbone_forward.3} parent=19 // pred_check
        %p456 = pneg %p104
      $region30: #{backbone_forward.3} parent=19 // pred_check_branch
        %458 = sbr.rel (%p456) target = $region32
      $region31: #{backbone_forward.3} parent=19 // pred_region
        %p459 = scmp.lt.s32.totalorder %s28, 1
        %s460 = scalar_select %p459, %s28, 1
        %s461 = smul.addr %s460, 2
        %s462 = scalar_lea.vmem %s2, %s461
      $region32: #{backbone_forward.3} parent=19 // pred_fallthru
        _
      // Predicated region
      $region33: #{backbone_forward.3} parent=19 // pred_check
        %p463 = pneg %p130
      $region34: #{backbone_forward.3} parent=19 // pred_check_branch
        %465 = sbr.rel (%p463) target = $region36
      $region35: #{backbone_forward.3} parent=19 // pred_region
        %p466 = scmp.lt.s32.totalorder %s28, 1
        %s467 = scalar_select %p466, %s28, 1
        %s468 = smul.addr %s467, 8
        %s469 = smul.addr %s468, 4
        %s470 = scalar_lea.vmem %s3, %s469
      $region36: #{backbone_forward.3} parent=19 // pred_fallthru
        _
      // Predicated region
      $region37: #{backbone_forward.3} parent=19 // pred_check
        %p471 = pneg %p156
      $region38: #{backbone_forward.3} parent=19 // pred_check_branch
        %473 = sbr.rel (%p471) target = $region40
      $region39: #{backbone_forward.3} parent=19 // pred_region
        %p474 = scmp.lt.s32.totalorder %s28, 1
        %s475 = scalar_select %p474, %s28, 1
        %s476 = scalar_lea.vmem %s4, %s475
      $region40: #{backbone_forward.3} parent=19 // pred_fallthru
        _
      // Predicated region
      $region41: #{backbone_forward.3} parent=19 // pred_check
        %p477 = pneg %p182
      $region42: #{backbone_forward.3} parent=19 // pred_check_branch
        %479 = sbr.rel (%p477) target = $region44
      $region43: #{backbone_forward.3} parent=19 // pred_region
        %p480 = scmp.lt.s32.totalorder %s28, 1
        %s481 = scalar_select %p480, %s28, 1
        %s482 = scalar_lea.vmem %s5, %s481
      $region44: #{backbone_forward.3} parent=19 // pred_fallthru
        _
      // Predicated region
      $region45: #{backbone_forward.3} parent=19 // pred_check
        %p483 = pneg %p208
      $region46: #{backbone_forward.3} parent=19 // pred_check_branch
        %485 = sbr.rel (%p483) target = $region48
      $region47: #{backbone_forward.3} parent=19 // pred_region
        %p486 = scmp.lt.s32.totalorder %s28, 1
        %s487 = scalar_select %p486, %s28, 1
        %s488 = scalar_lea.vmem %s6, %s487
      $region48: #{backbone_forward.3} parent=19 // pred_fallthru
        _
      // Predicated region
      $region49: #{backbone_forward.3} parent=19 // pred_check
        %p489 = pneg %p234
      $region50: #{backbone_forward.3} parent=19 // pred_check_branch
        %491 = sbr.rel (%p489) target = $region52
      $region51: #{backbone_forward.3} parent=19 // pred_region
        %p492 = scmp.lt.s32.totalorder %s28, 1
        %s493 = scalar_select %p492, %s28, 1
        %s494 = scalar_lea.vmem %s7, %s493
      $region52: #{backbone_forward.3} parent=19 // pred_fallthru
        _
      // Predicated region
      $region53: #{backbone_forward.3} parent=19 // pred_check
        %p495 = pneg %p260
      $region54: #{backbone_forward.3} parent=19 // pred_check_branch
        %497 = sbr.rel (%p495) target = $region56
      $region55: #{backbone_forward.3} parent=19 // pred_region
        %p498 = scmp.lt.s32.totalorder %s28, 1
        %s499 = scalar_select %p498, %s28, 1
        %s500 = scalar_lea.vmem %s8, %s499
      $region56: #{backbone_forward.3} parent=19 // pred_fallthru
        _
      // Predicated region
      $region57: #{backbone_forward.3} parent=19 // pred_check
        %p501 = pneg %p286
      $region58: #{backbone_forward.3} parent=19 // pred_check_branch
        %503 = sbr.rel (%p501) target = $region60
      $region59: #{backbone_forward.3} parent=19 // pred_region
        %p504 = scmp.lt.s32.totalorder %s28, 1
        %s505 = scalar_select %p504, %s28, 1
        %s506 = smul.addr %s505, 8
        %s507 = smul.addr %s506, 4
        %s508 = scalar_lea.vmem %s9, %s507
      $region60: #{backbone_forward.3} parent=19 // pred_fallthru
        _
      // Predicated region
      $region61: #{backbone_forward.3} parent=19 // pred_check
        %p509 = pneg %p312
      $region62: #{backbone_forward.3} parent=19 // pred_check_branch
        %511 = sbr.rel (%p509) target = $region64
      $region63: #{backbone_forward.3} parent=19 // pred_region
        %p512 = scmp.lt.s32.totalorder %s28, 1
        %s513 = scalar_select %p512, %s28, 1
        %s514 = scalar_lea.vmem %s10, %s513
      $region64: #{backbone_forward.3} parent=19 // pred_fallthru
        _
      // Predicated region
      $region65: #{backbone_forward.3} parent=19 // pred_check
        %p515 = pneg %p338
      $region66: #{backbone_forward.3} parent=19 // pred_check_branch
        %517 = sbr.rel (%p515) target = $region68
      $region67: #{backbone_forward.3} parent=19 // pred_region
        %p518 = scmp.lt.s32.totalorder %s28, 1
        %s519 = scalar_select %p518, %s28, 1
        %s520 = smul.addr %s519, 16
        %s521 = smul.addr %s520, 4
        %s522 = scalar_lea.vmem %s11, %s521
      $region68: #{backbone_forward.3} parent=19 // pred_fallthru
        _
      // Predicated region
      $region69: #{backbone_forward.3} parent=19 // pred_check
        %p523 = pneg %p364
      $region70: #{backbone_forward.3} parent=19 // pred_check_branch
        %525 = sbr.rel (%p523) target = $region72
      $region71: #{backbone_forward.3} parent=19 // pred_region
        %p526 = scmp.lt.s32.totalorder %s28, 1
        %s527 = scalar_select %p526, %s28, 1
        %s528 = scalar_lea.vmem %s12, %s527
      $region72: #{backbone_forward.3} parent=19 // pred_fallthru
        _
    $region20: #{backbone_forward.3} parent=5 // pred_fallthru
      _
    %p529 = scmp.le.s32.totalorder 1, %s20
    %p530 = scmp.lt.s32.totalorder %s20, 5
    %p531 = pnand %p529, %p530
    %p532 = pneg %p531
    // Predicated region
    $region73: #{backbone_forward.3} parent=5 // pred_check
      _
    $region74: #{backbone_forward.3} parent=5 // pred_check_branch
      %534 = sbr.rel (%p531) target = $region76
    $region75: #{backbone_forward.3} parent=5 // pred_region
      %s535 = ssub.s32 %s20, 1
      %s536 = smul.u32 4, %s29
      %p537 = scmp.lt.s32.totalorder %s536, 7
      %s538 = scalar_select %p537, %s536, 7
      %s539 = smul.addr %s538, 4
      %s540 = scalar_lea.vmem %s0, %s539
      %p541 = pneg %p58
      %p542 = pneg %p55
      %p543 = scmp.lt.s32.totalorder %s30, 1
      %s544 = scalar_select %p543, %s30, 1
      %s545 = smul.addr %s544, 16
      %s546 = smul.addr %s545, 4
      %s547 = scalar_lea.vmem %s1, %s546
      %p548 = pneg %p84
      %p549 = pneg %p81
      %p550 = scmp.lt.s32.totalorder %s30, 1
      %s551 = scalar_select %p550, %s30, 1
      %s552 = smul.addr %s551, 2
      %s553 = scalar_lea.vmem %s2, %s552
      %p554 = pneg %p110
      %p555 = pneg %p107
      %p556 = scmp.lt.s32.totalorder %s30, 1
      %s557 = scalar_select %p556, %s30, 1
      %s558 = smul.addr %s557, 8
      %s559 = smul.addr %s558, 4
      %s560 = scalar_lea.vmem %s3, %s559
      %p561 = pneg %p136
      %p562 = pneg %p133
      %p563 = scmp.lt.s32.totalorder %s30, 1
      %s564 = scalar_select %p563, %s30, 1
      %s565 = scalar_lea.vmem %s4, %s564
      %p566 = pneg %p162
      %p567 = pneg %p159
      %p568 = scmp.lt.s32.totalorder %s30, 1
      %s569 = scalar_select %p568, %s30, 1
      %s570 = scalar_lea.vmem %s5, %s569
      %p571 = pneg %p188
      %p572 = pneg %p185
      %p573 = scmp.lt.s32.totalorder %s30, 1
      %s574 = scalar_select %p573, %s30, 1
      %s575 = scalar_lea.vmem %s6, %s574
      %p576 = pneg %p214
      %p577 = pneg %p211
      %p578 = scmp.lt.s32.totalorder %s30, 1
      %s579 = scalar_select %p578, %s30, 1
      %s580 = scalar_lea.vmem %s7, %s579
      %p581 = pneg %p240
      %p582 = pneg %p237
      %p583 = scmp.lt.s32.totalorder %s30, 1
      %s584 = scalar_select %p583, %s30, 1
      %s585 = scalar_lea.vmem %s8, %s584
      %p586 = pneg %p266
      %p587 = pneg %p263
      %p588 = scmp.lt.s32.totalorder %s30, 1
      %s589 = scalar_select %p588, %s30, 1
      %s590 = smul.addr %s589, 8
      %s591 = smul.addr %s590, 4
      %s592 = scalar_lea.vmem %s9, %s591
      %p593 = pneg %p292
      %p594 = pneg %p289
      %p595 = scmp.lt.s32.totalorder %s30, 1
      %s596 = scalar_select %p595, %s30, 1
      %s597 = scalar_lea.vmem %s10, %s596
      %p598 = pneg %p318
      %p599 = pneg %p315
      %p600 = scmp.lt.s32.totalorder %s30, 1
      %s601 = scalar_select %p600, %s30, 1
      %s602 = smul.addr %s601, 16
      %s603 = smul.addr %s602, 4
      %s604 = scalar_lea.vmem %s11, %s603
      %p605 = pneg %p344
      %p606 = pneg %p341
      %p607 = scmp.lt.s32.totalorder %s30, 1
      %s608 = scalar_select %p607, %s30, 1
      %s609 = scalar_lea.vmem %s12, %s608
      %p610 = pneg %p370
      %p611 = pneg %p367
      %p612 = pneg %p391
      %p613 = pneg %p388
      %p614 = pneg %p417
      %p615 = pneg %p414
      %s616 = smul.u32 4, %s29
      %p617 = scmp.lt.s32.totalorder %s616, 7
      %s618 = scalar_select %p617, %s616, 7
      %s619 = smul.addr %s618, 4
      %s620 = scalar_lea.vmem %s14, %s619
      %s621 = smul.u32 4, %s29
      %p622 = scmp.lt.s32.totalorder %s621, 7
      %s623 = scalar_select %p622, %s621, 7
      %s624 = smul.addr %s623, 4
      %s625 = scalar_lea.vmem %s0, %s624
      %s626 = smul.u32 4, %s29
      %p627 = scmp.lt.s32.totalorder %s30, 1
      %s628 = scalar_select %p627, %s30, 1
      %s629 = smul.addr %s628, 16
      %s630 = smul.addr %s629, 4
      %s631 = scalar_lea.vmem %s1, %s630
      %p632 = scmp.lt.s32.totalorder %s30, 1
      %s633 = scalar_select %p632, %s30, 1
      %s634 = smul.addr %s633, 2
      %s635 = scalar_lea.vmem %s2, %s634
      %p636 = scmp.lt.s32.totalorder %s30, 1
      %s637 = scalar_select %p636, %s30, 1
      %s638 = smul.addr %s637, 8
      %s639 = smul.addr %s638, 4
      %s640 = scalar_lea.vmem %s3, %s639
      %p641 = scmp.lt.s32.totalorder %s30, 1
      %s642 = scalar_select %p641, %s30, 1
      %s643 = scalar_lea.vmem %s4, %s642
      %p644 = scmp.lt.s32.totalorder %s30, 1
      %s645 = scalar_select %p644, %s30, 1
      %s646 = scalar_lea.vmem %s5, %s645
      %p647 = scmp.lt.s32.totalorder %s30, 1
      %s648 = scalar_select %p647, %s30, 1
      %s649 = scalar_lea.vmem %s6, %s648
      %p650 = scmp.lt.s32.totalorder %s30, 1
      %s651 = scalar_select %p650, %s30, 1
      %s652 = scalar_lea.vmem %s7, %s651
      %p653 = scmp.lt.s32.totalorder %s30, 1
      %s654 = scalar_select %p653, %s30, 1
      %s655 = scalar_lea.vmem %s8, %s654
      %p656 = scmp.lt.s32.totalorder %s30, 1
      %s657 = scalar_select %p656, %s30, 1
      %s658 = smul.addr %s657, 8
      %s659 = smul.addr %s658, 4
      %s660 = scalar_lea.vmem %s9, %s659
      %p661 = scmp.lt.s32.totalorder %s30, 1
      %s662 = scalar_select %p661, %s30, 1
      %s663 = scalar_lea.vmem %s10, %s662
      %p664 = scmp.lt.s32.totalorder %s30, 1
      %s665 = scalar_select %p664, %s30, 1
      %s666 = smul.addr %s665, 16
      %s667 = smul.addr %s666, 4
      %s668 = scalar_lea.vmem %s11, %s667
      %p669 = scmp.lt.s32.totalorder %s30, 1
      %s670 = scalar_select %p669, %s30, 1
      %s671 = scalar_lea.vmem %s12, %s670
      %s672 = smul.u32 4, %s29
      %p673 = scmp.lt.s32.totalorder %s672, 7
      %s674 = scalar_select %p673, %s672, 7
      %s675 = smul.addr %s674, 4
      %s676 = scalar_lea.vmem %s14, %s675
      %s677 = smul.u32 4, %s29
      %p679 = scmp.eq.s32.totalorder %s30, 0
      // Predicated region
      $region77: #{backbone_forward.3} parent=75 // pred_check
        %p680 = pneg %p679
      $region78: #{backbone_forward.3} parent=75 // pred_check_branch
        %682 = sbr.rel (%p680) target = $region80
      $region79: #{backbone_forward.3} parent=75 // pred_region
        %v683 = vld [vmem:[%s625] sm:$0xf]
        %v684 = vld [vmem:[%s625 + $0x4] sm:$0xf]
        %v685 = vld [vmem:[%s625 + $0x8] sm:$0xf]
        %v686 = vld [vmem:[%s625 + $0xc] sm:$0xf]
        %v687 = vunpack.c.l.bf16 %v683
        %v688 = vunpack.c.l.bf16 %v684
        %v689 = vunpack.c.l.bf16 %v685
        %v690 = vunpack.c.l.bf16 %v686
        %vm691 = vcmask 523264
        %692 = vst.msk [vmem:[#allocation2] sm:$0xff] %vm691, %v687
        %693 = vst.msk [vmem:[#allocation2 + $0x8] sm:$0xff] %vm691, %v688
        %694 = vst.msk [vmem:[#allocation2 + $0x10] sm:$0xff] %vm691, %v689
        %695 = vst.msk [vmem:[#allocation2 + $0x18] sm:$0xff] %vm691, %v690
      $region80: #{backbone_forward.3} parent=75 // pred_fallthru
        _
      %v696 = vld [vmem:[#allocation2] sm:$0xff]
      %v697 = vld [vmem:[#allocation2 + $0x8] sm:$0xff]
      %v698 = vld [vmem:[#allocation2 + $0x10] sm:$0xff]
      %v699 = vld [vmem:[#allocation2 + $0x18] sm:$0xff]
      %v700 = vld [vmem:[%s631] sm:$0xff]
      %v701 = vld [vmem:[%s631 + $0x8] sm:$0xff]
      %v702 = vld [vmem:[%s631 + $0x10] sm:$0xff]
      %v703 = vld [vmem:[%s631 + $0x18] sm:$0xff]
      %v704 = vld [vmem:[%s631 + $0x20] sm:$0xff]
      %v705 = vld [vmem:[%s631 + $0x28] sm:$0xff]
      %v706 = vld [vmem:[%s631 + $0x30] sm:$0xff]
      %v707 = vld [vmem:[%s631 + $0x38] sm:$0xff]
      %v708 = vld [vmem:[%s635] sm:$0x3]
      %v709 = vld [vmem:[%s640] sm:$0xf]
      %v710 = vld [vmem:[%s640 + $0x4] sm:$0xf]
      %v711 = vld [vmem:[%s640 + $0x8] sm:$0xf]
      %v712 = vld [vmem:[%s640 + $0xc] sm:$0xf]
      %v713 = vld [vmem:[%s640 + $0x10] sm:$0xf]
      %v714 = vld [vmem:[%s640 + $0x14] sm:$0xf]
      %v715 = vld [vmem:[%s640 + $0x18] sm:$0xf]
      %v716 = vld [vmem:[%s640 + $0x1c] sm:$0xf]
      %v717 = vld [vmem:[%s643] sm:$0x1]
      %v718 = vld [vmem:[%s646] sm:$0x1]
      %v719 = vld [vmem:[%s649] sm:$0x1]
      %v720 = vld [vmem:[%s652] sm:$0x1]
      %v721 = vld [vmem:[%s655] sm:$0x1]
      %v722 = vld [vmem:[%s660] sm:$0xf]
      %v723 = vld [vmem:[%s660 + $0x4] sm:$0xf]
      %v724 = vld [vmem:[%s660 + $0x8] sm:$0xf]
      %v725 = vld [vmem:[%s660 + $0xc] sm:$0xf]
      %v726 = vld [vmem:[%s660 + $0x10] sm:$0xf]
      %v727 = vld [vmem:[%s660 + $0x14] sm:$0xf]
      %v728 = vld [vmem:[%s660 + $0x18] sm:$0xf]
      %v729 = vld [vmem:[%s660 + $0x1c] sm:$0xf]
      %v730 = vld [vmem:[%s663] sm:$0x1]
      %v731 = vld [vmem:[%s668] sm:$0xf]
      %v732 = vld [vmem:[%s668 + $0x4] sm:$0xf]
      %v733 = vld [vmem:[%s668 + $0x8] sm:$0xf]
      %v734 = vld [vmem:[%s668 + $0xc] sm:$0xf]
      %v735 = vld [vmem:[%s668 + $0x10] sm:$0xf]
      %v736 = vld [vmem:[%s668 + $0x14] sm:$0xf]
      %v737 = vld [vmem:[%s668 + $0x18] sm:$0xf]
      %v738 = vld [vmem:[%s668 + $0x1c] sm:$0xf]
      %v739 = vld [vmem:[%s668 + $0x20] sm:$0xf]
      %v740 = vld [vmem:[%s668 + $0x24] sm:$0xf]
      %v741 = vld [vmem:[%s668 + $0x28] sm:$0xf]
      %v742 = vld [vmem:[%s668 + $0x2c] sm:$0xf]
      %v743 = vld [vmem:[%s668 + $0x30] sm:$0xf]
      %v744 = vld [vmem:[%s668 + $0x34] sm:$0xf]
      %v745 = vld [vmem:[%s668 + $0x38] sm:$0xf]
      %v746 = vld [vmem:[%s668 + $0x3c] sm:$0xf]
      %v747 = vld [vmem:[%s671] sm:$0x1]
      %v748 = vmul.f32 %v696, %v696
      %v749 = vmul.f32 %v697, %v697
      %v750 = vmul.f32 %v698, %v698
      %v751 = vmul.f32 %v699, %v699
      %vm752 = vcmask 523264
      %v753 = vsel %vm752, %v748, 0.0
      %754 = vadd.xlane.f32.xlu0 %v753
      %v755 = vpop.xlane.xlu0 %754
      %v756 = vsel %vm752, %v749, 0.0
      %757 = vadd.xlane.f32.xlu0 %v756
      %v758 = vpop.xlane.xlu0 %757
      %v759 = vsel %vm752, %v750, 0.0
      %760 = vadd.xlane.f32.xlu0 %v759
      %v761 = vpop.xlane.xlu0 %760
      %v762 = vsel %vm752, %v751, 0.0
      %763 = vadd.xlane.f32.xlu0 %v762
      %v764 = vpop.xlane.xlu0 %763
      %v765 = vrcp.pop 64.0
      %v766 = vmul.f32 %v755, %v765
      %v767 = vmul.f32 %v758, %v765
      %v768 = vmul.f32 %v761, %v765
      %v769 = vmul.f32 %v764, %v765
      %v770 = vadd.f32 %v766, 1e-06
      %v771 = vadd.f32 %v767, 1e-06
      %v772 = vadd.f32 %v768, 1e-06
      %v773 = vadd.f32 %v769, 1e-06
      %v774 = vrsqrt.pop %v770
      %v775 = vrsqrt.pop %v771
      %v776 = vrsqrt.pop %v772
      %v777 = vrsqrt.pop %v773
      %v778 = vmul.f32 %v696, %v774
      %v779 = vmul.f32 %v697, %v775
      %v780 = vmul.f32 %v698, %v776
      %v781 = vmul.f32 %v699, %v777
      %v783 = vlaneseq
      %v784 = vshrl.u32 %v783, 7
      %v785 = vsub.s32 0, %v784
      %v786 = vrot.slane %v720, %v785
      %v788 = vmul.f32 %v778, %v786
      %v789 = vmul.f32 %v779, %v786
      %v790 = vmul.f32 %v780, %v786
      %v791 = vmul.f32 %v781, %v786
      %v792 = vpack.c.bf16 %v788, %v788
      %v793 = vpack.c.bf16 %v789, %v789
      %v794 = vpack.c.bf16 %v790, %v790
      %v795 = vpack.c.bf16 %v791, %v791
      %v797 = vlaneseq
      %v798 = vshrl.u32 %v797, 7
      %v799 = vsub.s32 0, %v798
      %v800 = vrot.slane %v708, %v799
      %v801 = vlaneseq
      %v802 = vshrl.u32 %v801, 7
      %v803 = vsub.s32 1, %v802
      %v804 = vrot.slane %v708, %v803
      %v811 = vunpack.c.l.b16 %v792
      %v812 = vunpack.c.l.b16 %v793
      %v813 = vunpack.c.l.b16 %v794
      %v814 = vunpack.c.l.b16 %v795
      %v815 = vpack.c.b16 %v812, %v811
      %v816 = vpack.c.b16 %v814, %v813
      %v825 = vunpack.c.l.b16 %v700
      %v826 = vunpack.c.h.b16 %v700
      %v827 = vunpack.c.l.b16 %v701
      %v828 = vunpack.c.h.b16 %v701
      %v829 = vunpack.c.l.b16 %v702
      %v830 = vunpack.c.h.b16 %v702
      %v831 = vunpack.c.l.b16 %v703
      %v832 = vunpack.c.h.b16 %v703
      %v833 = vunpack.c.l.b16 %v704
      %v834 = vunpack.c.h.b16 %v704
      %v835 = vunpack.c.l.b16 %v705
      %v836 = vunpack.c.h.b16 %v705
      %v837 = vunpack.c.l.b16 %v706
      %v838 = vunpack.c.h.b16 %v706
      %v839 = vunpack.c.l.b16 %v707
      %v840 = vunpack.c.h.b16 %v707
      %v841 = vpack.c.b16 %v827, %v825
      %v842 = vpack.c.b16 %v828, %v826
      %v843 = vpack.c.b16 %v831, %v829
      %v844 = vpack.c.b16 %v832, %v830
      %v845 = vpack.c.b16 %v835, %v833
      %v846 = vpack.c.b16 %v836, %v834
      %v847 = vpack.c.b16 %v839, %v837
      %v848 = vpack.c.b16 %v840, %v838
      %v858 = vsel %vm752, %v815, 0
      %v861 = vsel %vm752, %v816, 0
      %863 = vmatprep.subr.bf16.mxu0 %v842
      %864 = vmatpush1.bf16.msra.mxu0 %v841
      %865 = vmatprep.subr.bf16.mxu0 %v844
      %866 = vmatpush1.bf16.msra.mxu0 %v843
      %867 = vmatprep.subr.bf16.mxu0 %v846
      %868 = vmatpush1.bf16.msra.mxu0 %v845
      %869 = vmatprep.subr.bf16.mxu0 %v848
      %870 = vmatpush1.bf16.msra.mxu0 %v847
      %871 = vmatprep.subr.bf16.mxu0 0
      %872 = vmatpush1.bf16.msra.mxu0 0
      %873 = vmatprep.subr.bf16.mxu0 0
      %874 = vmatpush1.bf16.msra.mxu0 0
      %875 = vmatprep.subr.bf16.mxu0 0
      %876 = vmatpush1.bf16.msra.mxu0 0
      %877 = vmatprep.subr.bf16.mxu0 0
      %878 = vmatpush1.bf16.msra.mxu0 0
      %879 = vmatprep.subr.bf16.mxu0 0
      %880 = vmatpush1.bf16.msra.mxu0 0
      %881 = vmatprep.subr.bf16.mxu0 0
      %882 = vmatpush1.bf16.msra.mxu0 0
      %883 = vmatprep.subr.bf16.mxu0 0
      %884 = vmatpush1.bf16.msra.mxu0 0
      %885 = vmatprep.subr.bf16.mxu0 0
      %886 = vmatpush1.bf16.msra.mxu0 0
      %887 = vmatprep.subr.bf16.mxu0 0
      %888 = vmatpush1.bf16.msra.mxu0 0
      %889 = vmatprep.subr.bf16.mxu0 0
      %890 = vmatpush1.bf16.msra.mxu0 0
      %891 = vmatprep.subr.bf16.mxu0 0
      %892 = vmatpush1.bf16.msra.mxu0 0
      %893 = vmatprep.subr.bf16.mxu0 0
      %894 = vmatpush1.bf16.msra.mxu0 0
      %895 = vmatprep.mubr.bf16.mxu0 0
      %896 = vmatmul.mubr.bf16.gmra.mrb[0].mxu0 %v858
      %v897 = vpop.f32.mrb[0].mxu0
      %v898 = vadd.f32 %v800, %v897
      %v899 = vpop.f32.mrb[0].mxu0
      %v900 = vadd.f32 %v804, %v899
      %v901 = vpop.f32.mrb[0].mxu0
      %v902 = vadd.f32 %v800, %v901
      %v903 = vpop.f32.mrb[0].mxu0
      %v904 = vadd.f32 %v804, %v903
      %905 = vmatprep.mubr.bf16.mxu0 0
      %906 = vmatmul.mubr.bf16.gmra.mrb[0].mxu0 %v861
      %v907 = vpop.f32.mrb[0].mxu0
      %v908 = vadd.f32 %v800, %v907
      %v909 = vpop.f32.mrb[0].mxu0
      %v910 = vadd.f32 %v804, %v909
      %v911 = vpop.f32.mrb[0].mxu0
      %v912 = vadd.f32 %v800, %v911
      %v913 = vpop.f32.mrb[0].mxu0
      %v914 = vadd.f32 %v804, %v913
      %915 = vdwg.mxu0
      %920 = vrot.lane.b32.xlu0 %v898, 112
      %v921 = vpop.permute.xlu0 %920
      %922 = vrot.lane.b32.xlu0 %v902, 112
      %v923 = vpop.permute.xlu0 %922
      %924 = vrot.lane.b32.xlu0 %v908, 112
      %v925 = vpop.permute.xlu0 %924
      %926 = vrot.lane.b32.xlu0 %v912, 112
      %v927 = vpop.permute.xlu0 %926
      %932 = vrot.lane.b32.xlu0 %v898, 96
      %v933 = vpop.permute.xlu0 %932
      %934 = vrot.lane.b32.xlu0 %v902, 96
      %v935 = vpop.permute.xlu0 %934
      %936 = vrot.lane.b32.xlu0 %v908, 96
      %v937 = vpop.permute.xlu0 %936
      %938 = vrot.lane.b32.xlu0 %v912, 96
      %v939 = vpop.permute.xlu0 %938
      %944 = vrot.lane.b32.xlu0 %v898, 80
      %v945 = vpop.permute.xlu0 %944
      %946 = vrot.lane.b32.xlu0 %v902, 80
      %v947 = vpop.permute.xlu0 %946
      %948 = vrot.lane.b32.xlu0 %v908, 80
      %v949 = vpop.permute.xlu0 %948
      %950 = vrot.lane.b32.xlu0 %v912, 80
      %v951 = vpop.permute.xlu0 %950
      %960 = vrot.lane.b32.xlu0 %v900, 112
      %v961 = vpop.permute.xlu0 %960
      %962 = vrot.lane.b32.xlu0 %v904, 112
      %v963 = vpop.permute.xlu0 %962
      %964 = vrot.lane.b32.xlu0 %v910, 112
      %v965 = vpop.permute.xlu0 %964
      %966 = vrot.lane.b32.xlu0 %v914, 112
      %v967 = vpop.permute.xlu0 %966
      %972 = vrot.lane.b32.xlu0 %v900, 96
      %v973 = vpop.permute.xlu0 %972
      %974 = vrot.lane.b32.xlu0 %v904, 96
      %v975 = vpop.permute.xlu0 %974
      %976 = vrot.lane.b32.xlu0 %v910, 96
      %v977 = vpop.permute.xlu0 %976
      %978 = vrot.lane.b32.xlu0 %v914, 96
      %v979 = vpop.permute.xlu0 %978
      %984 = vrot.lane.b32.xlu0 %v900, 80
      %v985 = vpop.permute.xlu0 %984
      %986 = vrot.lane.b32.xlu0 %v904, 80
      %v987 = vpop.permute.xlu0 %986
      %988 = vrot.lane.b32.xlu0 %v910, 80
      %v989 = vpop.permute.xlu0 %988
      %990 = vrot.lane.b32.xlu0 %v914, 80
      %v991 = vpop.permute.xlu0 %990
      %v996 = vmul.f32 %v898, %v898
      %v997 = vmul.f32 %v902, %v902
      %v998 = vmul.f32 %v908, %v908
      %v999 = vmul.f32 %v912, %v912
      %v1000 = vmul.f32 %v921, %v921
      %v1001 = vmul.f32 %v923, %v923
      %v1002 = vmul.f32 %v925, %v925
      %v1003 = vmul.f32 %v927, %v927
      %v1004 = vmul.f32 %v933, %v933
      %v1005 = vmul.f32 %v935, %v935
      %v1006 = vmul.f32 %v937, %v937
      %v1007 = vmul.f32 %v939, %v939
      %v1008 = vmul.f32 %v945, %v945
      %v1009 = vmul.f32 %v947, %v947
      %v1010 = vmul.f32 %v949, %v949
      %v1011 = vmul.f32 %v951, %v951
      %vm1012 = vcmask 130048
      %v1013 = vsel %vm1012, %v996, 0.0
      %1014 = vadd.xlane.f32.xlu0 %v1013
      %v1015 = vpop.xlane.xlu0 %1014
      %v1016 = vsel %vm1012, %v997, 0.0
      %1017 = vadd.xlane.f32.xlu0 %v1016
      %v1018 = vpop.xlane.xlu0 %1017
      %v1019 = vsel %vm1012, %v998, 0.0
      %1020 = vadd.xlane.f32.xlu0 %v1019
      %v1021 = vpop.xlane.xlu0 %1020
      %v1022 = vsel %vm1012, %v999, 0.0
      %1023 = vadd.xlane.f32.xlu0 %v1022
      %v1024 = vpop.xlane.xlu0 %1023
      %v1025 = vsel %vm1012, %v1000, 0.0
      %1026 = vadd.xlane.f32.xlu0 %v1025
      %v1027 = vpop.xlane.xlu0 %1026
      %v1028 = vsel %vm1012, %v1001, 0.0
      %1029 = vadd.xlane.f32.xlu0 %v1028
      %v1030 = vpop.xlane.xlu0 %1029
      %v1031 = vsel %vm1012, %v1002, 0.0
      %1032 = vadd.xlane.f32.xlu0 %v1031
      %v1033 = vpop.xlane.xlu0 %1032
      %v1034 = vsel %vm1012, %v1003, 0.0
      %1035 = vadd.xlane.f32.xlu0 %v1034
      %v1036 = vpop.xlane.xlu0 %1035
      %v1037 = vsel %vm1012, %v1004, 0.0
      %1038 = vadd.xlane.f32.xlu0 %v1037
      %v1039 = vpop.xlane.xlu0 %1038
      %v1040 = vsel %vm1012, %v1005, 0.0
      %1041 = vadd.xlane.f32.xlu0 %v1040
      %v1042 = vpop.xlane.xlu0 %1041
      %v1043 = vsel %vm1012, %v1006, 0.0
      %1044 = vadd.xlane.f32.xlu0 %v1043
      %v1045 = vpop.xlane.xlu0 %1044
      %v1046 = vsel %vm1012, %v1007, 0.0
      %1047 = vadd.xlane.f32.xlu0 %v1046
      %v1048 = vpop.xlane.xlu0 %1047
      %v1049 = vsel %vm1012, %v1008, 0.0
      %1050 = vadd.xlane.f32.xlu0 %v1049
      %v1051 = vpop.xlane.xlu0 %1050
      %v1052 = vsel %vm1012, %v1009, 0.0
      %1053 = vadd.xlane.f32.xlu0 %v1052
      %v1054 = vpop.xlane.xlu0 %1053
      %v1055 = vsel %vm1012, %v1010, 0.0
      %1056 = vadd.xlane.f32.xlu0 %v1055
      %v1057 = vpop.xlane.xlu0 %1056
      %v1058 = vsel %vm1012, %v1011, 0.0
      %1059 = vadd.xlane.f32.xlu0 %v1058
      %v1060 = vpop.xlane.xlu0 %1059
      %v1061 = vrcp.pop 16.0
      %v1062 = vmul.f32 %v1015, %v1061
      %v1063 = vmul.f32 %v1018, %v1061
      %v1064 = vmul.f32 %v1021, %v1061
      %v1065 = vmul.f32 %v1024, %v1061
      %v1066 = vmul.f32 %v1027, %v1061
      %v1067 = vmul.f32 %v1030, %v1061
      %v1068 = vmul.f32 %v1033, %v1061
      %v1069 = vmul.f32 %v1036, %v1061
      %v1070 = vmul.f32 %v1039, %v1061
      %v1071 = vmul.f32 %v1042, %v1061
      %v1072 = vmul.f32 %v1045, %v1061
      %v1073 = vmul.f32 %v1048, %v1061
      %v1074 = vmul.f32 %v1051, %v1061
      %v1075 = vmul.f32 %v1054, %v1061
      %v1076 = vmul.f32 %v1057, %v1061
      %v1077 = vmul.f32 %v1060, %v1061
      %v1078 = vadd.f32 %v1062, 1e-06
      %v1079 = vadd.f32 %v1063, 1e-06
      %v1080 = vadd.f32 %v1064, 1e-06
      %v1081 = vadd.f32 %v1065, 1e-06
      %v1082 = vadd.f32 %v1066, 1e-06
      %v1083 = vadd.f32 %v1067, 1e-06
      %v1084 = vadd.f32 %v1068, 1e-06
      %v1085 = vadd.f32 %v1069, 1e-06
      %v1086 = vadd.f32 %v1070, 1e-06
      %v1087 = vadd.f32 %v1071, 1e-06
      %v1088 = vadd.f32 %v1072, 1e-06
      %v1089 = vadd.f32 %v1073, 1e-06
      %v1090 = vadd.f32 %v1074, 1e-06
      %v1091 = vadd.f32 %v1075, 1e-06
      %v1092 = vadd.f32 %v1076, 1e-06
      %v1093 = vadd.f32 %v1077, 1e-06
      %v1094 = vrsqrt.pop %v1078
      %v1095 = vrsqrt.pop %v1079
      %v1096 = vrsqrt.pop %v1080
      %v1097 = vrsqrt.pop %v1081
      %v1098 = vrsqrt.pop %v1082
      %v1099 = vrsqrt.pop %v1083
      %v1100 = vrsqrt.pop %v1084
      %v1101 = vrsqrt.pop %v1085
      %v1102 = vrsqrt.pop %v1086
      %v1103 = vrsqrt.pop %v1087
      %v1104 = vrsqrt.pop %v1088
      %v1105 = vrsqrt.pop %v1089
      %v1106 = vrsqrt.pop %v1090
      %v1107 = vrsqrt.pop %v1091
      %v1108 = vrsqrt.pop %v1092
      %v1109 = vrsqrt.pop %v1093
      %v1110 = vmul.f32 %v898, %v1094
      %v1111 = vmul.f32 %v902, %v1095
      %v1112 = vmul.f32 %v908, %v1096
      %v1113 = vmul.f32 %v912, %v1097
      %v1114 = vmul.f32 %v921, %v1098
      %v1115 = vmul.f32 %v923, %v1099
      %v1116 = vmul.f32 %v925, %v1100
      %v1117 = vmul.f32 %v927, %v1101
      %v1118 = vmul.f32 %v933, %v1102
      %v1119 = vmul.f32 %v935, %v1103
      %v1120 = vmul.f32 %v937, %v1104
      %v1121 = vmul.f32 %v939, %v1105
      %v1122 = vmul.f32 %v945, %v1106
      %v1123 = vmul.f32 %v947, %v1107
      %v1124 = vmul.f32 %v949, %v1108
      %v1125 = vmul.f32 %v951, %v1109
      %v1127 = vlaneseq
      %v1128 = vshrl.u32 %v1127, 7
      %v1129 = vsub.s32 0, %v1128
      %v1130 = vrot.slane %v718, %v1129
      %v1132 = vmul.f32 %v1110, %v1130
      %v1133 = vmul.f32 %v1111, %v1130
      %v1134 = vmul.f32 %v1112, %v1130
      %v1135 = vmul.f32 %v1113, %v1130
      %v1136 = vmul.f32 %v1114, %v1130
      %v1137 = vmul.f32 %v1115, %v1130
      %v1138 = vmul.f32 %v1116, %v1130
      %v1139 = vmul.f32 %v1117, %v1130
      %v1140 = vmul.f32 %v1118, %v1130
      %v1141 = vmul.f32 %v1119, %v1130
      %v1142 = vmul.f32 %v1120, %v1130
      %v1143 = vmul.f32 %v1121, %v1130
      %v1144 = vmul.f32 %v1122, %v1130
      %v1145 = vmul.f32 %v1123, %v1130
      %v1146 = vmul.f32 %v1124, %v1130
      %v1147 = vmul.f32 %v1125, %v1130
      %v1148 = vmul.f32 %v1132, 0.25
      %v1149 = vmul.f32 %v1133, 0.25
      %v1150 = vmul.f32 %v1134, 0.25
      %v1151 = vmul.f32 %v1135, 0.25
      %v1152 = vmul.f32 %v1136, 0.25
      %v1153 = vmul.f32 %v1137, 0.25
      %v1154 = vmul.f32 %v1138, 0.25
      %v1155 = vmul.f32 %v1139, 0.25
      %v1156 = vmul.f32 %v1140, 0.25
      %v1157 = vmul.f32 %v1141, 0.25
      %v1158 = vmul.f32 %v1142, 0.25
      %v1159 = vmul.f32 %v1143, 0.25
      %v1160 = vmul.f32 %v1144, 0.25
      %v1161 = vmul.f32 %v1145, 0.25
      %v1162 = vmul.f32 %v1146, 0.25
      %v1163 = vmul.f32 %v1147, 0.25
      %v1164 = vpack.c.bf16 %v1148, %v1148
      %v1165 = vpack.c.bf16 %v1149, %v1149
      %v1166 = vpack.c.bf16 %v1150, %v1150
      %v1167 = vpack.c.bf16 %v1151, %v1151
      %v1168 = vpack.c.bf16 %v1152, %v1152
      %v1169 = vpack.c.bf16 %v1153, %v1153
      %v1170 = vpack.c.bf16 %v1154, %v1154
      %v1171 = vpack.c.bf16 %v1155, %v1155
      %v1172 = vpack.c.bf16 %v1156, %v1156
      %v1173 = vpack.c.bf16 %v1157, %v1157
      %v1174 = vpack.c.bf16 %v1158, %v1158
      %v1175 = vpack.c.bf16 %v1159, %v1159
      %v1176 = vpack.c.bf16 %v1160, %v1160
      %v1177 = vpack.c.bf16 %v1161, %v1161
      %v1178 = vpack.c.bf16 %v1162, %v1162
      %v1179 = vpack.c.bf16 %v1163, %v1163
      %1196 = vrot.lane.b32.xlu0 %v996, 64
      %v1197 = vpop.permute.xlu0 %1196
      %1198 = vrot.lane.b32.xlu0 %v997, 64
      %v1199 = vpop.permute.xlu0 %1198
      %1200 = vrot.lane.b32.xlu0 %v998, 64
      %v1201 = vpop.permute.xlu0 %1200
      %1202 = vrot.lane.b32.xlu0 %v999, 64
      %v1203 = vpop.permute.xlu0 %1202
      %1204 = vrot.lane.b32.xlu0 %v1000, 64
      %v1205 = vpop.permute.xlu0 %1204
      %1206 = vrot.lane.b32.xlu0 %v1001, 64
      %v1207 = vpop.permute.xlu0 %1206
      %1208 = vrot.lane.b32.xlu0 %v1002, 64
      %v1209 = vpop.permute.xlu0 %1208
      %1210 = vrot.lane.b32.xlu0 %v1003, 64
      %v1211 = vpop.permute.xlu0 %1210
      %1212 = vrot.lane.b32.xlu0 %v1004, 64
      %v1213 = vpop.permute.xlu0 %1212
      %1214 = vrot.lane.b32.xlu0 %v1005, 64
      %v1215 = vpop.permute.xlu0 %1214
      %1216 = vrot.lane.b32.xlu0 %v1006, 64
      %v1217 = vpop.permute.xlu0 %1216
      %1218 = vrot.lane.b32.xlu0 %v1007, 64
      %v1219 = vpop.permute.xlu0 %1218
      %1220 = vrot.lane.b32.xlu0 %v1008, 64
      %v1221 = vpop.permute.xlu0 %1220
      %1222 = vrot.lane.b32.xlu0 %v1009, 64
      %v1223 = vpop.permute.xlu0 %1222
      %1224 = vrot.lane.b32.xlu0 %v1010, 64
      %v1225 = vpop.permute.xlu0 %1224
      %1226 = vrot.lane.b32.xlu0 %v1011, 64
      %v1227 = vpop.permute.xlu0 %1226
      %v1244 = vsel %vm1012, %v1197, 0.0
      %1245 = vadd.xlane.f32.xlu0 %v1244
      %v1246 = vpop.xlane.xlu0 %1245
      %v1247 = vsel %vm1012, %v1199, 0.0
      %1248 = vadd.xlane.f32.xlu0 %v1247
      %v1249 = vpop.xlane.xlu0 %1248
      %v1250 = vsel %vm1012, %v1201, 0.0
      %1251 = vadd.xlane.f32.xlu0 %v1250
      %v1252 = vpop.xlane.xlu0 %1251
      %v1253 = vsel %vm1012, %v1203, 0.0
      %1254 = vadd.xlane.f32.xlu0 %v1253
      %v1255 = vpop.xlane.xlu0 %1254
      %v1256 = vsel %vm1012, %v1205, 0.0
      %1257 = vadd.xlane.f32.xlu0 %v1256
      %v1258 = vpop.xlane.xlu0 %1257
      %v1259 = vsel %vm1012, %v1207, 0.0
      %1260 = vadd.xlane.f32.xlu0 %v1259
      %v1261 = vpop.xlane.xlu0 %1260
      %v1262 = vsel %vm1012, %v1209, 0.0
      %1263 = vadd.xlane.f32.xlu0 %v1262
      %v1264 = vpop.xlane.xlu0 %1263
      %v1265 = vsel %vm1012, %v1211, 0.0
      %1266 = vadd.xlane.f32.xlu0 %v1265
      %v1267 = vpop.xlane.xlu0 %1266
      %v1268 = vsel %vm1012, %v1213, 0.0
      %1269 = vadd.xlane.f32.xlu0 %v1268
      %v1270 = vpop.xlane.xlu0 %1269
      %v1271 = vsel %vm1012, %v1215, 0.0
      %1272 = vadd.xlane.f32.xlu0 %v1271
      %v1273 = vpop.xlane.xlu0 %1272
      %v1274 = vsel %vm1012, %v1217, 0.0
      %1275 = vadd.xlane.f32.xlu0 %v1274
      %v1276 = vpop.xlane.xlu0 %1275
      %v1277 = vsel %vm1012, %v1219, 0.0
      %1278 = vadd.xlane.f32.xlu0 %v1277
      %v1279 = vpop.xlane.xlu0 %1278
      %v1280 = vsel %vm1012, %v1221, 0.0
      %1281 = vadd.xlane.f32.xlu0 %v1280
      %v1282 = vpop.xlane.xlu0 %1281
      %v1283 = vsel %vm1012, %v1223, 0.0
      %1284 = vadd.xlane.f32.xlu0 %v1283
      %v1285 = vpop.xlane.xlu0 %1284
      %v1286 = vsel %vm1012, %v1225, 0.0
      %1287 = vadd.xlane.f32.xlu0 %v1286
      %v1288 = vpop.xlane.xlu0 %1287
      %v1289 = vsel %vm1012, %v1227, 0.0
      %1290 = vadd.xlane.f32.xlu0 %v1289
      %v1291 = vpop.xlane.xlu0 %1290
      %v1292 = vmul.f32 %v1246, %v1061
      %v1293 = vmul.f32 %v1249, %v1061
      %v1294 = vmul.f32 %v1252, %v1061
      %v1295 = vmul.f32 %v1255, %v1061
      %v1296 = vmul.f32 %v1258, %v1061
      %v1297 = vmul.f32 %v1261, %v1061
      %v1298 = vmul.f32 %v1264, %v1061
      %v1299 = vmul.f32 %v1267, %v1061
      %v1300 = vmul.f32 %v1270, %v1061
      %v1301 = vmul.f32 %v1273, %v1061
      %v1302 = vmul.f32 %v1276, %v1061
      %v1303 = vmul.f32 %v1279, %v1061
      %v1304 = vmul.f32 %v1282, %v1061
      %v1305 = vmul.f32 %v1285, %v1061
      %v1306 = vmul.f32 %v1288, %v1061
      %v1307 = vmul.f32 %v1291, %v1061
      %v1308 = vadd.f32 %v1292, 1e-06
      %v1309 = vadd.f32 %v1293, 1e-06
      %v1310 = vadd.f32 %v1294, 1e-06
      %v1311 = vadd.f32 %v1295, 1e-06
      %v1312 = vadd.f32 %v1296, 1e-06
      %v1313 = vadd.f32 %v1297, 1e-06
      %v1314 = vadd.f32 %v1298, 1e-06
      %v1315 = vadd.f32 %v1299, 1e-06
      %v1316 = vadd.f32 %v1300, 1e-06
      %v1317 = vadd.f32 %v1301, 1e-06
      %v1318 = vadd.f32 %v1302, 1e-06
      %v1319 = vadd.f32 %v1303, 1e-06
      %v1320 = vadd.f32 %v1304, 1e-06
      %v1321 = vadd.f32 %v1305, 1e-06
      %v1322 = vadd.f32 %v1306, 1e-06
      %v1323 = vadd.f32 %v1307, 1e-06
      %v1324 = vrsqrt.pop %v1308
      %v1325 = vrsqrt.pop %v1309
      %v1326 = vrsqrt.pop %v1310
      %v1327 = vrsqrt.pop %v1311
      %v1328 = vrsqrt.pop %v1312
      %v1329 = vrsqrt.pop %v1313
      %v1330 = vrsqrt.pop %v1314
      %v1331 = vrsqrt.pop %v1315
      %v1332 = vrsqrt.pop %v1316
      %v1333 = vrsqrt.pop %v1317
      %v1334 = vrsqrt.pop %v1318
      %v1335 = vrsqrt.pop %v1319
      %v1336 = vrsqrt.pop %v1320
      %v1337 = vrsqrt.pop %v1321
      %v1338 = vrsqrt.pop %v1322
      %v1339 = vrsqrt.pop %v1323
      %v1340 = vmul.f32 %v898, %v1324
      %v1341 = vmul.f32 %v902, %v1325
      %v1342 = vmul.f32 %v908, %v1326
      %v1343 = vmul.f32 %v912, %v1327
      %v1344 = vmul.f32 %v921, %v1328
      %v1345 = vmul.f32 %v923, %v1329
      %v1346 = vmul.f32 %v925, %v1330
      %v1347 = vmul.f32 %v927, %v1331
      %v1348 = vmul.f32 %v933, %v1332
      %v1349 = vmul.f32 %v935, %v1333
      %v1350 = vmul.f32 %v937, %v1334
      %v1351 = vmul.f32 %v939, %v1335
      %v1352 = vmul.f32 %v945, %v1336
      %v1353 = vmul.f32 %v947, %v1337
      %v1354 = vmul.f32 %v949, %v1338
      %v1355 = vmul.f32 %v951, %v1339
      %v1357 = vlaneseq
      %v1358 = vshrl.u32 %v1357, 7
      %v1359 = vsub.s32 0, %v1358
      %v1360 = vrot.slane %v719, %v1359
      %1361 = vrot.lane.b32.xlu0 %v1360, 64
      %v1362 = vpop.permute.xlu0 %1361
      %v1364 = vmul.f32 %v1340, %v1362
      %v1365 = vmul.f32 %v1341, %v1362
      %v1366 = vmul.f32 %v1342, %v1362
      %v1367 = vmul.f32 %v1343, %v1362
      %v1368 = vmul.f32 %v1344, %v1362
      %v1369 = vmul.f32 %v1345, %v1362
      %v1370 = vmul.f32 %v1346, %v1362
      %v1371 = vmul.f32 %v1347, %v1362
      %v1372 = vmul.f32 %v1348, %v1362
      %v1373 = vmul.f32 %v1349, %v1362
      %v1374 = vmul.f32 %v1350, %v1362
      %v1375 = vmul.f32 %v1351, %v1362
      %v1376 = vmul.f32 %v1352, %v1362
      %v1377 = vmul.f32 %v1353, %v1362
      %v1378 = vmul.f32 %v1354, %v1362
      %v1379 = vmul.f32 %v1355, %v1362
      %v1380 = vpack.c.bf16 %v1364, %v1364
      %v1381 = vpack.c.bf16 %v1365, %v1365
      %v1382 = vpack.c.bf16 %v1366, %v1366
      %v1383 = vpack.c.bf16 %v1367, %v1367
      %v1384 = vpack.c.bf16 %v1368, %v1368
      %v1385 = vpack.c.bf16 %v1369, %v1369
      %v1386 = vpack.c.bf16 %v1370, %v1370
      %v1387 = vpack.c.bf16 %v1371, %v1371
      %v1388 = vpack.c.bf16 %v1372, %v1372
      %v1389 = vpack.c.bf16 %v1373, %v1373
      %v1390 = vpack.c.bf16 %v1374, %v1374
      %v1391 = vpack.c.bf16 %v1375, %v1375
      %v1392 = vpack.c.bf16 %v1376, %v1376
      %v1393 = vpack.c.bf16 %v1377, %v1377
      %v1394 = vpack.c.bf16 %v1378, %v1378
      %v1395 = vpack.c.bf16 %v1379, %v1379
      %v1396 = vpack.c.bf16 %v900, %v900
      %v1397 = vpack.c.bf16 %v904, %v904
      %v1398 = vpack.c.bf16 %v910, %v910
      %v1399 = vpack.c.bf16 %v914, %v914
      %v1400 = vpack.c.bf16 %v961, %v961
      %v1401 = vpack.c.bf16 %v963, %v963
      %v1402 = vpack.c.bf16 %v965, %v965
      %v1403 = vpack.c.bf16 %v967, %v967
      %v1404 = vpack.c.bf16 %v973, %v973
      %v1405 = vpack.c.bf16 %v975, %v975
      %v1406 = vpack.c.bf16 %v977, %v977
      %v1407 = vpack.c.bf16 %v979, %v979
      %v1408 = vpack.c.bf16 %v985, %v985
      %v1409 = vpack.c.bf16 %v987, %v987
      %v1410 = vpack.c.bf16 %v989, %v989
      %v1411 = vpack.c.bf16 %v991, %v991
      %1413 = vrot.lane.b32.xlu0 %v1380, 64
      %v1414 = vpop.permute.xlu0 %1413
      %v1416 = vsel %vm1012, %v1164, 0
      %v1419 = vsel %vm1012, %v1414, 0
      %1421 = vmatprep.subr.bf16.mxu0 0
      %1422 = vmatpush1.bf16.xpose.msra.mxu0 %v1419
      %1423 = vmatprep.subr.bf16.mxu0 0
      %1424 = vmatpush1.bf16.xpose.msra.mxu0 0
      %1425 = vmatprep.subr.bf16.mxu0 0
      %1426 = vmatpush1.bf16.xpose.msra.mxu0 0
      %1427 = vmatprep.subr.bf16.mxu0 0
      %1428 = vmatpush1.bf16.xpose.msra.mxu0 0
      %1429 = vmatprep.subr.bf16.mxu0 0
      %1430 = vmatpush1.bf16.xpose.msra.mxu0 0
      %1431 = vmatprep.subr.bf16.mxu0 0
      %1432 = vmatpush1.bf16.xpose.msra.mxu0 0
      %1433 = vmatprep.subr.bf16.mxu0 0
      %1434 = vmatpush1.bf16.xpose.msra.mxu0 0
      %1435 = vmatprep.subr.bf16.mxu0 0
      %1436 = vmatpush1.bf16.xpose.msra.mxu0 0
      %1437 = vmatprep.subr.bf16.mxu0 0
      %1438 = vmatpush1.bf16.xpose.msra.mxu0 0
      %1439 = vmatprep.subr.bf16.mxu0 0
      %1440 = vmatpush1.bf16.xpose.msra.mxu0 0
      %1441 = vmatprep.subr.bf16.mxu0 0
      %1442 = vmatpush1.bf16.xpose.msra.mxu0 0
      %1443 = vmatprep.subr.bf16.mxu0 0
      %1444 = vmatpush1.bf16.xpose.msra.mxu0 0
      %1445 = vmatprep.subr.bf16.mxu0 0
      %1446 = vmatpush1.bf16.xpose.msra.mxu0 0
      %1447 = vmatprep.subr.bf16.mxu0 0
      %1448 = vmatpush1.bf16.xpose.msra.mxu0 0
      %1449 = vmatprep.subr.bf16.mxu0 0
      %1450 = vmatpush1.bf16.xpose.msra.mxu0 0
      %1451 = vmatprep.subr.bf16.mxu0 0
      %1452 = vmatpush1.bf16.xpose.msra.mxu0 0
      %1453 = vmatprep.mubr.bf16.mxu0 0
      %1454 = vmatmul.mubr.bf16.gmra.mrb[0].mxu0 %v1416
      %v1455 = vpop.f32.mrb[0].mxu0
      %v1456 = vadd.f32 0.0, %v1455
      %v1457 = vpop.f32.mrb[0].mxu0
      %v1458 = vpop.f32.mrb[0].mxu0
      %v1459 = vpop.f32.mrb[0].mxu0
      %1460 = vdwg.mxu0
      %1462 = vrot.lane.b32.xlu0 %v1381, 64
      %v1463 = vpop.permute.xlu0 %1462
      %v1465 = vsel %vm1012, %v1165, 0
      %v1468 = vsel %vm1012, %v1463, 0
      %1470 = vmatprep.subr.bf16.mxu0 0
      %1471 = vmatpush1.bf16.xpose.msra.mxu0 %v1468
      %1472 = vmatprep.subr.bf16.mxu0 0
      %1473 = vmatpush1.bf16.xpose.msra.mxu0 0
      %1474 = vmatprep.subr.bf16.mxu0 0
      %1475 = vmatpush1.bf16.xpose.msra.mxu0 0
      %1476 = vmatprep.subr.bf16.mxu0 0
      %1477 = vmatpush1.bf16.xpose.msra.mxu0 0
      %1478 = vmatprep.subr.bf16.mxu0 0
      %1479 = vmatpush1.bf16.xpose.msra.mxu0 0
      %1480 = vmatprep.subr.bf16.mxu0 0
      %1481 = vmatpush1.bf16.xpose.msra.mxu0 0
      %1482 = vmatprep.subr.bf16.mxu0 0
      %1483 = vmatpush1.bf16.xpose.msra.mxu0 0
      %1484 = vmatprep.subr.bf16.mxu0 0
      %1485 = vmatpush1.bf16.xpose.msra.mxu0 0
      %1486 = vmatprep.subr.bf16.mxu0 0
      %1487 = vmatpush1.bf16.xpose.msra.mxu0 0
      %1488 = vmatprep.subr.bf16.mxu0 0
      %1489 = vmatpush1.bf16.xpose.msra.mxu0 0
      %1490 = vmatprep.subr.bf16.mxu0 0
      %1491 = vmatpush1.bf16.xpose.msra.mxu0 0
      %1492 = vmatprep.subr.bf16.mxu0 0
      %1493 = vmatpush1.bf16.xpose.msra.mxu0 0
      %1494 = vmatprep.subr.bf16.mxu0 0
      %1495 = vmatpush1.bf16.xpose.msra.mxu0 0
      %1496 = vmatprep.subr.bf16.mxu0 0
      %1497 = vmatpush1.bf16.xpose.msra.mxu0 0
      %1498 = vmatprep.subr.bf16.mxu0 0
      %1499 = vmatpush1.bf16.xpose.msra.mxu0 0
      %1500 = vmatprep.subr.bf16.mxu0 0
      %1501 = vmatpush1.bf16.xpose.msra.mxu0 0
      %1502 = vmatprep.mubr.bf16.mxu0 0
      %1503 = vmatmul.mubr.bf16.gmra.mrb[0].mxu0 %v1465
      %v1504 = vpop.f32.mrb[0].mxu0
      %v1505 = vadd.f32 0.0, %v1504
      %v1506 = vpop.f32.mrb[0].mxu0
      %v1507 = vpop.f32.mrb[0].mxu0
      %v1508 = vpop.f32.mrb[0].mxu0
      %1509 = vdwg.mxu0
      %1511 = vrot.lane.b32.xlu0 %v1382, 64
      %v1512 = vpop.permute.xlu0 %1511
      %v1514 = vsel %vm1012, %v1166, 0
      %v1517 = vsel %vm1012, %v1512, 0
      %1519 = vmatprep.subr.bf16.mxu0 0
      %1520 = vmatpush1.bf16.xpose.msra.mxu0 %v1517
      %1521 = vmatprep.subr.bf16.mxu0 0
      %1522 = vmatpush1.bf16.xpose.msra.mxu0 0
      %1523 = vmatprep.subr.bf16.mxu0 0
      %1524 = vmatpush1.bf16.xpose.msra.mxu0 0
      %1525 = vmatprep.subr.bf16.mxu0 0
      %1526 = vmatpush1.bf16.xpose.msra.mxu0 0
      %1527 = vmatprep.subr.bf16.mxu0 0
      %1528 = vmatpush1.bf16.xpose.msra.mxu0 0
      %1529 = vmatprep.subr.bf16.mxu0 0
      %1530 = vmatpush1.bf16.xpose.msra.mxu0 0
      %1531 = vmatprep.subr.bf16.mxu0 0
      %1532 = vmatpush1.bf16.xpose.msra.mxu0 0
      %1533 = vmatprep.subr.bf16.mxu0 0
      %1534 = vmatpush1.bf16.xpose.msra.mxu0 0
      %1535 = vmatprep.subr.bf16.mxu0 0
      %1536 = vmatpush1.bf16.xpose.msra.mxu0 0
      %1537 = vmatprep.subr.bf16.mxu0 0
      %1538 = vmatpush1.bf16.xpose.msra.mxu0 0
      %1539 = vmatprep.subr.bf16.mxu0 0
      %1540 = vmatpush1.bf16.xpose.msra.mxu0 0
      %1541 = vmatprep.subr.bf16.mxu0 0
      %1542 = vmatpush1.bf16.xpose.msra.mxu0 0
      %1543 = vmatprep.subr.bf16.mxu0 0
      %1544 = vmatpush1.bf16.xpose.msra.mxu0 0
      %1545 = vmatprep.subr.bf16.mxu0 0
      %1546 = vmatpush1.bf16.xpose.msra.mxu0 0
      %1547 = vmatprep.subr.bf16.mxu0 0
      %1548 = vmatpush1.bf16.xpose.msra.mxu0 0
      %1549 = vmatprep.subr.bf16.mxu0 0
      %1550 = vmatpush1.bf16.xpose.msra.mxu0 0
      %1551 = vmatprep.mubr.bf16.mxu0 0
      %1552 = vmatmul.mubr.bf16.gmra.mrb[0].mxu0 %v1514
      %v1553 = vpop.f32.mrb[0].mxu0
      %v1554 = vadd.f32 0.0, %v1553
      %v1555 = vpop.f32.mrb[0].mxu0
      %v1556 = vpop.f32.mrb[0].mxu0
      %v1557 = vpop.f32.mrb[0].mxu0
      %1558 = vdwg.mxu0
      %1560 = vrot.lane.b32.xlu0 %v1383, 64
      %v1561 = vpop.permute.xlu0 %1560
      %v1563 = vsel %vm1012, %v1167, 0
      %v1566 = vsel %vm1012, %v1561, 0
      %1568 = vmatprep.subr.bf16.mxu0 0
      %1569 = vmatpush1.bf16.xpose.msra.mxu0 %v1566
      %1570 = vmatprep.subr.bf16.mxu0 0
      %1571 = vmatpush1.bf16.xpose.msra.mxu0 0
      %1572 = vmatprep.subr.bf16.mxu0 0
      %1573 = vmatpush1.bf16.xpose.msra.mxu0 0
      %1574 = vmatprep.subr.bf16.mxu0 0
      %1575 = vmatpush1.bf16.xpose.msra.mxu0 0
      %1576 = vmatprep.subr.bf16.mxu0 0
      %1577 = vmatpush1.bf16.xpose.msra.mxu0 0
      %1578 = vmatprep.subr.bf16.mxu0 0
      %1579 = vmatpush1.bf16.xpose.msra.mxu0 0
      %1580 = vmatprep.subr.bf16.mxu0 0
      %1581 = vmatpush1.bf16.xpose.msra.mxu0 0
      %1582 = vmatprep.subr.bf16.mxu0 0
      %1583 = vmatpush1.bf16.xpose.msra.mxu0 0
      %1584 = vmatprep.subr.bf16.mxu0 0
      %1585 = vmatpush1.bf16.xpose.msra.mxu0 0
      %1586 = vmatprep.subr.bf16.mxu0 0
      %1587 = vmatpush1.bf16.xpose.msra.mxu0 0
      %1588 = vmatprep.subr.bf16.mxu0 0
      %1589 = vmatpush1.bf16.xpose.msra.mxu0 0
      %1590 = vmatprep.subr.bf16.mxu0 0
      %1591 = vmatpush1.bf16.xpose.msra.mxu0 0
      %1592 = vmatprep.subr.bf16.mxu0 0
      %1593 = vmatpush1.bf16.xpose.msra.mxu0 0
      %1594 = vmatprep.subr.bf16.mxu0 0
      %1595 = vmatpush1.bf16.xpose.msra.mxu0 0
      %1596 = vmatprep.subr.bf16.mxu0 0
      %1597 = vmatpush1.bf16.xpose.msra.mxu0 0
      %1598 = vmatprep.subr.bf16.mxu0 0
      %1599 = vmatpush1.bf16.xpose.msra.mxu0 0
      %1600 = vmatprep.mubr.bf16.mxu0 0
      %1601 = vmatmul.mubr.bf16.gmra.mrb[0].mxu0 %v1563
      %v1602 = vpop.f32.mrb[0].mxu0
      %v1603 = vadd.f32 0.0, %v1602
      %v1604 = vpop.f32.mrb[0].mxu0
      %v1605 = vpop.f32.mrb[0].mxu0
      %v1606 = vpop.f32.mrb[0].mxu0
      %1607 = vdwg.mxu0
      %1609 = vrot.lane.b32.xlu0 %v1384, 64
      %v1610 = vpop.permute.xlu0 %1609
      %v1612 = vsel %vm1012, %v1168, 0
      %v1615 = vsel %vm1012, %v1610, 0
      %1617 = vmatprep.subr.bf16.mxu0 0
      %1618 = vmatpush1.bf16.xpose.msra.mxu0 %v1615
      %1619 = vmatprep.subr.bf16.mxu0 0
      %1620 = vmatpush1.bf16.xpose.msra.mxu0 0
      %1621 = vmatprep.subr.bf16.mxu0 0
      %1622 = vmatpush1.bf16.xpose.msra.mxu0 0
      %1623 = vmatprep.subr.bf16.mxu0 0
      %1624 = vmatpush1.bf16.xpose.msra.mxu0 0
      %1625 = vmatprep.subr.bf16.mxu0 0
      %1626 = vmatpush1.bf16.xpose.msra.mxu0 0
      %1627 = vmatprep.subr.bf16.mxu0 0
      %1628 = vmatpush1.bf16.xpose.msra.mxu0 0
      %1629 = vmatprep.subr.bf16.mxu0 0
      %1630 = vmatpush1.bf16.xpose.msra.mxu0 0
      %1631 = vmatprep.subr.bf16.mxu0 0
      %1632 = vmatpush1.bf16.xpose.msra.mxu0 0
      %1633 = vmatprep.subr.bf16.mxu0 0
      %1634 = vmatpush1.bf16.xpose.msra.mxu0 0
      %1635 = vmatprep.subr.bf16.mxu0 0
      %1636 = vmatpush1.bf16.xpose.msra.mxu0 0
      %1637 = vmatprep.subr.bf16.mxu0 0
      %1638 = vmatpush1.bf16.xpose.msra.mxu0 0
      %1639 = vmatprep.subr.bf16.mxu0 0
      %1640 = vmatpush1.bf16.xpose.msra.mxu0 0
      %1641 = vmatprep.subr.bf16.mxu0 0
      %1642 = vmatpush1.bf16.xpose.msra.mxu0 0
      %1643 = vmatprep.subr.bf16.mxu0 0
      %1644 = vmatpush1.bf16.xpose.msra.mxu0 0
      %1645 = vmatprep.subr.bf16.mxu0 0
      %1646 = vmatpush1.bf16.xpose.msra.mxu0 0
      %1647 = vmatprep.subr.bf16.mxu0 0
      %1648 = vmatpush1.bf16.xpose.msra.mxu0 0
      %1649 = vmatprep.mubr.bf16.mxu0 0
      %1650 = vmatmul.mubr.bf16.gmra.mrb[0].mxu0 %v1612
      %v1651 = vpop.f32.mrb[0].mxu0
      %v1652 = vadd.f32 0.0, %v1651
      %v1653 = vpop.f32.mrb[0].mxu0
      %v1654 = vpop.f32.mrb[0].mxu0
      %v1655 = vpop.f32.mrb[0].mxu0
      %1656 = vdwg.mxu0
      %1658 = vrot.lane.b32.xlu0 %v1385, 64
      %v1659 = vpop.permute.xlu0 %1658
      %v1661 = vsel %vm1012, %v1169, 0
      %v1664 = vsel %vm1012, %v1659, 0
      %1666 = vmatprep.subr.bf16.mxu0 0
      %1667 = vmatpush1.bf16.xpose.msra.mxu0 %v1664
      %1668 = vmatprep.subr.bf16.mxu0 0
      %1669 = vmatpush1.bf16.xpose.msra.mxu0 0
      %1670 = vmatprep.subr.bf16.mxu0 0
      %1671 = vmatpush1.bf16.xpose.msra.mxu0 0
      %1672 = vmatprep.subr.bf16.mxu0 0
      %1673 = vmatpush1.bf16.xpose.msra.mxu0 0
      %1674 = vmatprep.subr.bf16.mxu0 0
      %1675 = vmatpush1.bf16.xpose.msra.mxu0 0
      %1676 = vmatprep.subr.bf16.mxu0 0
      %1677 = vmatpush1.bf16.xpose.msra.mxu0 0
      %1678 = vmatprep.subr.bf16.mxu0 0
      %1679 = vmatpush1.bf16.xpose.msra.mxu0 0
      %1680 = vmatprep.subr.bf16.mxu0 0
      %1681 = vmatpush1.bf16.xpose.msra.mxu0 0
      %1682 = vmatprep.subr.bf16.mxu0 0
      %1683 = vmatpush1.bf16.xpose.msra.mxu0 0
      %1684 = vmatprep.subr.bf16.mxu0 0
      %1685 = vmatpush1.bf16.xpose.msra.mxu0 0
      %1686 = vmatprep.subr.bf16.mxu0 0
      %1687 = vmatpush1.bf16.xpose.msra.mxu0 0
      %1688 = vmatprep.subr.bf16.mxu0 0
      %1689 = vmatpush1.bf16.xpose.msra.mxu0 0
      %1690 = vmatprep.subr.bf16.mxu0 0
      %1691 = vmatpush1.bf16.xpose.msra.mxu0 0
      %1692 = vmatprep.subr.bf16.mxu0 0
      %1693 = vmatpush1.bf16.xpose.msra.mxu0 0
      %1694 = vmatprep.subr.bf16.mxu0 0
      %1695 = vmatpush1.bf16.xpose.msra.mxu0 0
      %1696 = vmatprep.subr.bf16.mxu0 0
      %1697 = vmatpush1.bf16.xpose.msra.mxu0 0
      %1698 = vmatprep.mubr.bf16.mxu0 0
      %1699 = vmatmul.mubr.bf16.gmra.mrb[0].mxu0 %v1661
      %v1700 = vpop.f32.mrb[0].mxu0
      %v1701 = vadd.f32 0.0, %v1700
      %v1702 = vpop.f32.mrb[0].mxu0
      %v1703 = vpop.f32.mrb[0].mxu0
      %v1704 = vpop.f32.mrb[0].mxu0
      %1705 = vdwg.mxu0
      %1707 = vrot.lane.b32.xlu0 %v1386, 64
      %v1708 = vpop.permute.xlu0 %1707
      %v1710 = vsel %vm1012, %v1170, 0
      %v1713 = vsel %vm1012, %v1708, 0
      %1715 = vmatprep.subr.bf16.mxu0 0
      %1716 = vmatpush1.bf16.xpose.msra.mxu0 %v1713
      %1717 = vmatprep.subr.bf16.mxu0 0
      %1718 = vmatpush1.bf16.xpose.msra.mxu0 0
      %1719 = vmatprep.subr.bf16.mxu0 0
      %1720 = vmatpush1.bf16.xpose.msra.mxu0 0
      %1721 = vmatprep.subr.bf16.mxu0 0
      %1722 = vmatpush1.bf16.xpose.msra.mxu0 0
      %1723 = vmatprep.subr.bf16.mxu0 0
      %1724 = vmatpush1.bf16.xpose.msra.mxu0 0
      %1725 = vmatprep.subr.bf16.mxu0 0
      %1726 = vmatpush1.bf16.xpose.msra.mxu0 0
      %1727 = vmatprep.subr.bf16.mxu0 0
      %1728 = vmatpush1.bf16.xpose.msra.mxu0 0
      %1729 = vmatprep.subr.bf16.mxu0 0
      %1730 = vmatpush1.bf16.xpose.msra.mxu0 0
      %1731 = vmatprep.subr.bf16.mxu0 0
      %1732 = vmatpush1.bf16.xpose.msra.mxu0 0
      %1733 = vmatprep.subr.bf16.mxu0 0
      %1734 = vmatpush1.bf16.xpose.msra.mxu0 0
      %1735 = vmatprep.subr.bf16.mxu0 0
      %1736 = vmatpush1.bf16.xpose.msra.mxu0 0
      %1737 = vmatprep.subr.bf16.mxu0 0
      %1738 = vmatpush1.bf16.xpose.msra.mxu0 0
      %1739 = vmatprep.subr.bf16.mxu0 0
      %1740 = vmatpush1.bf16.xpose.msra.mxu0 0
      %1741 = vmatprep.subr.bf16.mxu0 0
      %1742 = vmatpush1.bf16.xpose.msra.mxu0 0
      %1743 = vmatprep.subr.bf16.mxu0 0
      %1744 = vmatpush1.bf16.xpose.msra.mxu0 0
      %1745 = vmatprep.subr.bf16.mxu0 0
      %1746 = vmatpush1.bf16.xpose.msra.mxu0 0
      %1747 = vmatprep.mubr.bf16.mxu0 0
      %1748 = vmatmul.mubr.bf16.gmra.mrb[0].mxu0 %v1710
      %v1749 = vpop.f32.mrb[0].mxu0
      %v1750 = vadd.f32 0.0, %v1749
      %v1751 = vpop.f32.mrb[0].mxu0
      %v1752 = vpop.f32.mrb[0].mxu0
      %v1753 = vpop.f32.mrb[0].mxu0
      %1754 = vdwg.mxu0
      %1756 = vrot.lane.b32.xlu0 %v1387, 64
      %v1757 = vpop.permute.xlu0 %1756
      %v1759 = vsel %vm1012, %v1171, 0
      %v1762 = vsel %vm1012, %v1757, 0
      %1764 = vmatprep.subr.bf16.mxu0 0
      %1765 = vmatpush1.bf16.xpose.msra.mxu0 %v1762
      %1766 = vmatprep.subr.bf16.mxu0 0
      %1767 = vmatpush1.bf16.xpose.msra.mxu0 0
      %1768 = vmatprep.subr.bf16.mxu0 0
      %1769 = vmatpush1.bf16.xpose.msra.mxu0 0
      %1770 = vmatprep.subr.bf16.mxu0 0
      %1771 = vmatpush1.bf16.xpose.msra.mxu0 0
      %1772 = vmatprep.subr.bf16.mxu0 0
      %1773 = vmatpush1.bf16.xpose.msra.mxu0 0
      %1774 = vmatprep.subr.bf16.mxu0 0
      %1775 = vmatpush1.bf16.xpose.msra.mxu0 0
      %1776 = vmatprep.subr.bf16.mxu0 0
      %1777 = vmatpush1.bf16.xpose.msra.mxu0 0
      %1778 = vmatprep.subr.bf16.mxu0 0
      %1779 = vmatpush1.bf16.xpose.msra.mxu0 0
      %1780 = vmatprep.subr.bf16.mxu0 0
      %1781 = vmatpush1.bf16.xpose.msra.mxu0 0
      %1782 = vmatprep.subr.bf16.mxu0 0
      %1783 = vmatpush1.bf16.xpose.msra.mxu0 0
      %1784 = vmatprep.subr.bf16.mxu0 0
      %1785 = vmatpush1.bf16.xpose.msra.mxu0 0
      %1786 = vmatprep.subr.bf16.mxu0 0
      %1787 = vmatpush1.bf16.xpose.msra.mxu0 0
      %1788 = vmatprep.subr.bf16.mxu0 0
      %1789 = vmatpush1.bf16.xpose.msra.mxu0 0
      %1790 = vmatprep.subr.bf16.mxu0 0
      %1791 = vmatpush1.bf16.xpose.msra.mxu0 0
      %1792 = vmatprep.subr.bf16.mxu0 0
      %1793 = vmatpush1.bf16.xpose.msra.mxu0 0
      %1794 = vmatprep.subr.bf16.mxu0 0
      %1795 = vmatpush1.bf16.xpose.msra.mxu0 0
      %1796 = vmatprep.mubr.bf16.mxu0 0
      %1797 = vmatmul.mubr.bf16.gmra.mrb[0].mxu0 %v1759
      %v1798 = vpop.f32.mrb[0].mxu0
      %v1799 = vadd.f32 0.0, %v1798
      %v1800 = vpop.f32.mrb[0].mxu0
      %v1801 = vpop.f32.mrb[0].mxu0
      %v1802 = vpop.f32.mrb[0].mxu0
      %1803 = vdwg.mxu0
      %1805 = vrot.lane.b32.xlu0 %v1388, 64
      %v1806 = vpop.permute.xlu0 %1805
      %v1808 = vsel %vm1012, %v1172, 0
      %v1811 = vsel %vm1012, %v1806, 0
      %1813 = vmatprep.subr.bf16.mxu0 0
      %1814 = vmatpush1.bf16.xpose.msra.mxu0 %v1811
      %1815 = vmatprep.subr.bf16.mxu0 0
      %1816 = vmatpush1.bf16.xpose.msra.mxu0 0
      %1817 = vmatprep.subr.bf16.mxu0 0
      %1818 = vmatpush1.bf16.xpose.msra.mxu0 0
      %1819 = vmatprep.subr.bf16.mxu0 0
      %1820 = vmatpush1.bf16.xpose.msra.mxu0 0
      %1821 = vmatprep.subr.bf16.mxu0 0
      %1822 = vmatpush1.bf16.xpose.msra.mxu0 0
      %1823 = vmatprep.subr.bf16.mxu0 0
      %1824 = vmatpush1.bf16.xpose.msra.mxu0 0
      %1825 = vmatprep.subr.bf16.mxu0 0
      %1826 = vmatpush1.bf16.xpose.msra.mxu0 0
      %1827 = vmatprep.subr.bf16.mxu0 0
      %1828 = vmatpush1.bf16.xpose.msra.mxu0 0
      %1829 = vmatprep.subr.bf16.mxu0 0
      %1830 = vmatpush1.bf16.xpose.msra.mxu0 0
      %1831 = vmatprep.subr.bf16.mxu0 0
      %1832 = vmatpush1.bf16.xpose.msra.mxu0 0
      %1833 = vmatprep.subr.bf16.mxu0 0
      %1834 = vmatpush1.bf16.xpose.msra.mxu0 0
      %1835 = vmatprep.subr.bf16.mxu0 0
      %1836 = vmatpush1.bf16.xpose.msra.mxu0 0
      %1837 = vmatprep.subr.bf16.mxu0 0
      %1838 = vmatpush1.bf16.xpose.msra.mxu0 0
      %1839 = vmatprep.subr.bf16.mxu0 0
      %1840 = vmatpush1.bf16.xpose.msra.mxu0 0
      %1841 = vmatprep.subr.bf16.mxu0 0
      %1842 = vmatpush1.bf16.xpose.msra.mxu0 0
      %1843 = vmatprep.subr.bf16.mxu0 0
      %1844 = vmatpush1.bf16.xpose.msra.mxu0 0
      %1845 = vmatprep.mubr.bf16.mxu0 0
      %1846 = vmatmul.mubr.bf16.gmra.mrb[0].mxu0 %v1808
      %v1847 = vpop.f32.mrb[0].mxu0
      %v1848 = vadd.f32 0.0, %v1847
      %v1849 = vpop.f32.mrb[0].mxu0
      %v1850 = vpop.f32.mrb[0].mxu0
      %v1851 = vpop.f32.mrb[0].mxu0
      %1852 = vdwg.mxu0
      %1854 = vrot.lane.b32.xlu0 %v1389, 64
      %v1855 = vpop.permute.xlu0 %1854
      %v1857 = vsel %vm1012, %v1173, 0
      %v1860 = vsel %vm1012, %v1855, 0
      %1862 = vmatprep.subr.bf16.mxu0 0
      %1863 = vmatpush1.bf16.xpose.msra.mxu0 %v1860
      %1864 = vmatprep.subr.bf16.mxu0 0
      %1865 = vmatpush1.bf16.xpose.msra.mxu0 0
      %1866 = vmatprep.subr.bf16.mxu0 0
      %1867 = vmatpush1.bf16.xpose.msra.mxu0 0
      %1868 = vmatprep.subr.bf16.mxu0 0
      %1869 = vmatpush1.bf16.xpose.msra.mxu0 0
      %1870 = vmatprep.subr.bf16.mxu0 0
      %1871 = vmatpush1.bf16.xpose.msra.mxu0 0
      %1872 = vmatprep.subr.bf16.mxu0 0
      %1873 = vmatpush1.bf16.xpose.msra.mxu0 0
      %1874 = vmatprep.subr.bf16.mxu0 0
      %1875 = vmatpush1.bf16.xpose.msra.mxu0 0
      %1876 = vmatprep.subr.bf16.mxu0 0
      %1877 = vmatpush1.bf16.xpose.msra.mxu0 0
      %1878 = vmatprep.subr.bf16.mxu0 0
      %1879 = vmatpush1.bf16.xpose.msra.mxu0 0
      %1880 = vmatprep.subr.bf16.mxu0 0
      %1881 = vmatpush1.bf16.xpose.msra.mxu0 0
      %1882 = vmatprep.subr.bf16.mxu0 0
      %1883 = vmatpush1.bf16.xpose.msra.mxu0 0
      %1884 = vmatprep.subr.bf16.mxu0 0
      %1885 = vmatpush1.bf16.xpose.msra.mxu0 0
      %1886 = vmatprep.subr.bf16.mxu0 0
      %1887 = vmatpush1.bf16.xpose.msra.mxu0 0
      %1888 = vmatprep.subr.bf16.mxu0 0
      %1889 = vmatpush1.bf16.xpose.msra.mxu0 0
      %1890 = vmatprep.subr.bf16.mxu0 0
      %1891 = vmatpush1.bf16.xpose.msra.mxu0 0
      %1892 = vmatprep.subr.bf16.mxu0 0
      %1893 = vmatpush1.bf16.xpose.msra.mxu0 0
      %1894 = vmatprep.mubr.bf16.mxu0 0
      %1895 = vmatmul.mubr.bf16.gmra.mrb[0].mxu0 %v1857
      %v1896 = vpop.f32.mrb[0].mxu0
      %v1897 = vadd.f32 0.0, %v1896
      %v1898 = vpop.f32.mrb[0].mxu0
      %v1899 = vpop.f32.mrb[0].mxu0
      %v1900 = vpop.f32.mrb[0].mxu0
      %1901 = vdwg.mxu0
      %1903 = vrot.lane.b32.xlu0 %v1390, 64
      %v1904 = vpop.permute.xlu0 %1903
      %v1906 = vsel %vm1012, %v1174, 0
      %v1909 = vsel %vm1012, %v1904, 0
      %1911 = vmatprep.subr.bf16.mxu0 0
      %1912 = vmatpush1.bf16.xpose.msra.mxu0 %v1909
      %1913 = vmatprep.subr.bf16.mxu0 0
      %1914 = vmatpush1.bf16.xpose.msra.mxu0 0
      %1915 = vmatprep.subr.bf16.mxu0 0
      %1916 = vmatpush1.bf16.xpose.msra.mxu0 0
      %1917 = vmatprep.subr.bf16.mxu0 0
      %1918 = vmatpush1.bf16.xpose.msra.mxu0 0
      %1919 = vmatprep.subr.bf16.mxu0 0
      %1920 = vmatpush1.bf16.xpose.msra.mxu0 0
      %1921 = vmatprep.subr.bf16.mxu0 0
      %1922 = vmatpush1.bf16.xpose.msra.mxu0 0
      %1923 = vmatprep.subr.bf16.mxu0 0
      %1924 = vmatpush1.bf16.xpose.msra.mxu0 0
      %1925 = vmatprep.subr.bf16.mxu0 0
      %1926 = vmatpush1.bf16.xpose.msra.mxu0 0
      %1927 = vmatprep.subr.bf16.mxu0 0
      %1928 = vmatpush1.bf16.xpose.msra.mxu0 0
      %1929 = vmatprep.subr.bf16.mxu0 0
      %1930 = vmatpush1.bf16.xpose.msra.mxu0 0
      %1931 = vmatprep.subr.bf16.mxu0 0
      %1932 = vmatpush1.bf16.xpose.msra.mxu0 0
      %1933 = vmatprep.subr.bf16.mxu0 0
      %1934 = vmatpush1.bf16.xpose.msra.mxu0 0
      %1935 = vmatprep.subr.bf16.mxu0 0
      %1936 = vmatpush1.bf16.xpose.msra.mxu0 0
      %1937 = vmatprep.subr.bf16.mxu0 0
      %1938 = vmatpush1.bf16.xpose.msra.mxu0 0
      %1939 = vmatprep.subr.bf16.mxu0 0
      %1940 = vmatpush1.bf16.xpose.msra.mxu0 0
      %1941 = vmatprep.subr.bf16.mxu0 0
      %1942 = vmatpush1.bf16.xpose.msra.mxu0 0
      %1943 = vmatprep.mubr.bf16.mxu0 0
      %1944 = vmatmul.mubr.bf16.gmra.mrb[0].mxu0 %v1906
      %v1945 = vpop.f32.mrb[0].mxu0
      %v1946 = vadd.f32 0.0, %v1945
      %v1947 = vpop.f32.mrb[0].mxu0
      %v1948 = vpop.f32.mrb[0].mxu0
      %v1949 = vpop.f32.mrb[0].mxu0
      %1950 = vdwg.mxu0
      %1952 = vrot.lane.b32.xlu0 %v1391, 64
      %v1953 = vpop.permute.xlu0 %1952
      %v1955 = vsel %vm1012, %v1175, 0
      %v1958 = vsel %vm1012, %v1953, 0
      %1960 = vmatprep.subr.bf16.mxu0 0
      %1961 = vmatpush1.bf16.xpose.msra.mxu0 %v1958
      %1962 = vmatprep.subr.bf16.mxu0 0
      %1963 = vmatpush1.bf16.xpose.msra.mxu0 0
      %1964 = vmatprep.subr.bf16.mxu0 0
      %1965 = vmatpush1.bf16.xpose.msra.mxu0 0
      %1966 = vmatprep.subr.bf16.mxu0 0
      %1967 = vmatpush1.bf16.xpose.msra.mxu0 0
      %1968 = vmatprep.subr.bf16.mxu0 0
      %1969 = vmatpush1.bf16.xpose.msra.mxu0 0
      %1970 = vmatprep.subr.bf16.mxu0 0
      %1971 = vmatpush1.bf16.xpose.msra.mxu0 0
      %1972 = vmatprep.subr.bf16.mxu0 0
      %1973 = vmatpush1.bf16.xpose.msra.mxu0 0
      %1974 = vmatprep.subr.bf16.mxu0 0
      %1975 = vmatpush1.bf16.xpose.msra.mxu0 0
      %1976 = vmatprep.subr.bf16.mxu0 0
      %1977 = vmatpush1.bf16.xpose.msra.mxu0 0
      %1978 = vmatprep.subr.bf16.mxu0 0
      %1979 = vmatpush1.bf16.xpose.msra.mxu0 0
      %1980 = vmatprep.subr.bf16.mxu0 0
      %1981 = vmatpush1.bf16.xpose.msra.mxu0 0
      %1982 = vmatprep.subr.bf16.mxu0 0
      %1983 = vmatpush1.bf16.xpose.msra.mxu0 0
      %1984 = vmatprep.subr.bf16.mxu0 0
      %1985 = vmatpush1.bf16.xpose.msra.mxu0 0
      %1986 = vmatprep.subr.bf16.mxu0 0
      %1987 = vmatpush1.bf16.xpose.msra.mxu0 0
      %1988 = vmatprep.subr.bf16.mxu0 0
      %1989 = vmatpush1.bf16.xpose.msra.mxu0 0
      %1990 = vmatprep.subr.bf16.mxu0 0
      %1991 = vmatpush1.bf16.xpose.msra.mxu0 0
      %1992 = vmatprep.mubr.bf16.mxu0 0
      %1993 = vmatmul.mubr.bf16.gmra.mrb[0].mxu0 %v1955
      %v1994 = vpop.f32.mrb[0].mxu0
      %v1995 = vadd.f32 0.0, %v1994
      %v1996 = vpop.f32.mrb[0].mxu0
      %v1997 = vpop.f32.mrb[0].mxu0
      %v1998 = vpop.f32.mrb[0].mxu0
      %1999 = vdwg.mxu0
      %2001 = vrot.lane.b32.xlu0 %v1392, 64
      %v2002 = vpop.permute.xlu0 %2001
      %v2004 = vsel %vm1012, %v1176, 0
      %v2007 = vsel %vm1012, %v2002, 0
      %2009 = vmatprep.subr.bf16.mxu0 0
      %2010 = vmatpush1.bf16.xpose.msra.mxu0 %v2007
      %2011 = vmatprep.subr.bf16.mxu0 0
      %2012 = vmatpush1.bf16.xpose.msra.mxu0 0
      %2013 = vmatprep.subr.bf16.mxu0 0
      %2014 = vmatpush1.bf16.xpose.msra.mxu0 0
      %2015 = vmatprep.subr.bf16.mxu0 0
      %2016 = vmatpush1.bf16.xpose.msra.mxu0 0
      %2017 = vmatprep.subr.bf16.mxu0 0
      %2018 = vmatpush1.bf16.xpose.msra.mxu0 0
      %2019 = vmatprep.subr.bf16.mxu0 0
      %2020 = vmatpush1.bf16.xpose.msra.mxu0 0
      %2021 = vmatprep.subr.bf16.mxu0 0
      %2022 = vmatpush1.bf16.xpose.msra.mxu0 0
      %2023 = vmatprep.subr.bf16.mxu0 0
      %2024 = vmatpush1.bf16.xpose.msra.mxu0 0
      %2025 = vmatprep.subr.bf16.mxu0 0
      %2026 = vmatpush1.bf16.xpose.msra.mxu0 0
      %2027 = vmatprep.subr.bf16.mxu0 0
      %2028 = vmatpush1.bf16.xpose.msra.mxu0 0
      %2029 = vmatprep.subr.bf16.mxu0 0
      %2030 = vmatpush1.bf16.xpose.msra.mxu0 0
      %2031 = vmatprep.subr.bf16.mxu0 0
      %2032 = vmatpush1.bf16.xpose.msra.mxu0 0
      %2033 = vmatprep.subr.bf16.mxu0 0
      %2034 = vmatpush1.bf16.xpose.msra.mxu0 0
      %2035 = vmatprep.subr.bf16.mxu0 0
      %2036 = vmatpush1.bf16.xpose.msra.mxu0 0
      %2037 = vmatprep.subr.bf16.mxu0 0
      %2038 = vmatpush1.bf16.xpose.msra.mxu0 0
      %2039 = vmatprep.subr.bf16.mxu0 0
      %2040 = vmatpush1.bf16.xpose.msra.mxu0 0
      %2041 = vmatprep.mubr.bf16.mxu0 0
      %2042 = vmatmul.mubr.bf16.gmra.mrb[0].mxu0 %v2004
      %v2043 = vpop.f32.mrb[0].mxu0
      %v2044 = vadd.f32 0.0, %v2043
      %v2045 = vpop.f32.mrb[0].mxu0
      %v2046 = vpop.f32.mrb[0].mxu0
      %v2047 = vpop.f32.mrb[0].mxu0
      %2048 = vdwg.mxu0
      %2050 = vrot.lane.b32.xlu0 %v1393, 64
      %v2051 = vpop.permute.xlu0 %2050
      %v2053 = vsel %vm1012, %v1177, 0
      %v2056 = vsel %vm1012, %v2051, 0
      %2058 = vmatprep.subr.bf16.mxu0 0
      %2059 = vmatpush1.bf16.xpose.msra.mxu0 %v2056
      %2060 = vmatprep.subr.bf16.mxu0 0
      %2061 = vmatpush1.bf16.xpose.msra.mxu0 0
      %2062 = vmatprep.subr.bf16.mxu0 0
      %2063 = vmatpush1.bf16.xpose.msra.mxu0 0
      %2064 = vmatprep.subr.bf16.mxu0 0
      %2065 = vmatpush1.bf16.xpose.msra.mxu0 0
      %2066 = vmatprep.subr.bf16.mxu0 0
      %2067 = vmatpush1.bf16.xpose.msra.mxu0 0
      %2068 = vmatprep.subr.bf16.mxu0 0
      %2069 = vmatpush1.bf16.xpose.msra.mxu0 0
      %2070 = vmatprep.subr.bf16.mxu0 0
      %2071 = vmatpush1.bf16.xpose.msra.mxu0 0
      %2072 = vmatprep.subr.bf16.mxu0 0
      %2073 = vmatpush1.bf16.xpose.msra.mxu0 0
      %2074 = vmatprep.subr.bf16.mxu0 0
      %2075 = vmatpush1.bf16.xpose.msra.mxu0 0
      %2076 = vmatprep.subr.bf16.mxu0 0
      %2077 = vmatpush1.bf16.xpose.msra.mxu0 0
      %2078 = vmatprep.subr.bf16.mxu0 0
      %2079 = vmatpush1.bf16.xpose.msra.mxu0 0
      %2080 = vmatprep.subr.bf16.mxu0 0
      %2081 = vmatpush1.bf16.xpose.msra.mxu0 0
      %2082 = vmatprep.subr.bf16.mxu0 0
      %2083 = vmatpush1.bf16.xpose.msra.mxu0 0
      %2084 = vmatprep.subr.bf16.mxu0 0
      %2085 = vmatpush1.bf16.xpose.msra.mxu0 0
      %2086 = vmatprep.subr.bf16.mxu0 0
      %2087 = vmatpush1.bf16.xpose.msra.mxu0 0
      %2088 = vmatprep.subr.bf16.mxu0 0
      %2089 = vmatpush1.bf16.xpose.msra.mxu0 0
      %2090 = vmatprep.mubr.bf16.mxu0 0
      %2091 = vmatmul.mubr.bf16.gmra.mrb[0].mxu0 %v2053
      %v2092 = vpop.f32.mrb[0].mxu0
      %v2093 = vadd.f32 0.0, %v2092
      %v2094 = vpop.f32.mrb[0].mxu0
      %v2095 = vpop.f32.mrb[0].mxu0
      %v2096 = vpop.f32.mrb[0].mxu0
      %2097 = vdwg.mxu0
      %2099 = vrot.lane.b32.xlu0 %v1394, 64
      %v2100 = vpop.permute.xlu0 %2099
      %v2102 = vsel %vm1012, %v1178, 0
      %v2105 = vsel %vm1012, %v2100, 0
      %2107 = vmatprep.subr.bf16.mxu0 0
      %2108 = vmatpush1.bf16.xpose.msra.mxu0 %v2105
      %2109 = vmatprep.subr.bf16.mxu0 0
      %2110 = vmatpush1.bf16.xpose.msra.mxu0 0
      %2111 = vmatprep.subr.bf16.mxu0 0
      %2112 = vmatpush1.bf16.xpose.msra.mxu0 0
      %2113 = vmatprep.subr.bf16.mxu0 0
      %2114 = vmatpush1.bf16.xpose.msra.mxu0 0
      %2115 = vmatprep.subr.bf16.mxu0 0
      %2116 = vmatpush1.bf16.xpose.msra.mxu0 0
      %2117 = vmatprep.subr.bf16.mxu0 0
      %2118 = vmatpush1.bf16.xpose.msra.mxu0 0
      %2119 = vmatprep.subr.bf16.mxu0 0
      %2120 = vmatpush1.bf16.xpose.msra.mxu0 0
      %2121 = vmatprep.subr.bf16.mxu0 0
      %2122 = vmatpush1.bf16.xpose.msra.mxu0 0
      %2123 = vmatprep.subr.bf16.mxu0 0
      %2124 = vmatpush1.bf16.xpose.msra.mxu0 0
      %2125 = vmatprep.subr.bf16.mxu0 0
      %2126 = vmatpush1.bf16.xpose.msra.mxu0 0
      %2127 = vmatprep.subr.bf16.mxu0 0
      %2128 = vmatpush1.bf16.xpose.msra.mxu0 0
      %2129 = vmatprep.subr.bf16.mxu0 0
      %2130 = vmatpush1.bf16.xpose.msra.mxu0 0
      %2131 = vmatprep.subr.bf16.mxu0 0
      %2132 = vmatpush1.bf16.xpose.msra.mxu0 0
      %2133 = vmatprep.subr.bf16.mxu0 0
      %2134 = vmatpush1.bf16.xpose.msra.mxu0 0
      %2135 = vmatprep.subr.bf16.mxu0 0
      %2136 = vmatpush1.bf16.xpose.msra.mxu0 0
      %2137 = vmatprep.subr.bf16.mxu0 0
      %2138 = vmatpush1.bf16.xpose.msra.mxu0 0
      %2139 = vmatprep.mubr.bf16.mxu0 0
      %2140 = vmatmul.mubr.bf16.gmra.mrb[0].mxu0 %v2102
      %v2141 = vpop.f32.mrb[0].mxu0
      %v2142 = vadd.f32 0.0, %v2141
      %v2143 = vpop.f32.mrb[0].mxu0
      %v2144 = vpop.f32.mrb[0].mxu0
      %v2145 = vpop.f32.mrb[0].mxu0
      %2146 = vdwg.mxu0
      %2148 = vrot.lane.b32.xlu0 %v1395, 64
      %v2149 = vpop.permute.xlu0 %2148
      %v2151 = vsel %vm1012, %v1179, 0
      %v2154 = vsel %vm1012, %v2149, 0
      %2156 = vmatprep.subr.bf16.mxu0 0
      %2157 = vmatpush1.bf16.xpose.msra.mxu0 %v2154
      %2158 = vmatprep.subr.bf16.mxu0 0
      %2159 = vmatpush1.bf16.xpose.msra.mxu0 0
      %2160 = vmatprep.subr.bf16.mxu0 0
      %2161 = vmatpush1.bf16.xpose.msra.mxu0 0
      %2162 = vmatprep.subr.bf16.mxu0 0
      %2163 = vmatpush1.bf16.xpose.msra.mxu0 0
      %2164 = vmatprep.subr.bf16.mxu0 0
      %2165 = vmatpush1.bf16.xpose.msra.mxu0 0
      %2166 = vmatprep.subr.bf16.mxu0 0
      %2167 = vmatpush1.bf16.xpose.msra.mxu0 0
      %2168 = vmatprep.subr.bf16.mxu0 0
      %2169 = vmatpush1.bf16.xpose.msra.mxu0 0
      %2170 = vmatprep.subr.bf16.mxu0 0
      %2171 = vmatpush1.bf16.xpose.msra.mxu0 0
      %2172 = vmatprep.subr.bf16.mxu0 0
      %2173 = vmatpush1.bf16.xpose.msra.mxu0 0
      %2174 = vmatprep.subr.bf16.mxu0 0
      %2175 = vmatpush1.bf16.xpose.msra.mxu0 0
      %2176 = vmatprep.subr.bf16.mxu0 0
      %2177 = vmatpush1.bf16.xpose.msra.mxu0 0
      %2178 = vmatprep.subr.bf16.mxu0 0
      %2179 = vmatpush1.bf16.xpose.msra.mxu0 0
      %2180 = vmatprep.subr.bf16.mxu0 0
      %2181 = vmatpush1.bf16.xpose.msra.mxu0 0
      %2182 = vmatprep.subr.bf16.mxu0 0
      %2183 = vmatpush1.bf16.xpose.msra.mxu0 0
      %2184 = vmatprep.subr.bf16.mxu0 0
      %2185 = vmatpush1.bf16.xpose.msra.mxu0 0
      %2186 = vmatprep.subr.bf16.mxu0 0
      %2187 = vmatpush1.bf16.xpose.msra.mxu0 0
      %2188 = vmatprep.mubr.bf16.mxu0 0
      %2189 = vmatmul.mubr.bf16.gmra.mrb[0].mxu0 %v2151
      %v2190 = vpop.f32.mrb[0].mxu0
      %v2191 = vadd.f32 0.0, %v2190
      %v2192 = vpop.f32.mrb[0].mxu0
      %v2193 = vpop.f32.mrb[0].mxu0
      %v2194 = vpop.f32.mrb[0].mxu0
      %2195 = vdwg.mxu0
      %vm2196 = vcmask 64512
      %v2197 = vsel %vm2196, %v1456, -inf
      %2198 = vmax.xlane.f32.xlu0 %v2197
      %v2199 = vpop.xlane.xlu0 %2198
      %v2200 = vsel %vm2196, %v1505, -inf
      %2201 = vmax.xlane.f32.xlu0 %v2200
      %v2202 = vpop.xlane.xlu0 %2201
      %v2203 = vsel %vm2196, %v1554, -inf
      %2204 = vmax.xlane.f32.xlu0 %v2203
      %v2205 = vpop.xlane.xlu0 %2204
      %v2206 = vsel %vm2196, %v1603, -inf
      %2207 = vmax.xlane.f32.xlu0 %v2206
      %v2208 = vpop.xlane.xlu0 %2207
      %v2209 = vsel %vm2196, %v1652, -inf
      %2210 = vmax.xlane.f32.xlu0 %v2209
      %v2211 = vpop.xlane.xlu0 %2210
      %v2212 = vsel %vm2196, %v1701, -inf
      %2213 = vmax.xlane.f32.xlu0 %v2212
      %v2214 = vpop.xlane.xlu0 %2213
      %v2215 = vsel %vm2196, %v1750, -inf
      %2216 = vmax.xlane.f32.xlu0 %v2215
      %v2217 = vpop.xlane.xlu0 %2216
      %v2218 = vsel %vm2196, %v1799, -inf
      %2219 = vmax.xlane.f32.xlu0 %v2218
      %v2220 = vpop.xlane.xlu0 %2219
      %v2221 = vsel %vm2196, %v1848, -inf
      %2222 = vmax.xlane.f32.xlu0 %v2221
      %v2223 = vpop.xlane.xlu0 %2222
      %v2224 = vsel %vm2196, %v1897, -inf
      %2225 = vmax.xlane.f32.xlu0 %v2224
      %v2226 = vpop.xlane.xlu0 %2225
      %v2227 = vsel %vm2196, %v1946, -inf
      %2228 = vmax.xlane.f32.xlu0 %v2227
      %v2229 = vpop.xlane.xlu0 %2228
      %v2230 = vsel %vm2196, %v1995, -inf
      %2231 = vmax.xlane.f32.xlu0 %v2230
      %v2232 = vpop.xlane.xlu0 %2231
      %v2233 = vsel %vm2196, %v2044, -inf
      %2234 = vmax.xlane.f32.xlu0 %v2233
      %v2235 = vpop.xlane.xlu0 %2234
      %v2236 = vsel %vm2196, %v2093, -inf
      %2237 = vmax.xlane.f32.xlu0 %v2236
      %v2238 = vpop.xlane.xlu0 %2237
      %v2239 = vsel %vm2196, %v2142, -inf
      %2240 = vmax.xlane.f32.xlu0 %v2239
      %v2241 = vpop.xlane.xlu0 %2240
      %v2242 = vsel %vm2196, %v2191, -inf
      %2243 = vmax.xlane.f32.xlu0 %v2242
      %v2244 = vpop.xlane.xlu0 %2243
      %v2245 = vsub.f32 %v1456, %v2199
      %v2246 = vsub.f32 %v1505, %v2202
      %v2247 = vsub.f32 %v1554, %v2205
      %v2248 = vsub.f32 %v1603, %v2208
      %v2249 = vsub.f32 %v1652, %v2211
      %v2250 = vsub.f32 %v1701, %v2214
      %v2251 = vsub.f32 %v1750, %v2217
      %v2252 = vsub.f32 %v1799, %v2220
      %v2253 = vsub.f32 %v1848, %v2223
      %v2254 = vsub.f32 %v1897, %v2226
      %v2255 = vsub.f32 %v1946, %v2229
      %v2256 = vsub.f32 %v1995, %v2232
      %v2257 = vsub.f32 %v2044, %v2235
      %v2258 = vsub.f32 %v2093, %v2238
      %v2259 = vsub.f32 %v2142, %v2241
      %v2260 = vsub.f32 %v2191, %v2244
      %v2261 = vmul.f32 %v2245, 1.442695
      %v2262 = vpow.pop %v2261
      %v2263 = vmul.f32 %v2246, 1.442695
      %v2264 = vpow.pop %v2263
      %v2265 = vmul.f32 %v2247, 1.442695
      %v2266 = vpow.pop %v2265
      %v2267 = vmul.f32 %v2248, 1.442695
      %v2268 = vpow.pop %v2267
      %v2269 = vmul.f32 %v2249, 1.442695
      %v2270 = vpow.pop %v2269
      %v2271 = vmul.f32 %v2250, 1.442695
      %v2272 = vpow.pop %v2271
      %v2273 = vmul.f32 %v2251, 1.442695
      %v2274 = vpow.pop %v2273
      %v2275 = vmul.f32 %v2252, 1.442695
      %v2276 = vpow.pop %v2275
      %v2277 = vmul.f32 %v2253, 1.442695
      %v2278 = vpow.pop %v2277
      %v2279 = vmul.f32 %v2254, 1.442695
      %v2280 = vpow.pop %v2279
      %v2281 = vmul.f32 %v2255, 1.442695
      %v2282 = vpow.pop %v2281
      %v2283 = vmul.f32 %v2256, 1.442695
      %v2284 = vpow.pop %v2283
      %v2285 = vmul.f32 %v2257, 1.442695
      %v2286 = vpow.pop %v2285
      %v2287 = vmul.f32 %v2258, 1.442695
      %v2288 = vpow.pop %v2287
      %v2289 = vmul.f32 %v2259, 1.442695
      %v2290 = vpow.pop %v2289
      %v2291 = vmul.f32 %v2260, 1.442695
      %v2292 = vpow.pop %v2291
      %v2293 = vsel %vm2196, %v2262, 0.0
      %2294 = vadd.xlane.f32.xlu0 %v2293
      %v2295 = vpop.xlane.xlu0 %2294
      %v2296 = vsel %vm2196, %v2264, 0.0
      %2297 = vadd.xlane.f32.xlu0 %v2296
      %v2298 = vpop.xlane.xlu0 %2297
      %v2299 = vsel %vm2196, %v2266, 0.0
      %2300 = vadd.xlane.f32.xlu0 %v2299
      %v2301 = vpop.xlane.xlu0 %2300
      %v2302 = vsel %vm2196, %v2268, 0.0
      %2303 = vadd.xlane.f32.xlu0 %v2302
      %v2304 = vpop.xlane.xlu0 %2303
      %v2305 = vsel %vm2196, %v2270, 0.0
      %2306 = vadd.xlane.f32.xlu0 %v2305
      %v2307 = vpop.xlane.xlu0 %2306
      %v2308 = vsel %vm2196, %v2272, 0.0
      %2309 = vadd.xlane.f32.xlu0 %v2308
      %v2310 = vpop.xlane.xlu0 %2309
      %v2311 = vsel %vm2196, %v2274, 0.0
      %2312 = vadd.xlane.f32.xlu0 %v2311
      %v2313 = vpop.xlane.xlu0 %2312
      %v2314 = vsel %vm2196, %v2276, 0.0
      %2315 = vadd.xlane.f32.xlu0 %v2314
      %v2316 = vpop.xlane.xlu0 %2315
      %v2317 = vsel %vm2196, %v2278, 0.0
      %2318 = vadd.xlane.f32.xlu0 %v2317
      %v2319 = vpop.xlane.xlu0 %2318
      %v2320 = vsel %vm2196, %v2280, 0.0
      %2321 = vadd.xlane.f32.xlu0 %v2320
      %v2322 = vpop.xlane.xlu0 %2321
      %v2323 = vsel %vm2196, %v2282, 0.0
      %2324 = vadd.xlane.f32.xlu0 %v2323
      %v2325 = vpop.xlane.xlu0 %2324
      %v2326 = vsel %vm2196, %v2284, 0.0
      %2327 = vadd.xlane.f32.xlu0 %v2326
      %v2328 = vpop.xlane.xlu0 %2327
      %v2329 = vsel %vm2196, %v2286, 0.0
      %2330 = vadd.xlane.f32.xlu0 %v2329
      %v2331 = vpop.xlane.xlu0 %2330
      %v2332 = vsel %vm2196, %v2288, 0.0
      %2333 = vadd.xlane.f32.xlu0 %v2332
      %v2334 = vpop.xlane.xlu0 %2333
      %v2335 = vsel %vm2196, %v2290, 0.0
      %2336 = vadd.xlane.f32.xlu0 %v2335
      %v2337 = vpop.xlane.xlu0 %2336
      %v2338 = vsel %vm2196, %v2292, 0.0
      %2339 = vadd.xlane.f32.xlu0 %v2338
      %v2340 = vpop.xlane.xlu0 %2339
      %v2341 = vrcp.pop %v2295
      %v2342 = vrcp.pop %v2298
      %v2343 = vrcp.pop %v2301
      %v2344 = vrcp.pop %v2304
      %v2345 = vrcp.pop %v2307
      %v2346 = vrcp.pop %v2310
      %v2347 = vrcp.pop %v2313
      %v2348 = vrcp.pop %v2316
      %v2349 = vrcp.pop %v2319
      %v2350 = vrcp.pop %v2322
      %v2351 = vrcp.pop %v2325
      %v2352 = vrcp.pop %v2328
      %v2353 = vrcp.pop %v2331
      %v2354 = vrcp.pop %v2334
      %v2355 = vrcp.pop %v2337
      %v2356 = vrcp.pop %v2340
      %v2357 = vmul.f32 %v2262, %v2341
      %v2358 = vmul.f32 %v2264, %v2342
      %v2359 = vmul.f32 %v2266, %v2343
      %v2360 = vmul.f32 %v2268, %v2344
      %v2361 = vmul.f32 %v2270, %v2345
      %v2362 = vmul.f32 %v2272, %v2346
      %v2363 = vmul.f32 %v2274, %v2347
      %v2364 = vmul.f32 %v2276, %v2348
      %v2365 = vmul.f32 %v2278, %v2349
      %v2366 = vmul.f32 %v2280, %v2350
      %v2367 = vmul.f32 %v2282, %v2351
      %v2368 = vmul.f32 %v2284, %v2352
      %v2369 = vmul.f32 %v2286, %v2353
      %v2370 = vmul.f32 %v2288, %v2354
      %v2371 = vmul.f32 %v2290, %v2355
      %v2372 = vmul.f32 %v2292, %v2356
      %v2373 = vpack.c.bf16 %v2357, %v2357
      %v2374 = vpack.c.bf16 %v2358, %v2358
      %v2375 = vpack.c.bf16 %v2359, %v2359
      %v2376 = vpack.c.bf16 %v2360, %v2360
      %v2377 = vpack.c.bf16 %v2361, %v2361
      %v2378 = vpack.c.bf16 %v2362, %v2362
      %v2379 = vpack.c.bf16 %v2363, %v2363
      %v2380 = vpack.c.bf16 %v2364, %v2364
      %v2381 = vpack.c.bf16 %v2365, %v2365
      %v2382 = vpack.c.bf16 %v2366, %v2366
      %v2383 = vpack.c.bf16 %v2367, %v2367
      %v2384 = vpack.c.bf16 %v2368, %v2368
      %v2385 = vpack.c.bf16 %v2369, %v2369
      %v2386 = vpack.c.bf16 %v2370, %v2370
      %v2387 = vpack.c.bf16 %v2371, %v2371
      %v2388 = vpack.c.bf16 %v2372, %v2372
      %v2390 = vsel %vm2196, %v2373, 0
      %vm2392 = vcmask 1043456
      %v2394 = vsel %vm2392, %v1396, 0
      %2396 = vmatprep.subr.bf16.mxu0 0
      %2397 = vmatpush1.bf16.msra.mxu0 %v2394
      %2398 = vmatprep.subr.bf16.mxu0 0
      %2399 = vmatpush1.bf16.msra.mxu0 0
      %2400 = vmatprep.subr.bf16.mxu0 0
      %2401 = vmatpush1.bf16.msra.mxu0 0
      %2402 = vmatprep.subr.bf16.mxu0 0
      %2403 = vmatpush1.bf16.msra.mxu0 0
      %2404 = vmatprep.subr.bf16.mxu0 0
      %2405 = vmatpush1.bf16.msra.mxu0 0
      %2406 = vmatprep.subr.bf16.mxu0 0
      %2407 = vmatpush1.bf16.msra.mxu0 0
      %2408 = vmatprep.subr.bf16.mxu0 0
      %2409 = vmatpush1.bf16.msra.mxu0 0
      %2410 = vmatprep.subr.bf16.mxu0 0
      %2411 = vmatpush1.bf16.msra.mxu0 0
      %2412 = vmatprep.subr.bf16.mxu0 0
      %2413 = vmatpush1.bf16.msra.mxu0 0
      %2414 = vmatprep.subr.bf16.mxu0 0
      %2415 = vmatpush1.bf16.msra.mxu0 0
      %2416 = vmatprep.subr.bf16.mxu0 0
      %2417 = vmatpush1.bf16.msra.mxu0 0
      %2418 = vmatprep.subr.bf16.mxu0 0
      %2419 = vmatpush1.bf16.msra.mxu0 0
      %2420 = vmatprep.subr.bf16.mxu0 0
      %2421 = vmatpush1.bf16.msra.mxu0 0
      %2422 = vmatprep.subr.bf16.mxu0 0
      %2423 = vmatpush1.bf16.msra.mxu0 0
      %2424 = vmatprep.subr.bf16.mxu0 0
      %2425 = vmatpush1.bf16.msra.mxu0 0
      %2426 = vmatprep.subr.bf16.mxu0 0
      %2427 = vmatpush1.bf16.msra.mxu0 0
      %2428 = vmatprep.mubr.bf16.mxu0 0
      %2429 = vmatmul.mubr.bf16.gmra.mrb[0].mxu0 %v2390
      %v2430 = vpop.f32.mrb[0].mxu0
      %v2431 = vadd.f32 0.0, %v2430
      %v2432 = vpop.f32.mrb[0].mxu0
      %v2433 = vpop.f32.mrb[0].mxu0
      %v2434 = vpop.f32.mrb[0].mxu0
      %2435 = vdwg.mxu0
      %v2437 = vsel %vm2196, %v2374, 0
      %v2440 = vsel %vm2392, %v1397, 0
      %2442 = vmatprep.subr.bf16.mxu0 0
      %2443 = vmatpush1.bf16.msra.mxu0 %v2440
      %2444 = vmatprep.subr.bf16.mxu0 0
      %2445 = vmatpush1.bf16.msra.mxu0 0
      %2446 = vmatprep.subr.bf16.mxu0 0
      %2447 = vmatpush1.bf16.msra.mxu0 0
      %2448 = vmatprep.subr.bf16.mxu0 0
      %2449 = vmatpush1.bf16.msra.mxu0 0
      %2450 = vmatprep.subr.bf16.mxu0 0
      %2451 = vmatpush1.bf16.msra.mxu0 0
      %2452 = vmatprep.subr.bf16.mxu0 0
      %2453 = vmatpush1.bf16.msra.mxu0 0
      %2454 = vmatprep.subr.bf16.mxu0 0
      %2455 = vmatpush1.bf16.msra.mxu0 0
      %2456 = vmatprep.subr.bf16.mxu0 0
      %2457 = vmatpush1.bf16.msra.mxu0 0
      %2458 = vmatprep.subr.bf16.mxu0 0
      %2459 = vmatpush1.bf16.msra.mxu0 0
      %2460 = vmatprep.subr.bf16.mxu0 0
      %2461 = vmatpush1.bf16.msra.mxu0 0
      %2462 = vmatprep.subr.bf16.mxu0 0
      %2463 = vmatpush1.bf16.msra.mxu0 0
      %2464 = vmatprep.subr.bf16.mxu0 0
      %2465 = vmatpush1.bf16.msra.mxu0 0
      %2466 = vmatprep.subr.bf16.mxu0 0
      %2467 = vmatpush1.bf16.msra.mxu0 0
      %2468 = vmatprep.subr.bf16.mxu0 0
      %2469 = vmatpush1.bf16.msra.mxu0 0
      %2470 = vmatprep.subr.bf16.mxu0 0
      %2471 = vmatpush1.bf16.msra.mxu0 0
      %2472 = vmatprep.subr.bf16.mxu0 0
      %2473 = vmatpush1.bf16.msra.mxu0 0
      %2474 = vmatprep.mubr.bf16.mxu0 0
      %2475 = vmatmul.mubr.bf16.gmra.mrb[0].mxu0 %v2437
      %v2476 = vpop.f32.mrb[0].mxu0
      %v2477 = vadd.f32 0.0, %v2476
      %v2478 = vpop.f32.mrb[0].mxu0
      %v2479 = vpop.f32.mrb[0].mxu0
      %v2480 = vpop.f32.mrb[0].mxu0
      %2481 = vdwg.mxu0
      %v2483 = vsel %vm2196, %v2375, 0
      %v2486 = vsel %vm2392, %v1398, 0
      %2488 = vmatprep.subr.bf16.mxu0 0
      %2489 = vmatpush1.bf16.msra.mxu0 %v2486
      %2490 = vmatprep.subr.bf16.mxu0 0
      %2491 = vmatpush1.bf16.msra.mxu0 0
      %2492 = vmatprep.subr.bf16.mxu0 0
      %2493 = vmatpush1.bf16.msra.mxu0 0
      %2494 = vmatprep.subr.bf16.mxu0 0
      %2495 = vmatpush1.bf16.msra.mxu0 0
      %2496 = vmatprep.subr.bf16.mxu0 0
      %2497 = vmatpush1.bf16.msra.mxu0 0
      %2498 = vmatprep.subr.bf16.mxu0 0
      %2499 = vmatpush1.bf16.msra.mxu0 0
      %2500 = vmatprep.subr.bf16.mxu0 0
      %2501 = vmatpush1.bf16.msra.mxu0 0
      %2502 = vmatprep.subr.bf16.mxu0 0
      %2503 = vmatpush1.bf16.msra.mxu0 0
      %2504 = vmatprep.subr.bf16.mxu0 0
      %2505 = vmatpush1.bf16.msra.mxu0 0
      %2506 = vmatprep.subr.bf16.mxu0 0
      %2507 = vmatpush1.bf16.msra.mxu0 0
      %2508 = vmatprep.subr.bf16.mxu0 0
      %2509 = vmatpush1.bf16.msra.mxu0 0
      %2510 = vmatprep.subr.bf16.mxu0 0
      %2511 = vmatpush1.bf16.msra.mxu0 0
      %2512 = vmatprep.subr.bf16.mxu0 0
      %2513 = vmatpush1.bf16.msra.mxu0 0
      %2514 = vmatprep.subr.bf16.mxu0 0
      %2515 = vmatpush1.bf16.msra.mxu0 0
      %2516 = vmatprep.subr.bf16.mxu0 0
      %2517 = vmatpush1.bf16.msra.mxu0 0
      %2518 = vmatprep.subr.bf16.mxu0 0
      %2519 = vmatpush1.bf16.msra.mxu0 0
      %2520 = vmatprep.mubr.bf16.mxu0 0
      %2521 = vmatmul.mubr.bf16.gmra.mrb[0].mxu0 %v2483
      %v2522 = vpop.f32.mrb[0].mxu0
      %v2523 = vadd.f32 0.0, %v2522
      %v2524 = vpop.f32.mrb[0].mxu0
      %v2525 = vpop.f32.mrb[0].mxu0
      %v2526 = vpop.f32.mrb[0].mxu0
      %2527 = vdwg.mxu0
      %v2529 = vsel %vm2196, %v2376, 0
      %v2532 = vsel %vm2392, %v1399, 0
      %2534 = vmatprep.subr.bf16.mxu0 0
      %2535 = vmatpush1.bf16.msra.mxu0 %v2532
      %2536 = vmatprep.subr.bf16.mxu0 0
      %2537 = vmatpush1.bf16.msra.mxu0 0
      %2538 = vmatprep.subr.bf16.mxu0 0
      %2539 = vmatpush1.bf16.msra.mxu0 0
      %2540 = vmatprep.subr.bf16.mxu0 0
      %2541 = vmatpush1.bf16.msra.mxu0 0
      %2542 = vmatprep.subr.bf16.mxu0 0
      %2543 = vmatpush1.bf16.msra.mxu0 0
      %2544 = vmatprep.subr.bf16.mxu0 0
      %2545 = vmatpush1.bf16.msra.mxu0 0
      %2546 = vmatprep.subr.bf16.mxu0 0
      %2547 = vmatpush1.bf16.msra.mxu0 0
      %2548 = vmatprep.subr.bf16.mxu0 0
      %2549 = vmatpush1.bf16.msra.mxu0 0
      %2550 = vmatprep.subr.bf16.mxu0 0
      %2551 = vmatpush1.bf16.msra.mxu0 0
      %2552 = vmatprep.subr.bf16.mxu0 0
      %2553 = vmatpush1.bf16.msra.mxu0 0
      %2554 = vmatprep.subr.bf16.mxu0 0
      %2555 = vmatpush1.bf16.msra.mxu0 0
      %2556 = vmatprep.subr.bf16.mxu0 0
      %2557 = vmatpush1.bf16.msra.mxu0 0
      %2558 = vmatprep.subr.bf16.mxu0 0
      %2559 = vmatpush1.bf16.msra.mxu0 0
      %2560 = vmatprep.subr.bf16.mxu0 0
      %2561 = vmatpush1.bf16.msra.mxu0 0
      %2562 = vmatprep.subr.bf16.mxu0 0
      %2563 = vmatpush1.bf16.msra.mxu0 0
      %2564 = vmatprep.subr.bf16.mxu0 0
      %2565 = vmatpush1.bf16.msra.mxu0 0
      %2566 = vmatprep.mubr.bf16.mxu0 0
      %2567 = vmatmul.mubr.bf16.gmra.mrb[0].mxu0 %v2529
      %v2568 = vpop.f32.mrb[0].mxu0
      %v2569 = vadd.f32 0.0, %v2568
      %v2570 = vpop.f32.mrb[0].mxu0
      %v2571 = vpop.f32.mrb[0].mxu0
      %v2572 = vpop.f32.mrb[0].mxu0
      %2573 = vdwg.mxu0
      %v2575 = vsel %vm2196, %v2377, 0
      %v2578 = vsel %vm2392, %v1400, 0
      %2580 = vmatprep.subr.bf16.mxu0 0
      %2581 = vmatpush1.bf16.msra.mxu0 %v2578
      %2582 = vmatprep.subr.bf16.mxu0 0
      %2583 = vmatpush1.bf16.msra.mxu0 0
      %2584 = vmatprep.subr.bf16.mxu0 0
      %2585 = vmatpush1.bf16.msra.mxu0 0
      %2586 = vmatprep.subr.bf16.mxu0 0
      %2587 = vmatpush1.bf16.msra.mxu0 0
      %2588 = vmatprep.subr.bf16.mxu0 0
      %2589 = vmatpush1.bf16.msra.mxu0 0
      %2590 = vmatprep.subr.bf16.mxu0 0
      %2591 = vmatpush1.bf16.msra.mxu0 0
      %2592 = vmatprep.subr.bf16.mxu0 0
      %2593 = vmatpush1.bf16.msra.mxu0 0
      %2594 = vmatprep.subr.bf16.mxu0 0
      %2595 = vmatpush1.bf16.msra.mxu0 0
      %2596 = vmatprep.subr.bf16.mxu0 0
      %2597 = vmatpush1.bf16.msra.mxu0 0
      %2598 = vmatprep.subr.bf16.mxu0 0
      %2599 = vmatpush1.bf16.msra.mxu0 0
      %2600 = vmatprep.subr.bf16.mxu0 0
      %2601 = vmatpush1.bf16.msra.mxu0 0
      %2602 = vmatprep.subr.bf16.mxu0 0
      %2603 = vmatpush1.bf16.msra.mxu0 0
      %2604 = vmatprep.subr.bf16.mxu0 0
      %2605 = vmatpush1.bf16.msra.mxu0 0
      %2606 = vmatprep.subr.bf16.mxu0 0
      %2607 = vmatpush1.bf16.msra.mxu0 0
      %2608 = vmatprep.subr.bf16.mxu0 0
      %2609 = vmatpush1.bf16.msra.mxu0 0
      %2610 = vmatprep.subr.bf16.mxu0 0
      %2611 = vmatpush1.bf16.msra.mxu0 0
      %2612 = vmatprep.mubr.bf16.mxu0 0
      %2613 = vmatmul.mubr.bf16.gmra.mrb[0].mxu0 %v2575
      %v2614 = vpop.f32.mrb[0].mxu0
      %v2615 = vadd.f32 0.0, %v2614
      %v2616 = vpop.f32.mrb[0].mxu0
      %v2617 = vpop.f32.mrb[0].mxu0
      %v2618 = vpop.f32.mrb[0].mxu0
      %2619 = vdwg.mxu0
      %v2621 = vsel %vm2196, %v2378, 0
      %v2624 = vsel %vm2392, %v1401, 0
      %2626 = vmatprep.subr.bf16.mxu0 0
      %2627 = vmatpush1.bf16.msra.mxu0 %v2624
      %2628 = vmatprep.subr.bf16.mxu0 0
      %2629 = vmatpush1.bf16.msra.mxu0 0
      %2630 = vmatprep.subr.bf16.mxu0 0
      %2631 = vmatpush1.bf16.msra.mxu0 0
      %2632 = vmatprep.subr.bf16.mxu0 0
      %2633 = vmatpush1.bf16.msra.mxu0 0
      %2634 = vmatprep.subr.bf16.mxu0 0
      %2635 = vmatpush1.bf16.msra.mxu0 0
      %2636 = vmatprep.subr.bf16.mxu0 0
      %2637 = vmatpush1.bf16.msra.mxu0 0
      %2638 = vmatprep.subr.bf16.mxu0 0
      %2639 = vmatpush1.bf16.msra.mxu0 0
      %2640 = vmatprep.subr.bf16.mxu0 0
      %2641 = vmatpush1.bf16.msra.mxu0 0
      %2642 = vmatprep.subr.bf16.mxu0 0
      %2643 = vmatpush1.bf16.msra.mxu0 0
      %2644 = vmatprep.subr.bf16.mxu0 0
      %2645 = vmatpush1.bf16.msra.mxu0 0
      %2646 = vmatprep.subr.bf16.mxu0 0
      %2647 = vmatpush1.bf16.msra.mxu0 0
      %2648 = vmatprep.subr.bf16.mxu0 0
      %2649 = vmatpush1.bf16.msra.mxu0 0
      %2650 = vmatprep.subr.bf16.mxu0 0
      %2651 = vmatpush1.bf16.msra.mxu0 0
      %2652 = vmatprep.subr.bf16.mxu0 0
      %2653 = vmatpush1.bf16.msra.mxu0 0
      %2654 = vmatprep.subr.bf16.mxu0 0
      %2655 = vmatpush1.bf16.msra.mxu0 0
      %2656 = vmatprep.subr.bf16.mxu0 0
      %2657 = vmatpush1.bf16.msra.mxu0 0
      %2658 = vmatprep.mubr.bf16.mxu0 0
      %2659 = vmatmul.mubr.bf16.gmra.mrb[0].mxu0 %v2621
      %v2660 = vpop.f32.mrb[0].mxu0
      %v2661 = vadd.f32 0.0, %v2660
      %v2662 = vpop.f32.mrb[0].mxu0
      %v2663 = vpop.f32.mrb[0].mxu0
      %v2664 = vpop.f32.mrb[0].mxu0
      %2665 = vdwg.mxu0
      %v2667 = vsel %vm2196, %v2379, 0
      %v2670 = vsel %vm2392, %v1402, 0
      %2672 = vmatprep.subr.bf16.mxu0 0
      %2673 = vmatpush1.bf16.msra.mxu0 %v2670
      %2674 = vmatprep.subr.bf16.mxu0 0
      %2675 = vmatpush1.bf16.msra.mxu0 0
      %2676 = vmatprep.subr.bf16.mxu0 0
      %2677 = vmatpush1.bf16.msra.mxu0 0
      %2678 = vmatprep.subr.bf16.mxu0 0
      %2679 = vmatpush1.bf16.msra.mxu0 0
      %2680 = vmatprep.subr.bf16.mxu0 0
      %2681 = vmatpush1.bf16.msra.mxu0 0
      %2682 = vmatprep.subr.bf16.mxu0 0
      %2683 = vmatpush1.bf16.msra.mxu0 0
      %2684 = vmatprep.subr.bf16.mxu0 0
      %2685 = vmatpush1.bf16.msra.mxu0 0
      %2686 = vmatprep.subr.bf16.mxu0 0
      %2687 = vmatpush1.bf16.msra.mxu0 0
      %2688 = vmatprep.subr.bf16.mxu0 0
      %2689 = vmatpush1.bf16.msra.mxu0 0
      %2690 = vmatprep.subr.bf16.mxu0 0
      %2691 = vmatpush1.bf16.msra.mxu0 0
      %2692 = vmatprep.subr.bf16.mxu0 0
      %2693 = vmatpush1.bf16.msra.mxu0 0
      %2694 = vmatprep.subr.bf16.mxu0 0
      %2695 = vmatpush1.bf16.msra.mxu0 0
      %2696 = vmatprep.subr.bf16.mxu0 0
      %2697 = vmatpush1.bf16.msra.mxu0 0
      %2698 = vmatprep.subr.bf16.mxu0 0
      %2699 = vmatpush1.bf16.msra.mxu0 0
      %2700 = vmatprep.subr.bf16.mxu0 0
      %2701 = vmatpush1.bf16.msra.mxu0 0
      %2702 = vmatprep.subr.bf16.mxu0 0
      %2703 = vmatpush1.bf16.msra.mxu0 0
      %2704 = vmatprep.mubr.bf16.mxu0 0
      %2705 = vmatmul.mubr.bf16.gmra.mrb[0].mxu0 %v2667
      %v2706 = vpop.f32.mrb[0].mxu0
      %v2707 = vadd.f32 0.0, %v2706
      %v2708 = vpop.f32.mrb[0].mxu0
      %v2709 = vpop.f32.mrb[0].mxu0
      %v2710 = vpop.f32.mrb[0].mxu0
      %2711 = vdwg.mxu0
      %v2713 = vsel %vm2196, %v2380, 0
      %v2716 = vsel %vm2392, %v1403, 0
      %2718 = vmatprep.subr.bf16.mxu0 0
      %2719 = vmatpush1.bf16.msra.mxu0 %v2716
      %2720 = vmatprep.subr.bf16.mxu0 0
      %2721 = vmatpush1.bf16.msra.mxu0 0
      %2722 = vmatprep.subr.bf16.mxu0 0
      %2723 = vmatpush1.bf16.msra.mxu0 0
      %2724 = vmatprep.subr.bf16.mxu0 0
      %2725 = vmatpush1.bf16.msra.mxu0 0
      %2726 = vmatprep.subr.bf16.mxu0 0
      %2727 = vmatpush1.bf16.msra.mxu0 0
      %2728 = vmatprep.subr.bf16.mxu0 0
      %2729 = vmatpush1.bf16.msra.mxu0 0
      %2730 = vmatprep.subr.bf16.mxu0 0
      %2731 = vmatpush1.bf16.msra.mxu0 0
      %2732 = vmatprep.subr.bf16.mxu0 0
      %2733 = vmatpush1.bf16.msra.mxu0 0
      %2734 = vmatprep.subr.bf16.mxu0 0
      %2735 = vmatpush1.bf16.msra.mxu0 0
      %2736 = vmatprep.subr.bf16.mxu0 0
      %2737 = vmatpush1.bf16.msra.mxu0 0
      %2738 = vmatprep.subr.bf16.mxu0 0
      %2739 = vmatpush1.bf16.msra.mxu0 0
      %2740 = vmatprep.subr.bf16.mxu0 0
      %2741 = vmatpush1.bf16.msra.mxu0 0
      %2742 = vmatprep.subr.bf16.mxu0 0
      %2743 = vmatpush1.bf16.msra.mxu0 0
      %2744 = vmatprep.subr.bf16.mxu0 0
      %2745 = vmatpush1.bf16.msra.mxu0 0
      %2746 = vmatprep.subr.bf16.mxu0 0
      %2747 = vmatpush1.bf16.msra.mxu0 0
      %2748 = vmatprep.subr.bf16.mxu0 0
      %2749 = vmatpush1.bf16.msra.mxu0 0
      %2750 = vmatprep.mubr.bf16.mxu0 0
      %2751 = vmatmul.mubr.bf16.gmra.mrb[0].mxu0 %v2713
      %v2752 = vpop.f32.mrb[0].mxu0
      %v2753 = vadd.f32 0.0, %v2752
      %v2754 = vpop.f32.mrb[0].mxu0
      %v2755 = vpop.f32.mrb[0].mxu0
      %v2756 = vpop.f32.mrb[0].mxu0
      %2757 = vdwg.mxu0
      %v2759 = vsel %vm2196, %v2381, 0
      %v2762 = vsel %vm2392, %v1404, 0
      %2764 = vmatprep.subr.bf16.mxu0 0
      %2765 = vmatpush1.bf16.msra.mxu0 %v2762
      %2766 = vmatprep.subr.bf16.mxu0 0
      %2767 = vmatpush1.bf16.msra.mxu0 0
      %2768 = vmatprep.subr.bf16.mxu0 0
      %2769 = vmatpush1.bf16.msra.mxu0 0
      %2770 = vmatprep.subr.bf16.mxu0 0
      %2771 = vmatpush1.bf16.msra.mxu0 0
      %2772 = vmatprep.subr.bf16.mxu0 0
      %2773 = vmatpush1.bf16.msra.mxu0 0
      %2774 = vmatprep.subr.bf16.mxu0 0
      %2775 = vmatpush1.bf16.msra.mxu0 0
      %2776 = vmatprep.subr.bf16.mxu0 0
      %2777 = vmatpush1.bf16.msra.mxu0 0
      %2778 = vmatprep.subr.bf16.mxu0 0
      %2779 = vmatpush1.bf16.msra.mxu0 0
      %2780 = vmatprep.subr.bf16.mxu0 0
      %2781 = vmatpush1.bf16.msra.mxu0 0
      %2782 = vmatprep.subr.bf16.mxu0 0
      %2783 = vmatpush1.bf16.msra.mxu0 0
      %2784 = vmatprep.subr.bf16.mxu0 0
      %2785 = vmatpush1.bf16.msra.mxu0 0
      %2786 = vmatprep.subr.bf16.mxu0 0
      %2787 = vmatpush1.bf16.msra.mxu0 0
      %2788 = vmatprep.subr.bf16.mxu0 0
      %2789 = vmatpush1.bf16.msra.mxu0 0
      %2790 = vmatprep.subr.bf16.mxu0 0
      %2791 = vmatpush1.bf16.msra.mxu0 0
      %2792 = vmatprep.subr.bf16.mxu0 0
      %2793 = vmatpush1.bf16.msra.mxu0 0
      %2794 = vmatprep.subr.bf16.mxu0 0
      %2795 = vmatpush1.bf16.msra.mxu0 0
      %2796 = vmatprep.mubr.bf16.mxu0 0
      %2797 = vmatmul.mubr.bf16.gmra.mrb[0].mxu0 %v2759
      %v2798 = vpop.f32.mrb[0].mxu0
      %v2799 = vadd.f32 0.0, %v2798
      %v2800 = vpop.f32.mrb[0].mxu0
      %v2801 = vpop.f32.mrb[0].mxu0
      %v2802 = vpop.f32.mrb[0].mxu0
      %2803 = vdwg.mxu0
      %v2805 = vsel %vm2196, %v2382, 0
      %v2808 = vsel %vm2392, %v1405, 0
      %2810 = vmatprep.subr.bf16.mxu0 0
      %2811 = vmatpush1.bf16.msra.mxu0 %v2808
      %2812 = vmatprep.subr.bf16.mxu0 0
      %2813 = vmatpush1.bf16.msra.mxu0 0
      %2814 = vmatprep.subr.bf16.mxu0 0
      %2815 = vmatpush1.bf16.msra.mxu0 0
      %2816 = vmatprep.subr.bf16.mxu0 0
      %2817 = vmatpush1.bf16.msra.mxu0 0
      %2818 = vmatprep.subr.bf16.mxu0 0
      %2819 = vmatpush1.bf16.msra.mxu0 0
      %2820 = vmatprep.subr.bf16.mxu0 0
      %2821 = vmatpush1.bf16.msra.mxu0 0
      %2822 = vmatprep.subr.bf16.mxu0 0
      %2823 = vmatpush1.bf16.msra.mxu0 0
      %2824 = vmatprep.subr.bf16.mxu0 0
      %2825 = vmatpush1.bf16.msra.mxu0 0
      %2826 = vmatprep.subr.bf16.mxu0 0
      %2827 = vmatpush1.bf16.msra.mxu0 0
      %2828 = vmatprep.subr.bf16.mxu0 0
      %2829 = vmatpush1.bf16.msra.mxu0 0
      %2830 = vmatprep.subr.bf16.mxu0 0
      %2831 = vmatpush1.bf16.msra.mxu0 0
      %2832 = vmatprep.subr.bf16.mxu0 0
      %2833 = vmatpush1.bf16.msra.mxu0 0
      %2834 = vmatprep.subr.bf16.mxu0 0
      %2835 = vmatpush1.bf16.msra.mxu0 0
      %2836 = vmatprep.subr.bf16.mxu0 0
      %2837 = vmatpush1.bf16.msra.mxu0 0
      %2838 = vmatprep.subr.bf16.mxu0 0
      %2839 = vmatpush1.bf16.msra.mxu0 0
      %2840 = vmatprep.subr.bf16.mxu0 0
      %2841 = vmatpush1.bf16.msra.mxu0 0
      %2842 = vmatprep.mubr.bf16.mxu0 0
      %2843 = vmatmul.mubr.bf16.gmra.mrb[0].mxu0 %v2805
      %v2844 = vpop.f32.mrb[0].mxu0
      %v2845 = vadd.f32 0.0, %v2844
      %v2846 = vpop.f32.mrb[0].mxu0
      %v2847 = vpop.f32.mrb[0].mxu0
      %v2848 = vpop.f32.mrb[0].mxu0
      %2849 = vdwg.mxu0
      %v2851 = vsel %vm2196, %v2383, 0
      %v2854 = vsel %vm2392, %v1406, 0
      %2856 = vmatprep.subr.bf16.mxu0 0
      %2857 = vmatpush1.bf16.msra.mxu0 %v2854
      %2858 = vmatprep.subr.bf16.mxu0 0
      %2859 = vmatpush1.bf16.msra.mxu0 0
      %2860 = vmatprep.subr.bf16.mxu0 0
      %2861 = vmatpush1.bf16.msra.mxu0 0
      %2862 = vmatprep.subr.bf16.mxu0 0
      %2863 = vmatpush1.bf16.msra.mxu0 0
      %2864 = vmatprep.subr.bf16.mxu0 0
      %2865 = vmatpush1.bf16.msra.mxu0 0
      %2866 = vmatprep.subr.bf16.mxu0 0
      %2867 = vmatpush1.bf16.msra.mxu0 0
      %2868 = vmatprep.subr.bf16.mxu0 0
      %2869 = vmatpush1.bf16.msra.mxu0 0
      %2870 = vmatprep.subr.bf16.mxu0 0
      %2871 = vmatpush1.bf16.msra.mxu0 0
      %2872 = vmatprep.subr.bf16.mxu0 0
      %2873 = vmatpush1.bf16.msra.mxu0 0
      %2874 = vmatprep.subr.bf16.mxu0 0
      %2875 = vmatpush1.bf16.msra.mxu0 0
      %2876 = vmatprep.subr.bf16.mxu0 0
      %2877 = vmatpush1.bf16.msra.mxu0 0
      %2878 = vmatprep.subr.bf16.mxu0 0
      %2879 = vmatpush1.bf16.msra.mxu0 0
      %2880 = vmatprep.subr.bf16.mxu0 0
      %2881 = vmatpush1.bf16.msra.mxu0 0
      %2882 = vmatprep.subr.bf16.mxu0 0
      %2883 = vmatpush1.bf16.msra.mxu0 0
      %2884 = vmatprep.subr.bf16.mxu0 0
      %2885 = vmatpush1.bf16.msra.mxu0 0
      %2886 = vmatprep.subr.bf16.mxu0 0
      %2887 = vmatpush1.bf16.msra.mxu0 0
      %2888 = vmatprep.mubr.bf16.mxu0 0
      %2889 = vmatmul.mubr.bf16.gmra.mrb[0].mxu0 %v2851
      %v2890 = vpop.f32.mrb[0].mxu0
      %v2891 = vadd.f32 0.0, %v2890
      %v2892 = vpop.f32.mrb[0].mxu0
      %v2893 = vpop.f32.mrb[0].mxu0
      %v2894 = vpop.f32.mrb[0].mxu0
      %2895 = vdwg.mxu0
      %v2897 = vsel %vm2196, %v2384, 0
      %v2900 = vsel %vm2392, %v1407, 0
      %2902 = vmatprep.subr.bf16.mxu0 0
      %2903 = vmatpush1.bf16.msra.mxu0 %v2900
      %2904 = vmatprep.subr.bf16.mxu0 0
      %2905 = vmatpush1.bf16.msra.mxu0 0
      %2906 = vmatprep.subr.bf16.mxu0 0
      %2907 = vmatpush1.bf16.msra.mxu0 0
      %2908 = vmatprep.subr.bf16.mxu0 0
      %2909 = vmatpush1.bf16.msra.mxu0 0
      %2910 = vmatprep.subr.bf16.mxu0 0
      %2911 = vmatpush1.bf16.msra.mxu0 0
      %2912 = vmatprep.subr.bf16.mxu0 0
      %2913 = vmatpush1.bf16.msra.mxu0 0
      %2914 = vmatprep.subr.bf16.mxu0 0
      %2915 = vmatpush1.bf16.msra.mxu0 0
      %2916 = vmatprep.subr.bf16.mxu0 0
      %2917 = vmatpush1.bf16.msra.mxu0 0
      %2918 = vmatprep.subr.bf16.mxu0 0
      %2919 = vmatpush1.bf16.msra.mxu0 0
      %2920 = vmatprep.subr.bf16.mxu0 0
      %2921 = vmatpush1.bf16.msra.mxu0 0
      %2922 = vmatprep.subr.bf16.mxu0 0
      %2923 = vmatpush1.bf16.msra.mxu0 0
      %2924 = vmatprep.subr.bf16.mxu0 0
      %2925 = vmatpush1.bf16.msra.mxu0 0
      %2926 = vmatprep.subr.bf16.mxu0 0
      %2927 = vmatpush1.bf16.msra.mxu0 0
      %2928 = vmatprep.subr.bf16.mxu0 0
      %2929 = vmatpush1.bf16.msra.mxu0 0
      %2930 = vmatprep.subr.bf16.mxu0 0
      %2931 = vmatpush1.bf16.msra.mxu0 0
      %2932 = vmatprep.subr.bf16.mxu0 0
      %2933 = vmatpush1.bf16.msra.mxu0 0
      %2934 = vmatprep.mubr.bf16.mxu0 0
      %2935 = vmatmul.mubr.bf16.gmra.mrb[0].mxu0 %v2897
      %v2936 = vpop.f32.mrb[0].mxu0
      %v2937 = vadd.f32 0.0, %v2936
      %v2938 = vpop.f32.mrb[0].mxu0
      %v2939 = vpop.f32.mrb[0].mxu0
      %v2940 = vpop.f32.mrb[0].mxu0
      %2941 = vdwg.mxu0
      %v2943 = vsel %vm2196, %v2385, 0
      %v2946 = vsel %vm2392, %v1408, 0
      %2948 = vmatprep.subr.bf16.mxu0 0
      %2949 = vmatpush1.bf16.msra.mxu0 %v2946
      %2950 = vmatprep.subr.bf16.mxu0 0
      %2951 = vmatpush1.bf16.msra.mxu0 0
      %2952 = vmatprep.subr.bf16.mxu0 0
      %2953 = vmatpush1.bf16.msra.mxu0 0
      %2954 = vmatprep.subr.bf16.mxu0 0
      %2955 = vmatpush1.bf16.msra.mxu0 0
      %2956 = vmatprep.subr.bf16.mxu0 0
      %2957 = vmatpush1.bf16.msra.mxu0 0
      %2958 = vmatprep.subr.bf16.mxu0 0
      %2959 = vmatpush1.bf16.msra.mxu0 0
      %2960 = vmatprep.subr.bf16.mxu0 0
      %2961 = vmatpush1.bf16.msra.mxu0 0
      %2962 = vmatprep.subr.bf16.mxu0 0
      %2963 = vmatpush1.bf16.msra.mxu0 0
      %2964 = vmatprep.subr.bf16.mxu0 0
      %2965 = vmatpush1.bf16.msra.mxu0 0
      %2966 = vmatprep.subr.bf16.mxu0 0
      %2967 = vmatpush1.bf16.msra.mxu0 0
      %2968 = vmatprep.subr.bf16.mxu0 0
      %2969 = vmatpush1.bf16.msra.mxu0 0
      %2970 = vmatprep.subr.bf16.mxu0 0
      %2971 = vmatpush1.bf16.msra.mxu0 0
      %2972 = vmatprep.subr.bf16.mxu0 0
      %2973 = vmatpush1.bf16.msra.mxu0 0
      %2974 = vmatprep.subr.bf16.mxu0 0
      %2975 = vmatpush1.bf16.msra.mxu0 0
      %2976 = vmatprep.subr.bf16.mxu0 0
      %2977 = vmatpush1.bf16.msra.mxu0 0
      %2978 = vmatprep.subr.bf16.mxu0 0
      %2979 = vmatpush1.bf16.msra.mxu0 0
      %2980 = vmatprep.mubr.bf16.mxu0 0
      %2981 = vmatmul.mubr.bf16.gmra.mrb[0].mxu0 %v2943
      %v2982 = vpop.f32.mrb[0].mxu0
      %v2983 = vadd.f32 0.0, %v2982
      %v2984 = vpop.f32.mrb[0].mxu0
      %v2985 = vpop.f32.mrb[0].mxu0
      %v2986 = vpop.f32.mrb[0].mxu0
      %2987 = vdwg.mxu0
      %v2989 = vsel %vm2196, %v2386, 0
      %v2992 = vsel %vm2392, %v1409, 0
      %2994 = vmatprep.subr.bf16.mxu0 0
      %2995 = vmatpush1.bf16.msra.mxu0 %v2992
      %2996 = vmatprep.subr.bf16.mxu0 0
      %2997 = vmatpush1.bf16.msra.mxu0 0
      %2998 = vmatprep.subr.bf16.mxu0 0
      %2999 = vmatpush1.bf16.msra.mxu0 0
      %3000 = vmatprep.subr.bf16.mxu0 0
      %3001 = vmatpush1.bf16.msra.mxu0 0
      %3002 = vmatprep.subr.bf16.mxu0 0
      %3003 = vmatpush1.bf16.msra.mxu0 0
      %3004 = vmatprep.subr.bf16.mxu0 0
      %3005 = vmatpush1.bf16.msra.mxu0 0
      %3006 = vmatprep.subr.bf16.mxu0 0
      %3007 = vmatpush1.bf16.msra.mxu0 0
      %3008 = vmatprep.subr.bf16.mxu0 0
      %3009 = vmatpush1.bf16.msra.mxu0 0
      %3010 = vmatprep.subr.bf16.mxu0 0
      %3011 = vmatpush1.bf16.msra.mxu0 0
      %3012 = vmatprep.subr.bf16.mxu0 0
      %3013 = vmatpush1.bf16.msra.mxu0 0
      %3014 = vmatprep.subr.bf16.mxu0 0
      %3015 = vmatpush1.bf16.msra.mxu0 0
      %3016 = vmatprep.subr.bf16.mxu0 0
      %3017 = vmatpush1.bf16.msra.mxu0 0
      %3018 = vmatprep.subr.bf16.mxu0 0
      %3019 = vmatpush1.bf16.msra.mxu0 0
      %3020 = vmatprep.subr.bf16.mxu0 0
      %3021 = vmatpush1.bf16.msra.mxu0 0
      %3022 = vmatprep.subr.bf16.mxu0 0
      %3023 = vmatpush1.bf16.msra.mxu0 0
      %3024 = vmatprep.subr.bf16.mxu0 0
      %3025 = vmatpush1.bf16.msra.mxu0 0
      %3026 = vmatprep.mubr.bf16.mxu0 0
      %3027 = vmatmul.mubr.bf16.gmra.mrb[0].mxu0 %v2989
      %v3028 = vpop.f32.mrb[0].mxu0
      %v3029 = vadd.f32 0.0, %v3028
      %v3030 = vpop.f32.mrb[0].mxu0
      %v3031 = vpop.f32.mrb[0].mxu0
      %v3032 = vpop.f32.mrb[0].mxu0
      %3033 = vdwg.mxu0
      %v3035 = vsel %vm2196, %v2387, 0
      %v3038 = vsel %vm2392, %v1410, 0
      %3040 = vmatprep.subr.bf16.mxu0 0
      %3041 = vmatpush1.bf16.msra.mxu0 %v3038
      %3042 = vmatprep.subr.bf16.mxu0 0
      %3043 = vmatpush1.bf16.msra.mxu0 0
      %3044 = vmatprep.subr.bf16.mxu0 0
      %3045 = vmatpush1.bf16.msra.mxu0 0
      %3046 = vmatprep.subr.bf16.mxu0 0
      %3047 = vmatpush1.bf16.msra.mxu0 0
      %3048 = vmatprep.subr.bf16.mxu0 0
      %3049 = vmatpush1.bf16.msra.mxu0 0
      %3050 = vmatprep.subr.bf16.mxu0 0
      %3051 = vmatpush1.bf16.msra.mxu0 0
      %3052 = vmatprep.subr.bf16.mxu0 0
      %3053 = vmatpush1.bf16.msra.mxu0 0
      %3054 = vmatprep.subr.bf16.mxu0 0
      %3055 = vmatpush1.bf16.msra.mxu0 0
      %3056 = vmatprep.subr.bf16.mxu0 0
      %3057 = vmatpush1.bf16.msra.mxu0 0
      %3058 = vmatprep.subr.bf16.mxu0 0
      %3059 = vmatpush1.bf16.msra.mxu0 0
      %3060 = vmatprep.subr.bf16.mxu0 0
      %3061 = vmatpush1.bf16.msra.mxu0 0
      %3062 = vmatprep.subr.bf16.mxu0 0
      %3063 = vmatpush1.bf16.msra.mxu0 0
      %3064 = vmatprep.subr.bf16.mxu0 0
      %3065 = vmatpush1.bf16.msra.mxu0 0
      %3066 = vmatprep.subr.bf16.mxu0 0
      %3067 = vmatpush1.bf16.msra.mxu0 0
      %3068 = vmatprep.subr.bf16.mxu0 0
      %3069 = vmatpush1.bf16.msra.mxu0 0
      %3070 = vmatprep.subr.bf16.mxu0 0
      %3071 = vmatpush1.bf16.msra.mxu0 0
      %3072 = vmatprep.mubr.bf16.mxu0 0
      %3073 = vmatmul.mubr.bf16.gmra.mrb[0].mxu0 %v3035
      %v3074 = vpop.f32.mrb[0].mxu0
      %v3075 = vadd.f32 0.0, %v3074
      %v3076 = vpop.f32.mrb[0].mxu0
      %v3077 = vpop.f32.mrb[0].mxu0
      %v3078 = vpop.f32.mrb[0].mxu0
      %3079 = vdwg.mxu0
      %v3081 = vsel %vm2196, %v2388, 0
      %v3084 = vsel %vm2392, %v1411, 0
      %3086 = vmatprep.subr.bf16.mxu0 0
      %3087 = vmatpush1.bf16.msra.mxu0 %v3084
      %3088 = vmatprep.subr.bf16.mxu0 0
      %3089 = vmatpush1.bf16.msra.mxu0 0
      %3090 = vmatprep.subr.bf16.mxu0 0
      %3091 = vmatpush1.bf16.msra.mxu0 0
      %3092 = vmatprep.subr.bf16.mxu0 0
      %3093 = vmatpush1.bf16.msra.mxu0 0
      %3094 = vmatprep.subr.bf16.mxu0 0
      %3095 = vmatpush1.bf16.msra.mxu0 0
      %3096 = vmatprep.subr.bf16.mxu0 0
      %3097 = vmatpush1.bf16.msra.mxu0 0
      %3098 = vmatprep.subr.bf16.mxu0 0
      %3099 = vmatpush1.bf16.msra.mxu0 0
      %3100 = vmatprep.subr.bf16.mxu0 0
      %3101 = vmatpush1.bf16.msra.mxu0 0
      %3102 = vmatprep.subr.bf16.mxu0 0
      %3103 = vmatpush1.bf16.msra.mxu0 0
      %3104 = vmatprep.subr.bf16.mxu0 0
      %3105 = vmatpush1.bf16.msra.mxu0 0
      %3106 = vmatprep.subr.bf16.mxu0 0
      %3107 = vmatpush1.bf16.msra.mxu0 0
      %3108 = vmatprep.subr.bf16.mxu0 0
      %3109 = vmatpush1.bf16.msra.mxu0 0
      %3110 = vmatprep.subr.bf16.mxu0 0
      %3111 = vmatpush1.bf16.msra.mxu0 0
      %3112 = vmatprep.subr.bf16.mxu0 0
      %3113 = vmatpush1.bf16.msra.mxu0 0
      %3114 = vmatprep.subr.bf16.mxu0 0
      %3115 = vmatpush1.bf16.msra.mxu0 0
      %3116 = vmatprep.subr.bf16.mxu0 0
      %3117 = vmatpush1.bf16.msra.mxu0 0
      %3118 = vmatprep.mubr.bf16.mxu0 0
      %3119 = vmatmul.mubr.bf16.gmra.mrb[0].mxu0 %v3081
      %v3120 = vpop.f32.mrb[0].mxu0
      %v3121 = vadd.f32 0.0, %v3120
      %v3122 = vpop.f32.mrb[0].mxu0
      %v3123 = vpop.f32.mrb[0].mxu0
      %v3124 = vpop.f32.mrb[0].mxu0
      %3125 = vdwg.mxu0
      %v3126 = vpack.c.bf16 %v2477, %v2431
      %v3127 = vpack.c.bf16 %v2569, %v2523
      %v3128 = vpack.c.bf16 %v2661, %v2615
      %v3129 = vpack.c.bf16 %v2753, %v2707
      %v3130 = vpack.c.bf16 %v2845, %v2799
      %v3131 = vpack.c.bf16 %v2937, %v2891
      %v3132 = vpack.c.bf16 %v3029, %v2983
      %v3133 = vpack.c.bf16 %v3121, %v3075
      %v3136 = vunpack.c.l.b16 %v709
      %v3137 = vunpack.c.l.b16 %v710
      %v3138 = vpack.c.b16 %v3137, %v3136
      %v3141 = vsel %vm1012, %v3126, 0
      %v3144 = vsel %vm1012, %v3127, 0
      %3146 = vmatprep.subr.bf16.mxu0 0
      %3147 = vmatpush1.bf16.msra.mxu0 %v3138
      %3148 = vmatprep.subr.bf16.mxu0 0
      %3149 = vmatpush1.bf16.msra.mxu0 0
      %3150 = vmatprep.subr.bf16.mxu0 0
      %3151 = vmatpush1.bf16.msra.mxu0 0
      %3152 = vmatprep.subr.bf16.mxu0 0
      %3153 = vmatpush1.bf16.msra.mxu0 0
      %3154 = vmatprep.subr.bf16.mxu0 0
      %3155 = vmatpush1.bf16.msra.mxu0 0
      %3156 = vmatprep.subr.bf16.mxu0 0
      %3157 = vmatpush1.bf16.msra.mxu0 0
      %3158 = vmatprep.subr.bf16.mxu0 0
      %3159 = vmatpush1.bf16.msra.mxu0 0
      %3160 = vmatprep.subr.bf16.mxu0 0
      %3161 = vmatpush1.bf16.msra.mxu0 0
      %3162 = vmatprep.subr.bf16.mxu0 0
      %3163 = vmatpush1.bf16.msra.mxu0 0
      %3164 = vmatprep.subr.bf16.mxu0 0
      %3165 = vmatpush1.bf16.msra.mxu0 0
      %3166 = vmatprep.subr.bf16.mxu0 0
      %3167 = vmatpush1.bf16.msra.mxu0 0
      %3168 = vmatprep.subr.bf16.mxu0 0
      %3169 = vmatpush1.bf16.msra.mxu0 0
      %3170 = vmatprep.subr.bf16.mxu0 0
      %3171 = vmatpush1.bf16.msra.mxu0 0
      %3172 = vmatprep.subr.bf16.mxu0 0
      %3173 = vmatpush1.bf16.msra.mxu0 0
      %3174 = vmatprep.subr.bf16.mxu0 0
      %3175 = vmatpush1.bf16.msra.mxu0 0
      %3176 = vmatprep.subr.bf16.mxu0 0
      %3177 = vmatpush1.bf16.msra.mxu0 0
      %3178 = vmatprep.mubr.bf16.mxu0 0
      %3179 = vmatmul.mubr.bf16.gmra.mrb[0].mxu0 %v3141
      %v3180 = vpop.f32.mrb[0].mxu0
      %v3181 = vadd.f32 0.0, %v3180
      %v3182 = vpop.f32.mrb[0].mxu0
      %v3183 = vpop.f32.mrb[0].mxu0
      %v3184 = vadd.f32 0.0, %v3183
      %v3185 = vpop.f32.mrb[0].mxu0
      %3186 = vmatprep.mubr.bf16.mxu0 0
      %3187 = vmatmul.mubr.bf16.gmra.mrb[0].mxu0 %v3144
      %v3188 = vpop.f32.mrb[0].mxu0
      %v3189 = vadd.f32 0.0, %v3188
      %v3190 = vpop.f32.mrb[0].mxu0
      %v3191 = vpop.f32.mrb[0].mxu0
      %v3192 = vadd.f32 0.0, %v3191
      %v3193 = vpop.f32.mrb[0].mxu0
      %3194 = vdwg.mxu0
      %v3197 = vunpack.c.l.b16 %v711
      %v3198 = vunpack.c.l.b16 %v712
      %v3199 = vpack.c.b16 %v3198, %v3197
      %v3202 = vsel %vm1012, %v3128, 0
      %v3205 = vsel %vm1012, %v3129, 0
      %3207 = vmatprep.subr.bf16.mxu0 0
      %3208 = vmatpush1.bf16.msra.mxu0 %v3199
      %3209 = vmatprep.subr.bf16.mxu0 0
      %3210 = vmatpush1.bf16.msra.mxu0 0
      %3211 = vmatprep.subr.bf16.mxu0 0
      %3212 = vmatpush1.bf16.msra.mxu0 0
      %3213 = vmatprep.subr.bf16.mxu0 0
      %3214 = vmatpush1.bf16.msra.mxu0 0
      %3215 = vmatprep.subr.bf16.mxu0 0
      %3216 = vmatpush1.bf16.msra.mxu0 0
      %3217 = vmatprep.subr.bf16.mxu0 0
      %3218 = vmatpush1.bf16.msra.mxu0 0
      %3219 = vmatprep.subr.bf16.mxu0 0
      %3220 = vmatpush1.bf16.msra.mxu0 0
      %3221 = vmatprep.subr.bf16.mxu0 0
      %3222 = vmatpush1.bf16.msra.mxu0 0
      %3223 = vmatprep.subr.bf16.mxu0 0
      %3224 = vmatpush1.bf16.msra.mxu0 0
      %3225 = vmatprep.subr.bf16.mxu0 0
      %3226 = vmatpush1.bf16.msra.mxu0 0
      %3227 = vmatprep.subr.bf16.mxu0 0
      %3228 = vmatpush1.bf16.msra.mxu0 0
      %3229 = vmatprep.subr.bf16.mxu0 0
      %3230 = vmatpush1.bf16.msra.mxu0 0
      %3231 = vmatprep.subr.bf16.mxu0 0
      %3232 = vmatpush1.bf16.msra.mxu0 0
      %3233 = vmatprep.subr.bf16.mxu0 0
      %3234 = vmatpush1.bf16.msra.mxu0 0
      %3235 = vmatprep.subr.bf16.mxu0 0
      %3236 = vmatpush1.bf16.msra.mxu0 0
      %3237 = vmatprep.subr.bf16.mxu0 0
      %3238 = vmatpush1.bf16.msra.mxu0 0
      %3239 = vmatprep.mubr.bf16.mxu0 0
      %3240 = vmatmul.mubr.bf16.gmra.mrb[0].mxu0 %v3202
      %v3241 = vpop.f32.mrb[0].mxu0
      %v3242 = vadd.f32 0.0, %v3241
      %v3243 = vpop.f32.mrb[0].mxu0
      %v3244 = vpop.f32.mrb[0].mxu0
      %v3245 = vadd.f32 0.0, %v3244
      %v3246 = vpop.f32.mrb[0].mxu0
      %3247 = vmatprep.mubr.bf16.mxu0 0
      %3248 = vmatmul.mubr.bf16.gmra.mrb[0].mxu0 %v3205
      %v3249 = vpop.f32.mrb[0].mxu0
      %v3250 = vadd.f32 0.0, %v3249
      %v3251 = vpop.f32.mrb[0].mxu0
      %v3252 = vpop.f32.mrb[0].mxu0
      %v3253 = vadd.f32 0.0, %v3252
      %v3254 = vpop.f32.mrb[0].mxu0
      %3255 = vdwg.mxu0
      %v3258 = vunpack.c.l.b16 %v713
      %v3259 = vunpack.c.l.b16 %v714
      %v3260 = vpack.c.b16 %v3259, %v3258
      %v3263 = vsel %vm1012, %v3130, 0
      %v3266 = vsel %vm1012, %v3131, 0
      %3268 = vmatprep.subr.bf16.mxu0 0
      %3269 = vmatpush1.bf16.msra.mxu0 %v3260
      %3270 = vmatprep.subr.bf16.mxu0 0
      %3271 = vmatpush1.bf16.msra.mxu0 0
      %3272 = vmatprep.subr.bf16.mxu0 0
      %3273 = vmatpush1.bf16.msra.mxu0 0
      %3274 = vmatprep.subr.bf16.mxu0 0
      %3275 = vmatpush1.bf16.msra.mxu0 0
      %3276 = vmatprep.subr.bf16.mxu0 0
      %3277 = vmatpush1.bf16.msra.mxu0 0
      %3278 = vmatprep.subr.bf16.mxu0 0
      %3279 = vmatpush1.bf16.msra.mxu0 0
      %3280 = vmatprep.subr.bf16.mxu0 0
      %3281 = vmatpush1.bf16.msra.mxu0 0
      %3282 = vmatprep.subr.bf16.mxu0 0
      %3283 = vmatpush1.bf16.msra.mxu0 0
      %3284 = vmatprep.subr.bf16.mxu0 0
      %3285 = vmatpush1.bf16.msra.mxu0 0
      %3286 = vmatprep.subr.bf16.mxu0 0
      %3287 = vmatpush1.bf16.msra.mxu0 0
      %3288 = vmatprep.subr.bf16.mxu0 0
      %3289 = vmatpush1.bf16.msra.mxu0 0
      %3290 = vmatprep.subr.bf16.mxu0 0
      %3291 = vmatpush1.bf16.msra.mxu0 0
      %3292 = vmatprep.subr.bf16.mxu0 0
      %3293 = vmatpush1.bf16.msra.mxu0 0
      %3294 = vmatprep.subr.bf16.mxu0 0
      %3295 = vmatpush1.bf16.msra.mxu0 0
      %3296 = vmatprep.subr.bf16.mxu0 0
      %3297 = vmatpush1.bf16.msra.mxu0 0
      %3298 = vmatprep.subr.bf16.mxu0 0
      %3299 = vmatpush1.bf16.msra.mxu0 0
      %3300 = vmatprep.mubr.bf16.mxu0 0
      %3301 = vmatmul.mubr.bf16.gmra.mrb[0].mxu0 %v3263
      %v3302 = vpop.f32.mrb[0].mxu0
      %v3303 = vadd.f32 0.0, %v3302
      %v3304 = vpop.f32.mrb[0].mxu0
      %v3305 = vpop.f32.mrb[0].mxu0
      %v3306 = vadd.f32 0.0, %v3305
      %v3307 = vpop.f32.mrb[0].mxu0
      %3308 = vmatprep.mubr.bf16.mxu0 0
      %3309 = vmatmul.mubr.bf16.gmra.mrb[0].mxu0 %v3266
      %v3310 = vpop.f32.mrb[0].mxu0
      %v3311 = vadd.f32 0.0, %v3310
      %v3312 = vpop.f32.mrb[0].mxu0
      %v3313 = vpop.f32.mrb[0].mxu0
      %v3314 = vadd.f32 0.0, %v3313
      %v3315 = vpop.f32.mrb[0].mxu0
      %3316 = vdwg.mxu0
      %v3319 = vunpack.c.l.b16 %v715
      %v3320 = vunpack.c.l.b16 %v716
      %v3321 = vpack.c.b16 %v3320, %v3319
      %v3324 = vsel %vm1012, %v3132, 0
      %v3327 = vsel %vm1012, %v3133, 0
      %3329 = vmatprep.subr.bf16.mxu0 0
      %3330 = vmatpush1.bf16.msra.mxu0 %v3321
      %3331 = vmatprep.subr.bf16.mxu0 0
      %3332 = vmatpush1.bf16.msra.mxu0 0
      %3333 = vmatprep.subr.bf16.mxu0 0
      %3334 = vmatpush1.bf16.msra.mxu0 0
      %3335 = vmatprep.subr.bf16.mxu0 0
      %3336 = vmatpush1.bf16.msra.mxu0 0
      %3337 = vmatprep.subr.bf16.mxu0 0
      %3338 = vmatpush1.bf16.msra.mxu0 0
      %3339 = vmatprep.subr.bf16.mxu0 0
      %3340 = vmatpush1.bf16.msra.mxu0 0
      %3341 = vmatprep.subr.bf16.mxu0 0
      %3342 = vmatpush1.bf16.msra.mxu0 0
      %3343 = vmatprep.subr.bf16.mxu0 0
      %3344 = vmatpush1.bf16.msra.mxu0 0
      %3345 = vmatprep.subr.bf16.mxu0 0
      %3346 = vmatpush1.bf16.msra.mxu0 0
      %3347 = vmatprep.subr.bf16.mxu0 0
      %3348 = vmatpush1.bf16.msra.mxu0 0
      %3349 = vmatprep.subr.bf16.mxu0 0
      %3350 = vmatpush1.bf16.msra.mxu0 0
      %3351 = vmatprep.subr.bf16.mxu0 0
      %3352 = vmatpush1.bf16.msra.mxu0 0
      %3353 = vmatprep.subr.bf16.mxu0 0
      %3354 = vmatpush1.bf16.msra.mxu0 0
      %3355 = vmatprep.subr.bf16.mxu0 0
      %3356 = vmatpush1.bf16.msra.mxu0 0
      %3357 = vmatprep.subr.bf16.mxu0 0
      %3358 = vmatpush1.bf16.msra.mxu0 0
      %3359 = vmatprep.subr.bf16.mxu0 0
      %3360 = vmatpush1.bf16.msra.mxu0 0
      %3361 = vmatprep.mubr.bf16.mxu0 0
      %3362 = vmatmul.mubr.bf16.gmra.mrb[0].mxu0 %v3324
      %v3363 = vpop.f32.mrb[0].mxu0
      %v3364 = vadd.f32 0.0, %v3363
      %v3365 = vpop.f32.mrb[0].mxu0
      %v3366 = vpop.f32.mrb[0].mxu0
      %v3367 = vadd.f32 0.0, %v3366
      %v3368 = vpop.f32.mrb[0].mxu0
      %3369 = vmatprep.mubr.bf16.mxu0 0
      %3370 = vmatmul.mubr.bf16.gmra.mrb[0].mxu0 %v3327
      %v3371 = vpop.f32.mrb[0].mxu0
      %v3372 = vadd.f32 0.0, %v3371
      %v3373 = vpop.f32.mrb[0].mxu0
      %v3374 = vpop.f32.mrb[0].mxu0
      %v3375 = vadd.f32 0.0, %v3374
      %v3376 = vpop.f32.mrb[0].mxu0
      %3377 = vdwg.mxu0
      %v3378 = vsel %vm752, %v3181, 0.0
      %v3379 = vsel %vm752, %v3242, 0.0
      %v3380 = vadd.f32 %v3378, %v3379
      %v3381 = vsel %vm752, %v3303, 0.0
      %v3382 = vadd.f32 %v3380, %v3381
      %v3383 = vsel %vm752, %v3364, 0.0
      %v3384 = vadd.f32 %v3382, %v3383
      %v3385 = vsel %vm752, %v3184, 0.0
      %v3386 = vsel %vm752, %v3245, 0.0
      %v3387 = vadd.f32 %v3385, %v3386
      %v3388 = vsel %vm752, %v3306, 0.0
      %v3389 = vadd.f32 %v3387, %v3388
      %v3390 = vsel %vm752, %v3367, 0.0
      %v3391 = vadd.f32 %v3389, %v3390
      %v3392 = vsel %vm752, %v3189, 0.0
      %v3393 = vsel %vm752, %v3250, 0.0
      %v3394 = vadd.f32 %v3392, %v3393
      %v3395 = vsel %vm752, %v3311, 0.0
      %v3396 = vadd.f32 %v3394, %v3395
      %v3397 = vsel %vm752, %v3372, 0.0
      %v3398 = vadd.f32 %v3396, %v3397
      %v3399 = vsel %vm752, %v3192, 0.0
      %v3400 = vsel %vm752, %v3253, 0.0
      %v3401 = vadd.f32 %v3399, %v3400
      %v3402 = vsel %vm752, %v3314, 0.0
      %v3403 = vadd.f32 %v3401, %v3402
      %v3404 = vsel %vm752, %v3375, 0.0
      %v3405 = vadd.f32 %v3403, %v3404
      %v3407 = vlaneseq
      %v3408 = vshrl.u32 %v3407, 7
      %v3409 = vsub.s32 0, %v3408
      %v3410 = vrot.slane %v717, %v3409
      %v3412 = vadd.f32 %v3384, %v3410
      %v3413 = vadd.f32 %v3391, %v3410
      %v3414 = vadd.f32 %v3398, %v3410
      %v3415 = vadd.f32 %v3405, %v3410
      %v3416 = vadd.f32 %v696, %v3412
      %v3417 = vadd.f32 %v697, %v3413
      %v3418 = vadd.f32 %v698, %v3414
      %v3419 = vadd.f32 %v699, %v3415
      %v3420 = vmul.f32 %v3416, %v3416
      %v3421 = vmul.f32 %v3417, %v3417
      %v3422 = vmul.f32 %v3418, %v3418
      %v3423 = vmul.f32 %v3419, %v3419
      %v3424 = vsel %vm752, %v3420, 0.0
      %3425 = vadd.xlane.f32.xlu0 %v3424
      %v3426 = vpop.xlane.xlu0 %3425
      %v3427 = vsel %vm752, %v3421, 0.0
      %3428 = vadd.xlane.f32.xlu0 %v3427
      %v3429 = vpop.xlane.xlu0 %3428
      %v3430 = vsel %vm752, %v3422, 0.0
      %3431 = vadd.xlane.f32.xlu0 %v3430
      %v3432 = vpop.xlane.xlu0 %3431
      %v3433 = vsel %vm752, %v3423, 0.0
      %3434 = vadd.xlane.f32.xlu0 %v3433
      %v3435 = vpop.xlane.xlu0 %3434
      %v3436 = vmul.f32 %v3426, %v765
      %v3437 = vmul.f32 %v3429, %v765
      %v3438 = vmul.f32 %v3432, %v765
      %v3439 = vmul.f32 %v3435, %v765
      %v3440 = vadd.f32 %v3436, 1e-06
      %v3441 = vadd.f32 %v3437, 1e-06
      %v3442 = vadd.f32 %v3438, 1e-06
      %v3443 = vadd.f32 %v3439, 1e-06
      %v3444 = vrsqrt.pop %v3440
      %v3445 = vrsqrt.pop %v3441
      %v3446 = vrsqrt.pop %v3442
      %v3447 = vrsqrt.pop %v3443
      %v3448 = vmul.f32 %v3416, %v3444
      %v3449 = vmul.f32 %v3417, %v3445
      %v3450 = vmul.f32 %v3418, %v3446
      %v3451 = vmul.f32 %v3419, %v3447
      %v3453 = vlaneseq
      %v3454 = vshrl.u32 %v3453, 7
      %v3455 = vsub.s32 0, %v3454
      %v3456 = vrot.slane %v721, %v3455
      %v3458 = vmul.f32 %v3448, %v3456
      %v3459 = vmul.f32 %v3449, %v3456
      %v3460 = vmul.f32 %v3450, %v3456
      %v3461 = vmul.f32 %v3451, %v3456
      %v3462 = vpack.c.bf16 %v3458, %v3458
      %v3463 = vpack.c.bf16 %v3459, %v3459
      %v3464 = vpack.c.bf16 %v3460, %v3460
      %v3465 = vpack.c.bf16 %v3461, %v3461
      %v3467 = vlaneseq
      %v3468 = vshrl.u32 %v3467, 7
      %v3469 = vsub.s32 0, %v3468
      %v3470 = vrot.slane %v730, %v3469
      %v3476 = vunpack.c.l.b16 %v3462
      %v3477 = vunpack.c.l.b16 %v3463
      %v3478 = vunpack.c.l.b16 %v3464
      %v3479 = vunpack.c.l.b16 %v3465
      %v3480 = vpack.c.b16 %v3477, %v3476
      %v3481 = vpack.c.b16 %v3479, %v3478
      %v3490 = vunpack.c.l.b16 %v722
      %v3491 = vunpack.c.l.b16 %v723
      %v3492 = vunpack.c.l.b16 %v724
      %v3493 = vunpack.c.l.b16 %v725
      %v3494 = vunpack.c.l.b16 %v726
      %v3495 = vunpack.c.l.b16 %v727
      %v3496 = vunpack.c.l.b16 %v728
      %v3497 = vunpack.c.l.b16 %v729
      %v3498 = vpack.c.b16 %v3491, %v3490
      %v3499 = vpack.c.b16 %v3493, %v3492
      %v3500 = vpack.c.b16 %v3495, %v3494
      %v3501 = vpack.c.b16 %v3497, %v3496
      %v3507 = vsel %vm752, %v3480, 0
      %v3510 = vsel %vm752, %v3481, 0
      %3512 = vmatprep.subr.bf16.mxu0 0
      %3513 = vmatpush1.bf16.msra.mxu0 %v3498
      %3514 = vmatprep.subr.bf16.mxu0 0
      %3515 = vmatpush1.bf16.msra.mxu0 %v3499
      %3516 = vmatprep.subr.bf16.mxu0 0
      %3517 = vmatpush1.bf16.msra.mxu0 %v3500
      %3518 = vmatprep.subr.bf16.mxu0 0
      %3519 = vmatpush1.bf16.msra.mxu0 %v3501
      %3520 = vmatprep.subr.bf16.mxu0 0
      %3521 = vmatpush1.bf16.msra.mxu0 0
      %3522 = vmatprep.subr.bf16.mxu0 0
      %3523 = vmatpush1.bf16.msra.mxu0 0
      %3524 = vmatprep.subr.bf16.mxu0 0
      %3525 = vmatpush1.bf16.msra.mxu0 0
      %3526 = vmatprep.subr.bf16.mxu0 0
      %3527 = vmatpush1.bf16.msra.mxu0 0
      %3528 = vmatprep.subr.bf16.mxu0 0
      %3529 = vmatpush1.bf16.msra.mxu0 0
      %3530 = vmatprep.subr.bf16.mxu0 0
      %3531 = vmatpush1.bf16.msra.mxu0 0
      %3532 = vmatprep.subr.bf16.mxu0 0
      %3533 = vmatpush1.bf16.msra.mxu0 0
      %3534 = vmatprep.subr.bf16.mxu0 0
      %3535 = vmatpush1.bf16.msra.mxu0 0
      %3536 = vmatprep.subr.bf16.mxu0 0
      %3537 = vmatpush1.bf16.msra.mxu0 0
      %3538 = vmatprep.subr.bf16.mxu0 0
      %3539 = vmatpush1.bf16.msra.mxu0 0
      %3540 = vmatprep.subr.bf16.mxu0 0
      %3541 = vmatpush1.bf16.msra.mxu0 0
      %3542 = vmatprep.subr.bf16.mxu0 0
      %3543 = vmatpush1.bf16.msra.mxu0 0
      %3544 = vmatprep.mubr.bf16.mxu0 0
      %3545 = vmatmul.mubr.bf16.gmra.mrb[0].mxu0 %v3507
      %v3546 = vpop.f32.mrb[0].mxu0
      %v3547 = vadd.f32 %v3470, %v3546
      %v3548 = vpop.f32.mrb[0].mxu0
      %v3549 = vpop.f32.mrb[0].mxu0
      %v3550 = vadd.f32 %v3470, %v3549
      %v3551 = vpop.f32.mrb[0].mxu0
      %3552 = vmatprep.mubr.bf16.mxu0 0
      %3553 = vmatmul.mubr.bf16.gmra.mrb[0].mxu0 %v3510
      %v3554 = vpop.f32.mrb[0].mxu0
      %v3555 = vadd.f32 %v3470, %v3554
      %v3556 = vpop.f32.mrb[0].mxu0
      %v3557 = vpop.f32.mrb[0].mxu0
      %v3558 = vadd.f32 %v3470, %v3557
      %v3559 = vpop.f32.mrb[0].mxu0
      %3560 = vdwg.mxu0
      %v3561 = vxor.u32 %v3547, 2147483648
      %v3562 = vxor.u32 %v3550, 2147483648
      %v3563 = vxor.u32 %v3555, 2147483648
      %v3564 = vxor.u32 %v3558, 2147483648
      %v3565 = vmul.f32 %v3561, 1.442695
      %v3566 = vpow.pop %v3565
      %v3567 = vmul.f32 %v3562, 1.442695
      %v3568 = vpow.pop %v3567
      %v3569 = vmul.f32 %v3563, 1.442695
      %v3570 = vpow.pop %v3569
      %v3571 = vmul.f32 %v3564, 1.442695
      %v3572 = vpow.pop %v3571
      %v3573 = vadd.f32 %v3566, 1.0
      %v3574 = vadd.f32 %v3568, 1.0
      %v3575 = vadd.f32 %v3570, 1.0
      %v3576 = vadd.f32 %v3572, 1.0
      %v3577 = vrcp.pop %v3573
      %v3578 = vmul.f32 1.0, %v3577
      %v3579 = vrcp.pop %v3574
      %v3580 = vmul.f32 1.0, %v3579
      %v3581 = vrcp.pop %v3575
      %v3582 = vmul.f32 1.0, %v3581
      %v3583 = vrcp.pop %v3576
      %v3584 = vmul.f32 1.0, %v3583
      %v3585 = vmul.f32 %v3547, %v3578
      %v3586 = vmul.f32 %v3550, %v3580
      %v3587 = vmul.f32 %v3555, %v3582
      %v3588 = vmul.f32 %v3558, %v3584
      %v3589 = vpack.c.bf16 %v3586, %v3585
      %v3590 = vpack.c.bf16 %v3588, %v3587
      %v3592 = vlaneseq
      %v3593 = vshrl.u32 %v3592, 7
      %v3594 = vsub.s32 0, %v3593
      %v3595 = vrot.slane %v747, %v3594
      %v3613 = vunpack.c.l.b16 %v731
      %v3614 = vunpack.c.l.b16 %v732
      %v3615 = vunpack.c.l.b16 %v733
      %v3616 = vunpack.c.l.b16 %v734
      %v3617 = vunpack.c.l.b16 %v735
      %v3618 = vunpack.c.l.b16 %v736
      %v3619 = vunpack.c.l.b16 %v737
      %v3620 = vunpack.c.l.b16 %v738
      %v3621 = vunpack.c.l.b16 %v739
      %v3622 = vunpack.c.l.b16 %v740
      %v3623 = vunpack.c.l.b16 %v741
      %v3624 = vunpack.c.l.b16 %v742
      %v3625 = vunpack.c.l.b16 %v743
      %v3626 = vunpack.c.l.b16 %v744
      %v3627 = vunpack.c.l.b16 %v745
      %v3628 = vunpack.c.l.b16 %v746
      %v3629 = vpack.c.b16 %v3614, %v3613
      %v3630 = vpack.c.b16 %v3616, %v3615
      %v3631 = vpack.c.b16 %v3618, %v3617
      %v3632 = vpack.c.b16 %v3620, %v3619
      %v3633 = vpack.c.b16 %v3622, %v3621
      %v3634 = vpack.c.b16 %v3624, %v3623
      %v3635 = vpack.c.b16 %v3626, %v3625
      %v3636 = vpack.c.b16 %v3628, %v3627
      %3645 = vmatprep.subr.bf16.mxu0 0
      %3646 = vmatpush1.bf16.msra.mxu0 %v3629
      %3647 = vmatprep.subr.bf16.mxu0 0
      %3648 = vmatpush1.bf16.msra.mxu0 %v3630
      %3649 = vmatprep.subr.bf16.mxu0 0
      %3650 = vmatpush1.bf16.msra.mxu0 %v3631
      %3651 = vmatprep.subr.bf16.mxu0 0
      %3652 = vmatpush1.bf16.msra.mxu0 %v3632
      %3653 = vmatprep.subr.bf16.mxu0 0
      %3654 = vmatpush1.bf16.msra.mxu0 %v3633
      %3655 = vmatprep.subr.bf16.mxu0 0
      %3656 = vmatpush1.bf16.msra.mxu0 %v3634
      %3657 = vmatprep.subr.bf16.mxu0 0
      %3658 = vmatpush1.bf16.msra.mxu0 %v3635
      %3659 = vmatprep.subr.bf16.mxu0 0
      %3660 = vmatpush1.bf16.msra.mxu0 %v3636
      %3661 = vmatprep.subr.bf16.mxu0 0
      %3662 = vmatpush1.bf16.msra.mxu0 0
      %3663 = vmatprep.subr.bf16.mxu0 0
      %3664 = vmatpush1.bf16.msra.mxu0 0
      %3665 = vmatprep.subr.bf16.mxu0 0
      %3666 = vmatpush1.bf16.msra.mxu0 0
      %3667 = vmatprep.subr.bf16.mxu0 0
      %3668 = vmatpush1.bf16.msra.mxu0 0
      %3669 = vmatprep.subr.bf16.mxu0 0
      %3670 = vmatpush1.bf16.msra.mxu0 0
      %3671 = vmatprep.subr.bf16.mxu0 0
      %3672 = vmatpush1.bf16.msra.mxu0 0
      %3673 = vmatprep.subr.bf16.mxu0 0
      %3674 = vmatpush1.bf16.msra.mxu0 0
      %3675 = vmatprep.subr.bf16.mxu0 0
      %3676 = vmatpush1.bf16.msra.mxu0 0
      %3677 = vmatprep.mubr.bf16.mxu0 0
      %3678 = vmatmul.mubr.bf16.gmra.mrb[0].mxu0 %v3589
      %v3679 = vpop.f32.mrb[0].mxu0
      %v3680 = vadd.f32 %v3595, %v3679
      %v3681 = vpop.f32.mrb[0].mxu0
      %v3682 = vpop.f32.mrb[0].mxu0
      %v3683 = vadd.f32 %v3595, %v3682
      %v3684 = vpop.f32.mrb[0].mxu0
      %3685 = vmatprep.mubr.bf16.mxu0 0
      %3686 = vmatmul.mubr.bf16.gmra.mrb[0].mxu0 %v3590
      %v3687 = vpop.f32.mrb[0].mxu0
      %v3688 = vadd.f32 %v3595, %v3687
      %v3689 = vpop.f32.mrb[0].mxu0
      %v3690 = vpop.f32.mrb[0].mxu0
      %v3691 = vadd.f32 %v3595, %v3690
      %v3692 = vpop.f32.mrb[0].mxu0
      %3693 = vdwg.mxu0
      %v3694 = vadd.f32 %v3416, %v3680
      %v3695 = vadd.f32 %v3417, %v3683
      %v3696 = vadd.f32 %v3418, %v3688
      %v3697 = vadd.f32 %v3419, %v3691
      %3698 = vst.msk [vmem:[#allocation2] sm:$0xff] %vm752, %v3694
      %3699 = vst.msk [vmem:[#allocation2 + $0x8] sm:$0xff] %vm752, %v3695
      %3700 = vst.msk [vmem:[#allocation2 + $0x10] sm:$0xff] %vm752, %v3696
      %3701 = vst.msk [vmem:[#allocation2 + $0x18] sm:$0xff] %vm752, %v3697
      %p3702 = scmp.eq.s32.totalorder %s30, 1
      // Predicated region
      $region81: #{backbone_forward.3} parent=75 // pred_check
        %p3703 = pneg %p3702
      $region82: #{backbone_forward.3} parent=75 // pred_check_branch
        %3705 = sbr.rel (%p3703) target = $region84
      $region83: #{backbone_forward.3} parent=75 // pred_region
        %v3706 = vld [vmem:[%s13] sm:$0x1]
        %v3707 = vmul.f32 %v3694, %v3694
        %v3708 = vmul.f32 %v3695, %v3695
        %v3709 = vmul.f32 %v3696, %v3696
        %v3710 = vmul.f32 %v3697, %v3697
        %v3711 = vsel %vm752, %v3707, 0.0
        %3712 = vadd.xlane.f32.xlu0 %v3711
        %v3713 = vpop.xlane.xlu0 %3712
        %v3714 = vsel %vm752, %v3708, 0.0
        %3715 = vadd.xlane.f32.xlu0 %v3714
        %v3716 = vpop.xlane.xlu0 %3715
        %v3717 = vsel %vm752, %v3709, 0.0
        %3718 = vadd.xlane.f32.xlu0 %v3717
        %v3719 = vpop.xlane.xlu0 %3718
        %v3720 = vsel %vm752, %v3710, 0.0
        %3721 = vadd.xlane.f32.xlu0 %v3720
        %v3722 = vpop.xlane.xlu0 %3721
        %v3723 = vmul.f32 %v3713, %v765
        %v3724 = vmul.f32 %v3716, %v765
        %v3725 = vmul.f32 %v3719, %v765
        %v3726 = vmul.f32 %v3722, %v765
        %v3727 = vadd.f32 %v3723, 1e-06
        %v3728 = vadd.f32 %v3724, 1e-06
        %v3729 = vadd.f32 %v3725, 1e-06
        %v3730 = vadd.f32 %v3726, 1e-06
        %v3731 = vrsqrt.pop %v3727
        %v3732 = vrsqrt.pop %v3728
        %v3733 = vrsqrt.pop %v3729
        %v3734 = vrsqrt.pop %v3730
        %v3735 = vmul.f32 %v3694, %v3731
        %v3736 = vmul.f32 %v3695, %v3732
        %v3737 = vmul.f32 %v3696, %v3733
        %v3738 = vmul.f32 %v3697, %v3734
        %v3740 = vlaneseq
        %v3741 = vshrl.u32 %v3740, 7
        %v3742 = vsub.s32 0, %v3741
        %v3743 = vrot.slane %v3706, %v3742
        %v3745 = vmul.f32 %v3735, %v3743
        %v3746 = vmul.f32 %v3736, %v3743
        %v3747 = vmul.f32 %v3737, %v3743
        %v3748 = vmul.f32 %v3738, %v3743
        %v3749 = vpack.c.bf16 %v3745, %v3745
        %v3750 = vpack.c.bf16 %v3746, %v3746
        %v3751 = vpack.c.bf16 %v3747, %v3747
        %v3752 = vpack.c.bf16 %v3748, %v3748
        %vm3753 = vcmask 519168
        %3754 = vst.msk [vmem:[%s676] sm:$0xf] %vm3753, %v3749
        %3755 = vst.msk [vmem:[%s676 + $0x4] sm:$0xf] %vm3753, %v3750
        %3756 = vst.msk [vmem:[%s676 + $0x8] sm:$0xf] %vm3753, %v3751
        %3757 = vst.msk [vmem:[%s676 + $0xc] sm:$0xf] %vm3753, %v3752
      $region84: #{backbone_forward.3} parent=75 // pred_fallthru
        _
      %s3758 = smul.u32 4, %s29
      %p3759 = scmp.lt.s32.totalorder %s3758, 7
      %s3760 = scalar_select %p3759, %s3758, 7
      %s3761 = smul.addr %s3760, 4
      %s3762 = scalar_lea.vmem %s14, %s3761
      // Predicated region
      $region85: #{backbone_forward.3} parent=75 // pred_check
        %p3763 = pneg %p414
      $region86: #{backbone_forward.3} parent=75 // pred_check_branch
        %3765 = sbr.rel (%p3763) target = $region88
      $region87: #{backbone_forward.3} parent=75 // pred_region
        %s3766 = smul.u32 4, %s29
      $region88: #{backbone_forward.3} parent=75 // pred_fallthru
        _
    $region76: #{backbone_forward.3} parent=5 // pred_fallthru
      _
    %p3767 = scmp.le.s32.totalorder 2, %s20
    // Predicated region
    $region89: #{backbone_forward.3} parent=5 // pred_check
      %p3768 = pneg %p3767
    $region90: #{backbone_forward.3} parent=5 // pred_check_branch
      %3770 = sbr.rel (%p3768) target = $region92
    $region91: #{backbone_forward.3} parent=5 // pred_region
      %s3771 = ssub.s32 %s20, 2
      // Predicated region
      $region93: #{backbone_forward.3} parent=91 // pred_check
        %p3772 = pneg %p420
      $region94: #{backbone_forward.3} parent=91 // pred_check_branch
        %3774 = sbr.rel (%p3772) target = $region96
      $region95: #{backbone_forward.3} parent=91 // pred_region
        %s3775 = smul.u32 4, %s31
        %p3776 = scmp.lt.s32.totalorder %s3775, 7
        %s3777 = scalar_select %p3776, %s3775, 7
        %s3778 = smul.addr %s3777, 4
        %s3779 = scalar_lea.vmem %s14, %s3778
      $region96: #{backbone_forward.3} parent=91 // pred_fallthru
        _
    $region92: #{backbone_forward.3} parent=5 // pred_fallthru
      _
  $region6: #{backbone_forward.3} parent=0 // loop_footer
    %s24 = sadd.s32 1, %s20
  $region7: #{backbone_forward.3} parent=0 // loop_footer_branch
    %19 = sbr.rel target = $region3
  $region8: #{backbone_forward.3} parent=0 // loop_exit
    _

</llo_original>
